<compile_context>
chip_gen: v5e
topology: v5e:2x2
jax: 0.10.0
libtpu: 0.0.40
codegen_flags: <defaults>
</compile_context>

<pallas_src>
import functools

import jax
import jax.numpy as jnp
import numpy as np
from jax.experimental import pallas as pl
from jax.experimental.pallas import tpu as pltpu

LANE = 128
APPROX_RECIP = True   # ~2^-12 rel. error on softmax / q normalization; flip for exact


def _round_up(n, m):
    return (n + m - 1) // m * m


def _relu(x):
    return jnp.maximum(x, 0.0)


def _recip(x):
    if APPROX_RECIP:
        return pl.reciprocal(x, approx=True)
    return 1.0 / x


# --------------------------------------------------------------------------
# Generation-aware plan (tile sizes, VMEM limit, resident-vs-streamed GNN path)
# --------------------------------------------------------------------------
def _hw_plan():
    vmem_cap = None
    try:
        info = pltpu.get_tpu_info()
        vmem_cap = getattr(info, "vmem_capacity_bytes", None)
    except Exception:
        vmem_cap = None
    if not vmem_cap:
        vmem_cap = 64 * 1024 * 1024                   # conservative (v7x per-TC)
    vmem_limit = min(int(vmem_cap) * 3 // 4, 100 * 1024 * 1024)
    block_k = 1024 if vmem_cap >= 100 * 1024 * 1024 else 512
    return vmem_limit, block_k


def make_plan(N, params):
    """Pure-python planning: tile sizes, padded node count, GNN path choice."""
    vmem_limit, block_k = _hw_plan()
    e1 = _round_up(params["we1"].shape[1], LANE)
    e2 = _round_up(params["we2"].shape[1], LANE)
    e3 = _round_up(params["we3"].shape[1], LANE)
    nz = _round_up(params["wz"].shape[1], LANE)
    kp = _round_up(params["wg5"].shape[1], LANE)
    max_f = max(e1, e2, e3, nz, kp)

    bm = 256
    Np = _round_up(N, bm)
    if Np // bm < 2:            # keep >=2 row tiles so v7x's second TC gets work
        bm = Np // 2            # Np is a multiple of 256 -> bm is a multiple of 128

    # Resident path VMEM estimate: dbl-buffered adj row slab + resident support
    # + row-tile activations/accumulators (rough, with headroom).
    resident_bytes = (2 * bm * Np * 2) + (2 * Np * max_f * 2) + (8 * bm * max_f * 4)
    resident = resident_bytes <= vmem_limit // 2

    bk = None
    if not resident:
        bk = min(block_k, Np)
        Np = _round_up(N, max(bm, bk))   # bk is a multiple of bm (256 | 512 | 1024)
    return dict(bm=bm, bk=bk, Np=Np, resident=resident, vmem_limit=vmem_limit)


# --------------------------------------------------------------------------
# One-time preprocessing (hoisted out of the per-step jitted forward):
# lane-pad every feature dim to 128, pad nodes to Np, cast adj to bf16.
# --------------------------------------------------------------------------
def pad_params(params):
    pp = {}
    for name, a in params.items():
        rp = _round_up(a.shape[0], LANE) if a.shape[0] > 1 else 1
        cp = _round_up(a.shape[1], LANE)
        pp[name] = jnp.pad(a, ((0, rp - a.shape[0]), (0, cp - a.shape[1])))
    return pp


def preprocess(x, adj, params, plan):
    Np = plan["Np"]
    N, n_input = x.shape
    nip = _round_up(n_input, LANE)
    x_p = jnp.pad(x, ((0, Np - N), (0, nip - n_input)))
    adj_p = jnp.pad(adj, ((0, Np - N), (0, Np - N))).astype(jnp.bfloat16)
    pp = pad_params(params)
    return x_p, adj_p, pp


# --------------------------------------------------------------------------
# Kernel 1a: AE encoder (row-tiled) + first GNN support s1 = x @ Wg1
# --------------------------------------------------------------------------
def _encoder_kernel(x_ref, we1, be1, we2, be2, we3, be3, wz, bz, wg1,
                    t1_ref, t2_ref, t3_ref, z_ref, s1_ref):
    f32 = jnp.float32
    x = x_ref[...]

    def lin(h, w, b):
        return jnp.dot(h, w[...], preferred_element_type=f32) + b[...]

    h1 = _relu(lin(x, we1, be1))
    h2 = _relu(lin(h1, we2, be2))
    h3 = _relu(lin(h2, we3, be3))
    z = lin(h3, wz, bz)

    t1_ref[...] = h1.astype(t1_ref.dtype)
    t2_ref[...] = h2.astype(t2_ref.dtype)
    t3_ref[...] = h3.astype(t3_ref.dtype)
    z_ref[...] = z
    s1_ref[...] = jnp.dot(x, wg1[...], preferred_element_type=f32).astype(s1_ref.dtype)


def _encoder_forward(x_p, pp, bm, vmem_limit):
    Np, nip = x_p.shape
    names = ["we1", "be1", "we2", "be2", "we3", "be3", "wz", "bz", "wg1"]
    weights = [pp[n] for n in names]
    e1 = pp["we1"].shape[1]
    e2 = pp["we2"].shape[1]
    e3 = pp["we3"].shape[1]
    nz = pp["wz"].shape[1]
    g1 = pp["wg1"].shape[1]

    in_specs = [pl.BlockSpec((bm, nip), lambda i: (i, 0))]
    in_specs += [pl.BlockSpec(w.shape, lambda i: (0, 0)) for w in weights]
    out_specs = (
        pl.BlockSpec((bm, e1), lambda i: (i, 0)),
        pl.BlockSpec((bm, e2), lambda i: (i, 0)),
        pl.BlockSpec((bm, e3), lambda i: (i, 0)),
        pl.BlockSpec((bm, nz), lambda i: (i, 0)),
        pl.BlockSpec((bm, g1), lambda i: (i, 0)),
    )
    out_shape = (
        jax.ShapeDtypeStruct((Np, e1), jnp.bfloat16),   # tra1
        jax.ShapeDtypeStruct((Np, e2), jnp.bfloat16),   # tra2
        jax.ShapeDtypeStruct((Np, e3), jnp.bfloat16),   # tra3
        jax.ShapeDtypeStruct((Np, nz), jnp.float32),    # z
        jax.ShapeDtypeStruct((Np, g1), jnp.bfloat16),   # s1 = x @ Wg1
    )
    return pl.pallas_call(
        _encoder_kernel,
        grid=(Np // bm,),
        in_specs=in_specs,
        out_specs=out_specs,
        out_shape=out_shape,
        compiler_params=pltpu.CompilerParams(
            dimension_semantics=("parallel",), vmem_limit_bytes=vmem_limit),
    )(x_p, *weights)


# --------------------------------------------------------------------------
# Kernel 1b: AE decoder (row-tiled)
# --------------------------------------------------------------------------
def _decoder_kernel(z_ref, wd1, bd1, wd2, bd2, wd3, bd3, wxb, bxb, xbar_ref):
    f32 = jnp.float32
    z = z_ref[...]

    def lin(h, w, b):
        return jnp.dot(h, w[...], preferred_element_type=f32) + b[...]

    d1 = _relu(lin(z, wd1, bd1))
    d2 = _relu(lin(d1, wd2, bd2))
    d3 = _relu(lin(d2, wd3, bd3))
    xbar_ref[...] = lin(d3, wxb, bxb)


def _decoder_forward(z, pp, bm, vmem_limit):
    Np, nz = z.shape
    names = ["wd1", "bd1", "wd2", "bd2", "wd3", "bd3", "wxb", "bxb"]
    weights = [pp[n] for n in names]
    nip = pp["wxb"].shape[1]

    in_specs = [pl.BlockSpec((bm, nz), lambda i: (i, 0))]
    in_specs += [pl.BlockSpec(w.shape, lambda i: (0, 0)) for w in weights]
    return pl.pallas_call(
        _decoder_kernel,
        grid=(Np // bm,),
        in_specs=in_specs,
        out_specs=pl.BlockSpec((bm, nip), lambda i: (i, 0)),
        out_shape=jax.ShapeDtypeStruct((Np, nip), jnp.float32),
        compiler_params=pltpu.CompilerParams(
            dimension_semantics=("parallel",), vmem_limit_bytes=vmem_limit),
    )(z, *weights)


# --------------------------------------------------------------------------
# GNN propagate + blend + next-layer projection:
#   h = relu(adj @ s_l) ; s_{l+1} = (0.5*(h + tra_l)) @ W_{l+1}
# Resident (1-D row grid, support held in VMEM) and streamed (2-D grid,
# k-reduction with f32 accumulator) variants.
# --------------------------------------------------------------------------
def _gnn_step_res_kernel(adj_ref, s_ref, t_ref, w_ref, s_next_ref):
    f32 = jnp.float32
    h = _relu(jnp.dot(adj_ref[...], s_ref[...], preferred_element_type=f32))
    blend = 0.5 * (h + t_ref[...].astype(f32))
    s_next_ref[...] = jnp.dot(blend, w_ref[...],
                              preferred_element_type=f32).astype(s_next_ref.dtype)


def _gnn_step_resident(adj_p, s, t, w_next, bm, vmem_limit):
    Np = adj_p.shape[0]
    f_in = s.shape[1]
    f_out = w_next.shape[1]
    return pl.pallas_call(
        _gnn_step_res_kernel,
        grid=(Np // bm,),
        in_specs=[
            pl.BlockSpec((bm, Np), lambda i: (i, 0)),      # adj row slab (bf16)
            pl.BlockSpec((Np, f_in), lambda i: (0, 0)),    # resident support (1 DMA/layer)
            pl.BlockSpec((bm, f_in), lambda i: (i, 0)),    # tra / z rows
            pl.BlockSpec(w_next.shape, lambda i: (0, 0)),  # next-layer weight
        ],
        out_specs=pl.BlockSpec((bm, f_out), lambda i: (i, 0)),
        out_shape=jax.ShapeDtypeStruct((Np, f_out), jnp.bfloat16),
        compiler_params=pltpu.CompilerParams(
            dimension_semantics=("parallel",), vmem_limit_bytes=vmem_limit),
    )(adj_p, s, t, w_next)


def _gnn_step_stream_kernel(adj_ref, s_ref, t_ref, w_ref, s_next_ref, acc_ref):
    k = pl.program_id(1)

    @pl.when(k == 0)
    def _():
        acc_ref[...] = jnp.zeros_like(acc_ref)

    acc_ref[...] += jnp.dot(adj_ref[...], s_ref[...],
                            preferred_element_type=jnp.float32)

    @pl.when(k == pl.num_programs(1) - 1)
    def _():
        h = _relu(acc_ref[...])
        blend = 0.5 * (h + t_ref[...].astype(jnp.float32))
        s_next_ref[...] = jnp.dot(
            blend, w_ref[...], preferred_element_type=jnp.float32
        ).astype(s_next_ref.dtype)


def _gnn_step_streamed(adj_p, s, t, w_next, bm, bk, vmem_limit):
    Np = adj_p.shape[0]
    f_in = s.shape[1]
    f_out = w_next.shape[1]
    return pl.pallas_call(
        _gnn_step_stream_kernel,
        grid=(Np // bm, Np // bk),
        in_specs=[
            pl.BlockSpec((bm, bk), lambda i, k: (i, k)),
            pl.BlockSpec((bk, f_in), lambda i, k: (k, 0)),
            pl.BlockSpec((bm, f_in), lambda i, k: (i, 0)),
            pl.BlockSpec(w_next.shape, lambda i, k: (0, 0)),
        ],
        out_specs=pl.BlockSpec((bm, f_out), lambda i, k: (i, 0)),
        out_shape=jax.ShapeDtypeStruct((Np, f_out), jnp.bfloat16),
        scratch_shapes=[pltpu.VMEM((bm, f_in), jnp.float32)],
        compiler_params=pltpu.CompilerParams(
            dimension_semantics=("parallel", "arbitrary"),
            vmem_limit_bytes=vmem_limit),
    )(adj_p, s, t, w_next)


# --------------------------------------------------------------------------
# Final GNN layer (no ReLU) + softmax(predict) + Student-t q (v = 1).
# Cluster / n_z dims are lane-padded (zero) -> full-lane stores; padded cluster
# lanes are masked before normalization.
# --------------------------------------------------------------------------
def _cluster_epilogue(h, z, c, pred_ref, q_ref, n_clusters):
    bm, kp = h.shape
    col = jax.lax.broadcasted_iota(jnp.int32, (bm, kp), 1)
    valid = col < n_clusters

    # predict = softmax(h) over real cluster lanes
    hm = jnp.where(valid, h, jnp.float32(-1e30))
    m = jnp.max(hm, axis=1, keepdims=True)
    e = jnp.exp(hm - m)
    e = jnp.where(valid, e, jnp.float32(0.0))
    pred_ref[...] = e * _recip(jnp.sum(e, axis=1, keepdims=True))

    # Student-t q (v = 1); ||z - mu||^2 expanded MXU-friendly (padded dims are 0)
    z_sq = jnp.sum(z * z, axis=1, keepdims=True)
    c_sq = jnp.sum(c * c, axis=0, keepdims=True)
    cross = jnp.dot(z, c, preferred_element_type=jnp.float32)
    q = _recip(1.0 + (z_sq + c_sq - 2.0 * cross))
    q = jnp.where(valid, q, jnp.float32(0.0))
    q = q * _recip(jnp.sum(q, axis=1, keepdims=True))   # v=1 -> power is identity
    q_ref[...] = q


def _gnn_final_res_kernel(adj_ref, s_ref, z_ref, clus_ref, pred_ref, q_ref,
                          *, n_clusters):
    h = jnp.dot(adj_ref[...], s_ref[...], preferred_element_type=jnp.float32)
    _cluster_epilogue(h, z_ref[...], clus_ref[...], pred_ref, q_ref, n_clusters)


def _gnn_final_resident(adj_p, s5, z, clus_p, n_clusters, bm, vmem_limit):
    Np = adj_p.shape[0]
    kp = s5.shape[1]
    nz = z.shape[1]
    kernel = functools.partial(_gnn_final_res_kernel, n_clusters=n_clusters)
    return pl.pallas_call(
        kernel,
        grid=(Np // bm,),
        in_specs=[
            pl.BlockSpec((bm, Np), lambda i: (i, 0)),
            pl.BlockSpec((Np, kp), lambda i: (0, 0)),
            pl.BlockSpec((bm, nz), lambda i: (i, 0)),
            pl.BlockSpec(clus_p.shape, lambda i: (0, 0)),
        ],
        out_specs=(pl.BlockSpec((bm, kp), lambda i: (i, 0)),
                   pl.BlockSpec((bm, kp), lambda i: (i, 0))),
        out_shape=(jax.ShapeDtypeStruct((Np, kp), jnp.float32),
                   jax.ShapeDtypeStruct((Np, kp), jnp.float32)),
        compiler_params=pltpu.CompilerParams(
            dimension_semantics=("parallel",), vmem_limit_bytes=vmem_limit),
    )(adj_p, s5, z, clus_p)


def _gnn_final_stream_kernel(adj_ref, s_ref, z_ref, clus_ref, pred_ref, q_ref,
                             acc_ref, *, n_clusters):
    k = pl.program_id(1)

    @pl.when(k == 0)
    def _():
        acc_ref[...] = jnp.zeros_like(acc_ref)

    acc_ref[...] += jnp.dot(adj_ref[...], s_ref[...],
                            preferred_element_type=jnp.float32)

    @pl.when(k == pl.num_programs(1) - 1)
    def _():
        _cluster_epilogue(acc_ref[...], z_ref[...], clus_ref[...],
                          pred_ref, q_ref, n_clusters)


def _gnn_final_streamed(adj_p, s5, z, clus_p, n_clusters, bm, bk, vmem_limit):
    Np = adj_p.shape[0]
    kp = s5.shape[1]
    nz = z.shape[1]
    kernel = functools.partial(_gnn_final_stream_kernel, n_clusters=n_clusters)
    return pl.pallas_call(
        kernel,
        grid=(Np // bm, Np // bk),
        in_specs=[
            pl.BlockSpec((bm, bk), lambda i, k: (i, k)),
            pl.BlockSpec((bk, kp), lambda i, k: (k, 0)),
            pl.BlockSpec((bm, nz), lambda i, k: (i, 0)),
            pl.BlockSpec(clus_p.shape, lambda i, k: (0, 0)),
        ],
        out_specs=(pl.BlockSpec((bm, kp), lambda i, k: (i, 0)),
                   pl.BlockSpec((bm, kp), lambda i, k: (i, 0))),
        out_shape=(jax.ShapeDtypeStruct((Np, kp), jnp.float32),
                   jax.ShapeDtypeStruct((Np, kp), jnp.float32)),
        scratch_shapes=[pltpu.VMEM((bm, kp), jnp.float32)],
        compiler_params=pltpu.CompilerParams(
            dimension_semantics=("parallel", "arbitrary"),
            vmem_limit_bytes=vmem_limit),
    )(adj_p, s5, z, clus_p)


# --------------------------------------------------------------------------
# Full forward (operates on preprocessed / padded tensors)
# --------------------------------------------------------------------------
def sdcn_forward(x_p, adj_p, pp, *, n, n_input, n_z, n_clusters, plan):
    bm = plan["bm"]
    vmem = plan["vmem_limit"]

    # AE: encoder (+ first GNN support) and decoder
    tra1, tra2, tra3, z, s1 = _encoder_forward(x_p, pp, bm, vmem)
    x_bar = _decoder_forward(z, pp, bm, vmem)

    # GNN stack: propagate layer l, blend with tra_l, project to layer l+1
    if plan["resident"]:
        s2 = _gnn_step_resident(adj_p, s1, tra1, pp["wg2"], bm, vmem)
        s3 = _gnn_step_resident(adj_p, s2, tra2, pp["wg3"], bm, vmem)
        s4 = _gnn_step_resident(adj_p, s3, tra3, pp["wg4"], bm, vmem)
        s5 = _gnn_step_resident(adj_p, s4, z, pp["wg5"], bm, vmem)
        pred_p, q_p = _gnn_final_resident(adj_p, s5, z, pp["clus_t"],
                                          n_clusters, bm, vmem)
    else:
        bk = plan["bk"]
        s2 = _gnn_step_streamed(adj_p, s1, tra1, pp["wg2"], bm, bk, vmem)
        s3 = _gnn_step_streamed(adj_p, s2, tra2, pp["wg3"], bm, bk, vmem)
        s4 = _gnn_step_streamed(adj_p, s3, tra3, pp["wg4"], bm, bk, vmem)
        s5 = _gnn_step_streamed(adj_p, s4, z, pp["wg5"], bm, bk, vmem)
        pred_p, q_p = _gnn_final_streamed(adj_p, s5, z, pp["clus_t"],
                                          n_clusters, bm, bk, vmem)

    return (x_bar[:n, :n_input],
            q_p[:n, :n_clusters],
            pred_p[:n, :n_clusters],
            z[:n, :n_z])


# --------------------------------------------------------------------------
# Parameters / reference / test
# --------------------------------------------------------------------------
def make_params(key, n_enc_1, n_enc_2, n_enc_3, n_dec_1, n_dec_2, n_dec_3,
                n_input, n_z, n_clusters):
    """Deterministic synthetic parameters. Weights are [in, out]; biases [1, out]."""
    dims = {
        "we1": (n_input, n_enc_1), "we2": (n_enc_1, n_enc_2),
        "we3": (n_enc_2, n_enc_3), "wz": (n_enc_3, n_z),
        "wd1": (n_z, n_dec_1), "wd2": (n_dec_1, n_dec_2),
        "wd3": (n_dec_2, n_dec_3), "wxb": (n_dec_3, n_input),
        "wg1": (n_input, n_enc_1), "wg2": (n_enc_1, n_enc_2),
        "wg3": (n_enc_2, n_enc_3), "wg4": (n_enc_3, n_z),
        "wg5": (n_z, n_clusters),
        "clus_t": (n_z, n_clusters),   # cluster_layer stored pre-transposed
    }
    bias_dims = {
        "be1": n_enc_1, "be2": n_enc_2, "be3": n_enc_3, "bz": n_z,
        "bd1": n_dec_1, "bd2": n_dec_2, "bd3": n_dec_3, "bxb": n_input,
    }
    params = {}
    keys = jax.random.split(key, len(dims) + len(bias_dims))
    ki = 0
    for name, shp in dims.items():
        params[name] = 0.1 * jax.random.normal(keys[ki], shp, dtype=jnp.float32)
        ki += 1
    for name, d in bias_dims.items():
        params[name] = 0.05 * jax.random.normal(keys[ki], (1, d), dtype=jnp.float32)
        ki += 1
    return params


def sdcn_reference(x, adj, params):
    """Pure-numpy f64 reference matching the PyTorch SDCN forward."""
    x = np.asarray(x, np.float64)
    adj = np.asarray(adj, np.float64)
    p = {k: np.asarray(v, np.float64) for k, v in params.items()}
    relu = lambda a: np.maximum(a, 0.0)
    lin = lambda h, w, b: h @ w + b
    h1 = relu(lin(x, p["we1"], p["be1"]))
    h2 = relu(lin(h1, p["we2"], p["be2"]))
    h3 = relu(lin(h2, p["we3"], p["be3"]))
    z = lin(h3, p["wz"], p["bz"])
    d1 = relu(lin(z, p["wd1"], p["bd1"]))
    d2 = relu(lin(d1, p["wd2"], p["bd2"]))
    d3 = relu(lin(d2, p["wd3"], p["bd3"]))
    x_bar = lin(d3, p["wxb"], p["bxb"])
    sigma = 0.5
    h = relu(adj @ (x @ p["wg1"]))
    h = relu(adj @ (((1 - sigma) * h + sigma * h1) @ p["wg2"]))
    h = relu(adj @ (((1 - sigma) * h + sigma * h2) @ p["wg3"]))
    h = relu(adj @ (((1 - sigma) * h + sigma * h3) @ p["wg4"]))
    h = adj @ (((1 - sigma) * h + sigma * z) @ p["wg5"])
    e = np.exp(h - h.max(axis=1, keepdims=True))
    pred = e / e.sum(axis=1, keepdims=True)
    c = p["clus_t"]                                           # [n_z, K]
    dist2 = ((z[:, :, None] - c[None, :, :]) ** 2).sum(axis=1)
    q = 1.0 / (1.0 + dist2)
    q = q / q.sum(axis=1, keepdims=True)
    return x_bar, q, pred, z


if __name__ == "__main__":
    # Small shapes consistent with the module's forward (N nodes, dense adj).
    N = 256
    n_input = 64
    n_enc_1, n_enc_2, n_enc_3 = 128, 128, 64
    n_dec_1, n_dec_2, n_dec_3 = 64, 128, 128
    n_z, n_clusters = 16, 4

    key = jax.random.PRNGKey(0)
    k_x, k_adj, k_p = jax.random.split(key, 3)

    x = jax.random.normal(k_x, (N, n_input), dtype=jnp.float32)
    # dense, row-normalized non-negative adjacency (stand-in for spmm(adj, .))
    a_raw = jnp.abs(jax.random.normal(k_adj, (N, N), dtype=jnp.float32)) + jnp.eye(N)
    adj = a_raw / jnp.sum(a_raw, axis=1, keepdims=True)

    params = make_params(k_p, n_enc_1, n_enc_2, n_enc_3,
                         n_dec_1, n_dec_2, n_dec_3, n_input, n_z, n_clusters)

    # One-time prep (adj is static across training steps): pad + bf16 cast here,
    # outside the jitted per-step forward.
    plan = make_plan(N, params)
    x_p, adj_p, pp = preprocess(x, adj, params, plan)

    fwd = jax.jit(functools.partial(
        sdcn_forward, n=N, n_input=n_input, n_z=n_z, n_clusters=n_clusters,
        plan=plan))
    x_bar, q, predict, z = fwd(x_p, adj_p, pp)
    jax.block_until_ready((x_bar, q, predict, z))

    assert x_bar.shape == (N, n_input)
    assert q.shape == (N, n_clusters)
    assert predict.shape == (N, n_clusters)
    assert z.shape == (N, n_z)

    # numerical sanity vs f64 reference (loose: bf16 adj/supports/tra + approx recip)
    x_bar_r, q_r, pred_r, z_r = sdcn_reference(x, adj, params)
    np.testing.assert_allclose(np.asarray(x_bar), x_bar_r, rtol=5e-2, atol=5e-2)
    np.testing.assert_allclose(np.asarray(z), z_r, rtol=5e-2, atol=5e-2)
    np.testing.assert_allclose(np.asarray(q), q_r, rtol=5e-2, atol=5e-2)
    np.testing.assert_allclose(np.asarray(predict), pred_r, rtol=5e-2, atol=5e-2)

    # coverage: also exercise the streamed (large-N) GNN path on these small shapes
    plan_s = dict(plan, resident=False, bk=128)
    fwd_s = jax.jit(functools.partial(
        sdcn_forward, n=N, n_input=n_input, n_z=n_z, n_clusters=n_clusters,
        plan=plan_s))
    xb_s, q_s, pred_s, z_s = fwd_s(x_p, adj_p, pp)
    jax.block_until_ready((xb_s, q_s, pred_s, z_s))
    np.testing.assert_allclose(np.asarray(q_s), q_r, rtol=5e-2, atol=5e-2)
    np.testing.assert_allclose(np.asarray(pred_s), pred_r, rtol=5e-2, atol=5e-2)

    print("KERNEL_OK")
</pallas_src>

<mosaic_0001>
module attributes {stable_mosaic.version = 11 : i64} {
  func.func @_gnn_step_res_kernel(%arg0: i32, %arg1: memref<128x256xbf16, #tpu.memory_space<vmem>>, %arg2: memref<256x128xbf16, #tpu.memory_space<vmem>>, %arg3: memref<128x128xbf16, #tpu.memory_space<vmem>>, %arg4: memref<128x128xf32, #tpu.memory_space<vmem>>, %arg5: memref<128x128xbf16, #tpu.memory_space<vmem>>) attributes {dimension_semantics = [#tpu.dimension_semantics<parallel>], iteration_bounds = array<i64: 2>, scalar_prefetch = 0 : i64, scratch_operands = 0 : i64, tpu.core_type = #tpu.core_type<tc>, window_params = [{transform_indices = @transform_0, window_bounds = array<i64: 128, 256>}, {pipeline_mode = #tpu.pipeline_mode<synchronous>, transform_indices = @transform_1, window_bounds = array<i64: 256, 128>}, {transform_indices = @transform_2, window_bounds = array<i64: 128, 128>}, {pipeline_mode = #tpu.pipeline_mode<synchronous>, transform_indices = @transform_3, window_bounds = array<i64: 128, 128>}, {transform_indices = @transform_4, window_bounds = array<i64: 128, 128>}]} {
    %c0 = arith.constant 0 : index
    %c0_0 = arith.constant 0 : index
    %0 = vector.load %arg1[%c0, %c0_0] : memref<128x256xbf16, #tpu.memory_space<vmem>>, vector<128x256xbf16>
    %c0_1 = arith.constant 0 : index
    %c0_2 = arith.constant 0 : index
    %1 = vector.load %arg2[%c0_1, %c0_2] : memref<256x128xbf16, #tpu.memory_space<vmem>>, vector<256x128xbf16>
    %cst = arith.constant dense<0.000000e+00> : vector<128x128xf32>
    %2 = tpu.matmul %0, %1, %cst {dimension_numbers = #tpu.dot_dimension_numbers<[1], [0], [0], [1], [0, 0, 1, 1], [], []>} : vector<128x256xbf16>, vector<256x128xbf16>, vector<128x128xf32> -> vector<128x128xf32>
    %cst_3 = arith.constant 0.000000e+00 : f32
    %3 = vector.broadcast %cst_3 : f32 to vector<128x128xf32>
    %4 = arith.maximumf %2, %3 : vector<128x128xf32>
    %c0_4 = arith.constant 0 : index
    %c0_5 = arith.constant 0 : index
    %5 = vector.load %arg3[%c0_4, %c0_5] : memref<128x128xbf16, #tpu.memory_space<vmem>>, vector<128x128xbf16>
    %6 = arith.extf %5 : vector<128x128xbf16> to vector<128x128xf32>
    %7 = arith.addf %4, %6 : vector<128x128xf32>
    %cst_6 = arith.constant 5.000000e-01 : f32
    %8 = vector.broadcast %cst_6 : f32 to vector<128x128xf32>
    %9 = arith.mulf %8, %7 : vector<128x128xf32>
    %c0_7 = arith.constant 0 : index
    %c0_8 = arith.constant 0 : index
    %10 = vector.load %arg4[%c0_7, %c0_8] : memref<128x128xf32, #tpu.memory_space<vmem>>, vector<128x128xf32>
    %cst_9 = arith.constant dense<0.000000e+00> : vector<128x128xf32>
    %11 = tpu.matmul %9, %10, %cst_9 {dimension_numbers = #tpu.dot_dimension_numbers<[1], [0], [0], [1], [0, 0, 1, 1], [], []>} : vector<128x128xf32>, vector<128x128xf32>, vector<128x128xf32> -> vector<128x128xf32>
    %12 = arith.truncf %11 : vector<128x128xf32> to vector<128x128xbf16>
    %c0_10 = arith.constant 0 : index
    %c0_11 = arith.constant 0 : index
    %13 = vector.load %arg5[%c0_10, %c0_11] : memref<128x128xbf16, #tpu.memory_space<vmem>>, vector<128x128xbf16>
    tpu.vector_store %arg5[%c0_10, %c0_11], %12 {strides = array<i32>} : memref<128x128xbf16, #tpu.memory_space<vmem>>, vector<128x128xbf16>,
    return
  }
  func.func @transform_0(%arg0: i32) -> (i32, i32) {
    %c0_i32 = arith.constant 0 : i32
    %c0_i32_0 = arith.constant 0 : i32
    return %arg0, %c0_i32 : i32, i32
  }
  func.func @transform_1(%arg0: i32) -> (i32, i32) {
    %c0_i32 = arith.constant 0 : i32
    %c0_i32_0 = arith.constant 0 : i32
    %c0_i32_1 = arith.constant 0 : i32
    return %c0_i32, %c0_i32_0 : i32, i32
  }
  func.func @transform_2(%arg0: i32) -> (i32, i32) {
    %c0_i32 = arith.constant 0 : i32
    %c0_i32_0 = arith.constant 0 : i32
    return %arg0, %c0_i32 : i32, i32
  }
  func.func @transform_3(%arg0: i32) -> (i32, i32) {
    %c0_i32 = arith.constant 0 : i32
    %c0_i32_0 = arith.constant 0 : i32
    %c0_i32_1 = arith.constant 0 : i32
    return %c0_i32, %c0_i32_0 : i32, i32
  }
  func.func @transform_4(%arg0: i32) -> (i32, i32) {
    %c0_i32 = arith.constant 0 : i32
    %c0_i32_0 = arith.constant 0 : i32
    return %arg0, %c0_i32 : i32, i32
  }
}

module attributes {stable_mosaic.version = 11 : i64} {
  func.func @_gnn_step_res_kernel(%arg0: i32, %arg1: memref<128x256xbf16, #tpu.memory_space<vmem>>, %arg2: memref<256x128xbf16, #tpu.memory_space<vmem>>, %arg3: memref<128x128xf32, #tpu.memory_space<vmem>>, %arg4: memref<128x128xf32, #tpu.memory_space<vmem>>, %arg5: memref<128x128xbf16, #tpu.memory_space<vmem>>) attributes {dimension_semantics = [#tpu.dimension_semantics<parallel>], iteration_bounds = array<i64: 2>, scalar_prefetch = 0 : i64, scratch_operands = 0 : i64, tpu.core_type = #tpu.core_type<tc>, window_params = [{transform_indices = @transform_0, window_bounds = array<i64: 128, 256>}, {pipeline_mode = #tpu.pipeline_mode<synchronous>, transform_indices = @transform_1, window_bounds = array<i64: 256, 128>}, {transform_indices = @transform_2, window_bounds = array<i64: 128, 128>}, {pipeline_mode = #tpu.pipeline_mode<synchronous>, transform_indices = @transform_3, window_bounds = array<i64: 128, 128>}, {transform_indices = @transform_4, window_bounds = array<i64: 128, 128>}]} {
    %c0 = arith.constant 0 : index
    %c0_0 = arith.constant 0 : index
    %0 = vector.load %arg1[%c0, %c0_0] : memref<128x256xbf16, #tpu.memory_space<vmem>>, vector<128x256xbf16>
    %c0_1 = arith.constant 0 : index
    %c0_2 = arith.constant 0 : index
    %1 = vector.load %arg2[%c0_1, %c0_2] : memref<256x128xbf16, #tpu.memory_space<vmem>>, vector<256x128xbf16>
    %cst = arith.constant dense<0.000000e+00> : vector<128x128xf32>
    %2 = tpu.matmul %0, %1, %cst {dimension_numbers = #tpu.dot_dimension_numbers<[1], [0], [0], [1], [0, 0, 1, 1], [], []>} : vector<128x256xbf16>, vector<256x128xbf16>, vector<128x128xf32> -> vector<128x128xf32>
    %cst_3 = arith.constant 0.000000e+00 : f32
    %3 = vector.broadcast %cst_3 : f32 to vector<128x128xf32>
    %4 = arith.maximumf %2, %3 : vector<128x128xf32>
    %c0_4 = arith.constant 0 : index
    %c0_5 = arith.constant 0 : index
    %5 = vector.load %arg3[%c0_4, %c0_5] : memref<128x128xf32, #tpu.memory_space<vmem>>, vector<128x128xf32>
    %6 = arith.addf %4, %5 : vector<128x128xf32>
    %cst_6 = arith.constant 5.000000e-01 : f32
    %7 = vector.broadcast %cst_6 : f32 to vector<128x128xf32>
    %8 = arith.mulf %7, %6 : vector<128x128xf32>
    %c0_7 = arith.constant 0 : index
    %c0_8 = arith.constant 0 : index
    %9 = vector.load %arg4[%c0_7, %c0_8] : memref<128x128xf32, #tpu.memory_space<vmem>>, vector<128x128xf32>
    %cst_9 = arith.constant dense<0.000000e+00> : vector<128x128xf32>
    %10 = tpu.matmul %8, %9, %cst_9 {dimension_numbers = #tpu.dot_dimension_numbers<[1], [0], [0], [1], [0, 0, 1, 1], [], []>} : vector<128x128xf32>, vector<128x128xf32>, vector<128x128xf32> -> vector<128x128xf32>
    %11 = arith.truncf %10 : vector<128x128xf32> to vector<128x128xbf16>
    %c0_10 = arith.constant 0 : index
    %c0_11 = arith.constant 0 : index
    %12 = vector.load %arg5[%c0_10, %c0_11] : memref<128x128xbf16, #tpu.memory_space<vmem>>, vector<128x128xbf16>
    tpu.vector_store %arg5[%c0_10, %c0_11], %11 {strides = array<i32>} : memref<128x128xbf16, #tpu.memory_space<vmem>>, vector<128x128xbf16>,
    return
  }
  func.func @transform_0(%arg0: i32) -> (i32, i32) {
    %c0_i32 = arith.constant 0 : i32
    %c0_i32_0 = arith.constant 0 : i32
    return %arg0, %c0_i32 : i32, i32
  }
  func.func @transform_1(%arg0: i32) -> (i32, i32) {
    %c0_i32 = arith.constant 0 : i32
    %c0_i32_0 = arith.constant 0 : i32
    %c0_i32_1 = arith.constant 0 : i32
    return %c0_i32, %c0_i32_0 : i32, i32
  }
  func.func @transform_2(%arg0: i32) -> (i32, i32) {
    %c0_i32 = arith.constant 0 : i32
    %c0_i32_0 = arith.constant 0 : i32
    return %arg0, %c0_i32 : i32, i32
  }
  func.func @transform_3(%arg0: i32) -> (i32, i32) {
    %c0_i32 = arith.constant 0 : i32
    %c0_i32_0 = arith.constant 0 : i32
    %c0_i32_1 = arith.constant 0 : i32
    return %c0_i32, %c0_i32_0 : i32, i32
  }
  func.func @transform_4(%arg0: i32) -> (i32, i32) {
    %c0_i32 = arith.constant 0 : i32
    %c0_i32_0 = arith.constant 0 : i32
    return %arg0, %c0_i32 : i32, i32
  }
}

module attributes {stable_mosaic.version = 11 : i64} {
  func.func @_gnn_final_res_kernel(%arg0: i32, %arg1: memref<128x256xbf16, #tpu.memory_space<vmem>>, %arg2: memref<256x128xbf16, #tpu.memory_space<vmem>>, %arg3: memref<128x128xf32, #tpu.memory_space<vmem>>, %arg4: memref<128x128xf32, #tpu.memory_space<vmem>>, %arg5: memref<128x128xf32, #tpu.memory_space<vmem>>, %arg6: memref<128x128xf32, #tpu.memory_space<vmem>>) attributes {dimension_semantics = [#tpu.dimension_semantics<parallel>], iteration_bounds = array<i64: 2>, scalar_prefetch = 0 : i64, scratch_operands = 0 : i64, tpu.core_type = #tpu.core_type<tc>, window_params = [{transform_indices = @transform_0, window_bounds = array<i64: 128, 256>}, {pipeline_mode = #tpu.pipeline_mode<synchronous>, transform_indices = @transform_1, window_bounds = array<i64: 256, 128>}, {transform_indices = @transform_2, window_bounds = array<i64: 128, 128>}, {pipeline_mode = #tpu.pipeline_mode<synchronous>, transform_indices = @transform_3, window_bounds = array<i64: 128, 128>}, {transform_indices = @transform_4, window_bounds = array<i64: 128, 128>}, {transform_indices = @transform_5, window_bounds = array<i64: 128, 128>}]} {
    %c0 = arith.constant 0 : index
    %c0_0 = arith.constant 0 : index
    %0 = vector.load %arg1[%c0, %c0_0] : memref<128x256xbf16, #tpu.memory_space<vmem>>, vector<128x256xbf16>
    %c0_1 = arith.constant 0 : index
    %c0_2 = arith.constant 0 : index
    %1 = vector.load %arg2[%c0_1, %c0_2] : memref<256x128xbf16, #tpu.memory_space<vmem>>, vector<256x128xbf16>
    %cst = arith.constant dense<0.000000e+00> : vector<128x128xf32>
    %2 = tpu.matmul %0, %1, %cst {dimension_numbers = #tpu.dot_dimension_numbers<[1], [0], [0], [1], [0, 0, 1, 1], [], []>} : vector<128x256xbf16>, vector<256x128xbf16>, vector<128x128xf32> -> vector<128x128xf32>
    %c0_3 = arith.constant 0 : index
    %c0_4 = arith.constant 0 : index
    %3 = vector.load %arg3[%c0_3, %c0_4] : memref<128x128xf32, #tpu.memory_space<vmem>>, vector<128x128xf32>
    %c0_5 = arith.constant 0 : index
    %c0_6 = arith.constant 0 : index
    %4 = vector.load %arg4[%c0_5, %c0_6] : memref<128x128xf32, #tpu.memory_space<vmem>>, vector<128x128xf32>
    %5 = tpu.iota {dimensions = array<i32: 1>} : vector<128x128xi32>
    %c4_i32 = arith.constant 4 : i32
    %6 = vector.broadcast %c4_i32 : i32 to vector<128x128xi32>
    %7 = arith.cmpi slt, %5, %6 : vector<128x128xi32>
    %cst_7 = arith.constant -1.000000e+30 : f32
    %8 = vector.broadcast %cst_7 : f32 to vector<128x128xf32>
    %9 = arith.select %7, %2, %8 : vector<128x128xi1>, vector<128x128xf32>
    %cst_8 = arith.constant dense<0xFF800000> : vector<128xf32>
    %10 = vector.multi_reduction <maximumf>, %9, %cst_8 [1] : vector<128x128xf32> to vector<128xf32>
    %11 = vector.shape_cast %10 : vector<128xf32> to vector<128x1xf32>
    %12 = vector.broadcast %11 : vector<128x1xf32> to vector<128x128xf32>
    %13 = arith.subf %9, %12 : vector<128x128xf32>
    %14 = math.exp %13 : vector<128x128xf32>
    %cst_9 = arith.constant 0.000000e+00 : f32
    %15 = vector.broadcast %cst_9 : f32 to vector<128x128xf32>
    %16 = arith.select %7, %14, %15 : vector<128x128xi1>, vector<128x128xf32>
    %cst_10 = arith.constant dense<0.000000e+00> : vector<128xf32>
    %17 = vector.multi_reduction <add>, %16, %cst_10 [1] : vector<128x128xf32> to vector<128xf32>
    %18 = vector.shape_cast %17 : vector<128xf32> to vector<128x1xf32>
    %19 = tpu.reciprocal %18 {approx = true} : vector<128x1xf32> -> vector<128x1xf32>
    %20 = vector.broadcast %19 : vector<128x1xf32> to vector<128x128xf32>
    %21 = arith.mulf %16, %20 : vector<128x128xf32>
    %c0_11 = arith.constant 0 : index
    %c0_12 = arith.constant 0 : index
    %22 = vector.load %arg5[%c0_11, %c0_12] : memref<128x128xf32, #tpu.memory_space<vmem>>, vector<128x128xf32>
    tpu.vector_store %arg5[%c0_11, %c0_12], %21 {strides = array<i32>} : memref<128x128xf32, #tpu.memory_space<vmem>>, vector<128x128xf32>,
    %23 = arith.mulf %3, %3 : vector<128x128xf32>
    %cst_13 = arith.constant dense<0.000000e+00> : vector<128xf32>
    %24 = vector.multi_reduction <add>, %23, %cst_13 [1] : vector<128x128xf32> to vector<128xf32>
    %25 = vector.shape_cast %24 : vector<128xf32> to vector<128x1xf32>
    %26 = arith.mulf %4, %4 : vector<128x128xf32>
    %cst_14 = arith.constant dense<0.000000e+00> : vector<128xf32>
    %27 = vector.multi_reduction <add>, %26, %cst_14 [0] : vector<128x128xf32> to vector<128xf32>
    %28 = vector.shape_cast %27 : vector<128xf32> to vector<1x128xf32>
    %cst_15 = arith.constant dense<0.000000e+00> : vector<128x128xf32>
    %29 = tpu.matmul %3, %4, %cst_15 {dimension_numbers = #tpu.dot_dimension_numbers<[1], [0], [0], [1], [0, 0, 1, 1], [], []>} : vector<128x128xf32>, vector<128x128xf32>, vector<128x128xf32> -> vector<128x128xf32>
    %30 = vector.broadcast %25 : vector<128x1xf32> to vector<128x128xf32>
    %31 = vector.broadcast %28 : vector<1x128xf32> to vector<128x128xf32>
    %32 = arith.addf %30, %31 : vector<128x128xf32>
    %cst_16 = arith.constant 2.000000e+00 : f32
    %33 = vector.broadcast %cst_16 : f32 to vector<128x128xf32>
    %34 = arith.mulf %33, %29 : vector<128x128xf32>
    %35 = arith.subf %32, %34 : vector<128x128xf32>
    %cst_17 = arith.constant 1.000000e+00 : f32
    %36 = vector.broadcast %cst_17 : f32 to vector<128x128xf32>
    %37 = arith.addf %36, %35 : vector<128x128xf32>
    %38 = tpu.reciprocal %37 {approx = true} : vector<128x128xf32> -> vector<128x128xf32>
    %cst_18 = arith.constant 0.000000e+00 : f32
    %39 = vector.broadcast %cst_18 : f32 to vector<128x128xf32>
    %40 = arith.select %7, %38, %39 : vector<128x128xi1>, vector<128x128xf32>
    %cst_19 = arith.constant dense<0.000000e+00> : vector<128xf32>
    %41 = vector.multi_reduction <add>, %40, %cst_19 [1] : vector<128x128xf32> to vector<128xf32>
    %42 = vector.shape_cast %41 : vector<128xf32> to vector<128x1xf32>
    %43 = tpu.reciprocal %42 {approx = true} : vector<128x1xf32> -> vector<128x1xf32>
    %44 = vector.broadcast %43 : vector<128x1xf32> to vector<128x128xf32>
    %45 = arith.mulf %40, %44 : vector<128x128xf32>
    %c0_20 = arith.constant 0 : index
    %c0_21 = arith.constant 0 : index
    %46 = vector.load %arg6[%c0_20, %c0_21] : memref<128x128xf32, #tpu.memory_space<vmem>>, vector<128x128xf32>
    tpu.vector_store %arg6[%c0_20, %c0_21], %45 {strides = array<i32>} : memref<128x128xf32, #tpu.memory_space<vmem>>, vector<128x128xf32>,
    return
  }
  func.func @transform_0(%arg0: i32) -> (i32, i32) {
    %c0_i32 = arith.constant 0 : i32
    %c0_i32_0 = arith.constant 0 : i32
    return %arg0, %c0_i32 : i32, i32
  }
  func.func @transform_1(%arg0: i32) -> (i32, i32) {
    %c0_i32 = arith.constant 0 : i32
    %c0_i32_0 = arith.constant 0 : i32
    %c0_i32_1 = arith.constant 0 : i32
    return %c0_i32, %c0_i32_0 : i32, i32
  }
  func.func @transform_2(%arg0: i32) -> (i32, i32) {
    %c0_i32 = arith.constant 0 : i32
    %c0_i32_0 = arith.constant 0 : i32
    return %arg0, %c0_i32 : i32, i32
  }
  func.func @transform_3(%arg0: i32) -> (i32, i32) {
    %c0_i32 = arith.constant 0 : i32
    %c0_i32_0 = arith.constant 0 : i32
    %c0_i32_1 = arith.constant 0 : i32
    return %c0_i32, %c0_i32_0 : i32, i32
  }
  func.func @transform_4(%arg0: i32) -> (i32, i32) {
    %c0_i32 = arith.constant 0 : i32
    %c0_i32_0 = arith.constant 0 : i32
    return %arg0, %c0_i32 : i32, i32
  }
  func.func @transform_5(%arg0: i32) -> (i32, i32) {
    %c0_i32 = arith.constant 0 : i32
    %c0_i32_0 = arith.constant 0 : i32
    return %arg0, %c0_i32 : i32, i32
  }
}

module attributes {stable_mosaic.version = 11 : i64} {
  func.func @_encoder_kernel(%arg0: i32, %arg1: memref<128x128xf32, #tpu.memory_space<vmem>>, %arg2: memref<128x128xf32, #tpu.memory_space<vmem>>, %arg3: memref<1x128xf32, #tpu.memory_space<vmem>>, %arg4: memref<128x128xf32, #tpu.memory_space<vmem>>, %arg5: memref<1x128xf32, #tpu.memory_space<vmem>>, %arg6: memref<128x128xf32, #tpu.memory_space<vmem>>, %arg7: memref<1x128xf32, #tpu.memory_space<vmem>>, %arg8: memref<128x128xf32, #tpu.memory_space<vmem>>, %arg9: memref<1x128xf32, #tpu.memory_space<vmem>>, %arg10: memref<128x128xf32, #tpu.memory_space<vmem>>, %arg11: memref<128x128xbf16, #tpu.memory_space<vmem>>, %arg12: memref<128x128xbf16, #tpu.memory_space<vmem>>, %arg13: memref<128x128xbf16, #tpu.memory_space<vmem>>, %arg14: memref<128x128xf32, #tpu.memory_space<vmem>>, %arg15: memref<128x128xbf16, #tpu.memory_space<vmem>>) attributes {dimension_semantics = [#tpu.dimension_semantics<parallel>], iteration_bounds = array<i64: 2>, scalar_prefetch = 0 : i64, scratch_operands = 0 : i64, tpu.core_type = #tpu.core_type<tc>, window_params = [{transform_indices = @transform_0, window_bounds = array<i64: 128, 128>}, {pipeline_mode = #tpu.pipeline_mode<synchronous>, transform_indices = @transform_1, window_bounds = array<i64: 128, 128>}, {pipeline_mode = #tpu.pipeline_mode<synchronous>, transform_indices = @transform_2, window_bounds = array<i64: 1, 128>}, {pipeline_mode = #tpu.pipeline_mode<synchronous>, transform_indices = @transform_3, window_bounds = array<i64: 128, 128>}, {pipeline_mode = #tpu.pipeline_mode<synchronous>, transform_indices = @transform_4, window_bounds = array<i64: 1, 128>}, {pipeline_mode = #tpu.pipeline_mode<synchronous>, transform_indices = @transform_5, window_bounds = array<i64: 128, 128>}, {pipeline_mode = #tpu.pipeline_mode<synchronous>, transform_indices = @transform_6, window_bounds = array<i64: 1, 128>}, {pipeline_mode = #tpu.pipeline_mode<synchronous>, transform_indices = @transform_7, window_bounds = array<i64: 128, 128>}, {pipeline_mode = #tpu.pipeline_mode<synchronous>, transform_indices = @transform_8, window_bounds = array<i64: 1, 128>}, {pipeline_mode = #tpu.pipeline_mode<synchronous>, transform_indices = @transform_9, window_bounds = array<i64: 128, 128>}, {transform_indices = @transform_10, window_bounds = array<i64: 128, 128>}, {transform_indices = @transform_11, window_bounds = array<i64: 128, 128>}, {transform_indices = @transform_12, window_bounds = array<i64: 128, 128>}, {transform_indices = @transform_13, window_bounds = array<i64: 128, 128>}, {transform_indices = @transform_14, window_bounds = array<i64: 128, 128>}]} {
    %c0 = arith.constant 0 : index
    %c0_0 = arith.constant 0 : index
    %0 = vector.load %arg1[%c0, %c0_0] : memref<128x128xf32, #tpu.memory_space<vmem>>, vector<128x128xf32>
    %c0_1 = arith.constant 0 : index
    %c0_2 = arith.constant 0 : index
    %1 = vector.load %arg2[%c0_1, %c0_2] : memref<128x128xf32, #tpu.memory_space<vmem>>, vector<128x128xf32>
    %cst = arith.constant dense<0.000000e+00> : vector<128x128xf32>
    %2 = tpu.matmul %0, %1, %cst {dimension_numbers = #tpu.dot_dimension_numbers<[1], [0], [0], [1], [0, 0, 1, 1], [], []>} : vector<128x128xf32>, vector<128x128xf32>, vector<128x128xf32> -> vector<128x128xf32>
    %c0_3 = arith.constant 0 : index
    %c0_4 = arith.constant 0 : index
    %3 = vector.load %arg3[%c0_3, %c0_4] : memref<1x128xf32, #tpu.memory_space<vmem>>, vector<1x128xf32>
    %4 = vector.broadcast %3 : vector<1x128xf32> to vector<128x128xf32>
    %5 = arith.addf %2, %4 : vector<128x128xf32>
    %cst_5 = arith.constant 0.000000e+00 : f32
    %6 = vector.broadcast %cst_5 : f32 to vector<128x128xf32>
    %7 = arith.maximumf %5, %6 : vector<128x128xf32>
    %c0_6 = arith.constant 0 : index
    %c0_7 = arith.constant 0 : index
    %8 = vector.load %arg4[%c0_6, %c0_7] : memref<128x128xf32, #tpu.memory_space<vmem>>, vector<128x128xf32>
    %cst_8 = arith.constant dense<0.000000e+00> : vector<128x128xf32>
    %9 = tpu.matmul %7, %8, %cst_8 {dimension_numbers = #tpu.dot_dimension_numbers<[1], [0], [0], [1], [0, 0, 1, 1], [], []>} : vector<128x128xf32>, vector<128x128xf32>, vector<128x128xf32> -> vector<128x128xf32>
    %c0_9 = arith.constant 0 : index
    %c0_10 = arith.constant 0 : index
    %10 = vector.load %arg5[%c0_9, %c0_10] : memref<1x128xf32, #tpu.memory_space<vmem>>, vector<1x128xf32>
    %11 = vector.broadcast %10 : vector<1x128xf32> to vector<128x128xf32>
    %12 = arith.addf %9, %11 : vector<128x128xf32>
    %cst_11 = arith.constant 0.000000e+00 : f32
    %13 = vector.broadcast %cst_11 : f32 to vector<128x128xf32>
    %14 = arith.maximumf %12, %13 : vector<128x128xf32>
    %c0_12 = arith.constant 0 : index
    %c0_13 = arith.constant 0 : index
    %15 = vector.load %arg6[%c0_12, %c0_13] : memref<128x128xf32, #tpu.memory_space<vmem>>, vector<128x128xf32>
    %cst_14 = arith.constant dense<0.000000e+00> : vector<128x128xf32>
    %16 = tpu.matmul %14, %15, %cst_14 {dimension_numbers = #tpu.dot_dimension_numbers<[1], [0], [0], [1], [0, 0, 1, 1], [], []>} : vector<128x128xf32>, vector<128x128xf32>, vector<128x128xf32> -> vector<128x128xf32>
    %c0_15 = arith.constant 0 : index
    %c0_16 = arith.constant 0 : index
    %17 = vector.load %arg7[%c0_15, %c0_16] : memref<1x128xf32, #tpu.memory_space<vmem>>, vector<1x128xf32>
    %18 = vector.broadcast %17 : vector<1x128xf32> to vector<128x128xf32>
    %19 = arith.addf %16, %18 : vector<128x128xf32>
    %cst_17 = arith.constant 0.000000e+00 : f32
    %20 = vector.broadcast %cst_17 : f32 to vector<128x128xf32>
    %21 = arith.maximumf %19, %20 : vector<128x128xf32>
    %c0_18 = arith.constant 0 : index
    %c0_19 = arith.constant 0 : index
    %22 = vector.load %arg8[%c0_18, %c0_19] : memref<128x128xf32, #tpu.memory_space<vmem>>, vector<128x128xf32>
    %cst_20 = arith.constant dense<0.000000e+00> : vector<128x128xf32>
    %23 = tpu.matmul %21, %22, %cst_20 {dimension_numbers = #tpu.dot_dimension_numbers<[1], [0], [0], [1], [0, 0, 1, 1], [], []>} : vector<128x128xf32>, vector<128x128xf32>, vector<128x128xf32> -> vector<128x128xf32>
    %c0_21 = arith.constant 0 : index
    %c0_22 = arith.constant 0 : index
    %24 = vector.load %arg9[%c0_21, %c0_22] : memref<1x128xf32, #tpu.memory_space<vmem>>, vector<1x128xf32>
    %25 = vector.broadcast %24 : vector<1x128xf32> to vector<128x128xf32>
    %26 = arith.addf %23, %25 : vector<128x128xf32>
    %27 = arith.truncf %7 : vector<128x128xf32> to vector<128x128xbf16>
    %c0_23 = arith.constant 0 : index
    %c0_24 = arith.constant 0 : index
    %28 = vector.load %arg11[%c0_23, %c0_24] : memref<128x128xbf16, #tpu.memory_space<vmem>>, vector<128x128xbf16>
    tpu.vector_store %arg11[%c0_23, %c0_24], %27 {strides = array<i32>} : memref<128x128xbf16, #tpu.memory_space<vmem>>, vector<128x128xbf16>,
    %29 = arith.truncf %14 : vector<128x128xf32> to vector<128x128xbf16>
    %c0_25 = arith.constant 0 : index
    %c0_26 = arith.constant 0 : index
    %30 = vector.load %arg12[%c0_25, %c0_26] : memref<128x128xbf16, #tpu.memory_space<vmem>>, vector<128x128xbf16>
    tpu.vector_store %arg12[%c0_25, %c0_26], %29 {strides = array<i32>} : memref<128x128xbf16, #tpu.memory_space<vmem>>, vector<128x128xbf16>,
    %31 = arith.truncf %21 : vector<128x128xf32> to vector<128x128xbf16>
    %c0_27 = arith.constant 0 : index
    %c0_28 = arith.constant 0 : index
    %32 = vector.load %arg13[%c0_27, %c0_28] : memref<128x128xbf16, #tpu.memory_space<vmem>>, vector<128x128xbf16>
    tpu.vector_store %arg13[%c0_27, %c0_28], %31 {strides = array<i32>} : memref<128x128xbf16, #tpu.memory_space<vmem>>, vector<128x128xbf16>,
    %c0_29 = arith.constant 0 : index
    %c0_30 = arith.constant 0 : index
    %33 = vector.load %arg14[%c0_29, %c0_30] : memref<128x128xf32, #tpu.memory_space<vmem>>, vector<128x128xf32>
    tpu.vector_store %arg14[%c0_29, %c0_30], %26 {strides = array<i32>} : memref<128x128xf32, #tpu.memory_space<vmem>>, vector<128x128xf32>,
    %c0_31 = arith.constant 0 : index
    %c0_32 = arith.constant 0 : index
    %34 = vector.load %arg10[%c0_31, %c0_32] : memref<128x128xf32, #tpu.memory_space<vmem>>, vector<128x128xf32>
    %cst_33 = arith.constant dense<0.000000e+00> : vector<128x128xf32>
    %35 = tpu.matmul %0, %34, %cst_33 {dimension_numbers = #tpu.dot_dimension_numbers<[1], [0], [0], [1], [0, 0, 1, 1], [], []>} : vector<128x128xf32>, vector<128x128xf32>, vector<128x128xf32> -> vector<128x128xf32>
    %36 = arith.truncf %35 : vector<128x128xf32> to vector<128x128xbf16>
    %c0_34 = arith.constant 0 : index
    %c0_35 = arith.constant 0 : index
    %37 = vector.load %arg15[%c0_34, %c0_35] : memref<128x128xbf16, #tpu.memory_space<vmem>>, vector<128x128xbf16>
    tpu.vector_store %arg15[%c0_34, %c0_35], %36 {strides = array<i32>} : memref<128x128xbf16, #tpu.memory_space<vmem>>, vector<128x128xbf16>,
    return
  }
  func.func @transform_0(%arg0: i32) -> (i32, i32) {
    %c0_i32 = arith.constant 0 : i32
    %c0_i32_0 = arith.constant 0 : i32
    return %arg0, %c0_i32 : i32, i32
  }
  func.func @transform_1(%arg0: i32) -> (i32, i32) {
    %c0_i32 = arith.constant 0 : i32
    %c0_i32_0 = arith.constant 0 : i32
    %c0_i32_1 = arith.constant 0 : i32
    return %c0_i32, %c0_i32_0 : i32, i32
  }
  func.func @transform_2(%arg0: i32) -> (i32, i32) {
    %c0_i32 = arith.constant 0 : i32
    %c0_i32_0 = arith.constant 0 : i32
    %c0_i32_1 = arith.constant 0 : i32
    return %c0_i32, %c0_i32_0 : i32, i32
  }
  func.func @transform_3(%arg0: i32) -> (i32, i32) {
    %c0_i32 = arith.constant 0 : i32
    %c0_i32_0 = arith.constant 0 : i32
    %c0_i32_1 = arith.constant 0 : i32
    return %c0_i32, %c0_i32_0 : i32, i32
  }
  func.func @transform_4(%arg0: i32) -> (i32, i32) {
    %c0_i32 = arith.constant 0 : i32
    %c0_i32_0 = arith.constant 0 : i32
    %c0_i32_1 = arith.constant 0 : i32
    return %c0_i32, %c0_i32_0 : i32, i32
  }
  func.func @transform_5(%arg0: i32) -> (i32, i32) {
    %c0_i32 = arith.constant 0 : i32
    %c0_i32_0 = arith.constant 0 : i32
    %c0_i32_1 = arith.constant 0 : i32
    return %c0_i32, %c0_i32_0 : i32, i32
  }
  func.func @transform_6(%arg0: i32) -> (i32, i32) {
    %c0_i32 = arith.constant 0 : i32
    %c0_i32_0 = arith.constant 0 : i32
    %c0_i32_1 = arith.constant 0 : i32
    return %c0_i32, %c0_i32_0 : i32, i32
  }
  func.func @transform_7(%arg0: i32) -> (i32, i32) {
    %c0_i32 = arith.constant 0 : i32
    %c0_i32_0 = arith.constant 0 : i32
    %c0_i32_1 = arith.constant 0 : i32
    return %c0_i32, %c0_i32_0 : i32, i32
  }
  func.func @transform_8(%arg0: i32) -> (i32, i32) {
    %c0_i32 = arith.constant 0 : i32
    %c0_i32_0 = arith.constant 0 : i32
    %c0_i32_1 = arith.constant 0 : i32
    return %c0_i32, %c0_i32_0 : i32, i32
  }
  func.func @transform_9(%arg0: i32) -> (i32, i32) {
    %c0_i32 = arith.constant 0 : i32
    %c0_i32_0 = arith.constant 0 : i32
    %c0_i32_1 = arith.constant 0 : i32
    return %c0_i32, %c0_i32_0 : i32, i32
  }
  func.func @transform_10(%arg0: i32) -> (i32, i32) {
    %c0_i32 = arith.constant 0 : i32
    %c0_i32_0 = arith.constant 0 : i32
    return %arg0, %c0_i32 : i32, i32
  }
  func.func @transform_11(%arg0: i32) -> (i32, i32) {
    %c0_i32 = arith.constant 0 : i32
    %c0_i32_0 = arith.constant 0 : i32
    return %arg0, %c0_i32 : i32, i32
  }
  func.func @transform_12(%arg0: i32) -> (i32, i32) {
    %c0_i32 = arith.constant 0 : i32
    %c0_i32_0 = arith.constant 0 : i32
    return %arg0, %c0_i32 : i32, i32
  }
  func.func @transform_13(%arg0: i32) -> (i32, i32) {
    %c0_i32 = arith.constant 0 : i32
    %c0_i32_0 = arith.constant 0 : i32
    return %arg0, %c0_i32 : i32, i32
  }
  func.func @transform_14(%arg0: i32) -> (i32, i32) {
    %c0_i32 = arith.constant 0 : i32
    %c0_i32_0 = arith.constant 0 : i32
    return %arg0, %c0_i32 : i32, i32
  }
}

module attributes {stable_mosaic.version = 11 : i64} {
  func.func @_decoder_kernel(%arg0: i32, %arg1: memref<128x128xf32, #tpu.memory_space<vmem>>, %arg2: memref<128x128xf32, #tpu.memory_space<vmem>>, %arg3: memref<1x128xf32, #tpu.memory_space<vmem>>, %arg4: memref<128x128xf32, #tpu.memory_space<vmem>>, %arg5: memref<1x128xf32, #tpu.memory_space<vmem>>, %arg6: memref<128x128xf32, #tpu.memory_space<vmem>>, %arg7: memref<1x128xf32, #tpu.memory_space<vmem>>, %arg8: memref<128x128xf32, #tpu.memory_space<vmem>>, %arg9: memref<1x128xf32, #tpu.memory_space<vmem>>, %arg10: memref<128x128xf32, #tpu.memory_space<vmem>>) attributes {dimension_semantics = [#tpu.dimension_semantics<parallel>], iteration_bounds = array<i64: 2>, scalar_prefetch = 0 : i64, scratch_operands = 0 : i64, tpu.core_type = #tpu.core_type<tc>, window_params = [{transform_indices = @transform_0, window_bounds = array<i64: 128, 128>}, {pipeline_mode = #tpu.pipeline_mode<synchronous>, transform_indices = @transform_1, window_bounds = array<i64: 128, 128>}, {pipeline_mode = #tpu.pipeline_mode<synchronous>, transform_indices = @transform_2, window_bounds = array<i64: 1, 128>}, {pipeline_mode = #tpu.pipeline_mode<synchronous>, transform_indices = @transform_3, window_bounds = array<i64: 128, 128>}, {pipeline_mode = #tpu.pipeline_mode<synchronous>, transform_indices = @transform_4, window_bounds = array<i64: 1, 128>}, {pipeline_mode = #tpu.pipeline_mode<synchronous>, transform_indices = @transform_5, window_bounds = array<i64: 128, 128>}, {pipeline_mode = #tpu.pipeline_mode<synchronous>, transform_indices = @transform_6, window_bounds = array<i64: 1, 128>}, {pipeline_mode = #tpu.pipeline_mode<synchronous>, transform_indices = @transform_7, window_bounds = array<i64: 128, 128>}, {pipeline_mode = #tpu.pipeline_mode<synchronous>, transform_indices = @transform_8, window_bounds = array<i64: 1, 128>}, {transform_indices = @transform_9, window_bounds = array<i64: 128, 128>}]} {
    %c0 = arith.constant 0 : index
    %c0_0 = arith.constant 0 : index
    %0 = vector.load %arg1[%c0, %c0_0] : memref<128x128xf32, #tpu.memory_space<vmem>>, vector<128x128xf32>
    %c0_1 = arith.constant 0 : index
    %c0_2 = arith.constant 0 : index
    %1 = vector.load %arg2[%c0_1, %c0_2] : memref<128x128xf32, #tpu.memory_space<vmem>>, vector<128x128xf32>
    %cst = arith.constant dense<0.000000e+00> : vector<128x128xf32>
    %2 = tpu.matmul %0, %1, %cst {dimension_numbers = #tpu.dot_dimension_numbers<[1], [0], [0], [1], [0, 0, 1, 1], [], []>} : vector<128x128xf32>, vector<128x128xf32>, vector<128x128xf32> -> vector<128x128xf32>
    %c0_3 = arith.constant 0 : index
    %c0_4 = arith.constant 0 : index
    %3 = vector.load %arg3[%c0_3, %c0_4] : memref<1x128xf32, #tpu.memory_space<vmem>>, vector<1x128xf32>
    %4 = vector.broadcast %3 : vector<1x128xf32> to vector<128x128xf32>
    %5 = arith.addf %2, %4 : vector<128x128xf32>
    %cst_5 = arith.constant 0.000000e+00 : f32
    %6 = vector.broadcast %cst_5 : f32 to vector<128x128xf32>
    %7 = arith.maximumf %5, %6 : vector<128x128xf32>
    %c0_6 = arith.constant 0 : index
    %c0_7 = arith.constant 0 : index
    %8 = vector.load %arg4[%c0_6, %c0_7] : memref<128x128xf32, #tpu.memory_space<vmem>>, vector<128x128xf32>
    %cst_8 = arith.constant dense<0.000000e+00> : vector<128x128xf32>
    %9 = tpu.matmul %7, %8, %cst_8 {dimension_numbers = #tpu.dot_dimension_numbers<[1], [0], [0], [1], [0, 0, 1, 1], [], []>} : vector<128x128xf32>, vector<128x128xf32>, vector<128x128xf32> -> vector<128x128xf32>
    %c0_9 = arith.constant 0 : index
    %c0_10 = arith.constant 0 : index
    %10 = vector.load %arg5[%c0_9, %c0_10] : memref<1x128xf32, #tpu.memory_space<vmem>>, vector<1x128xf32>
    %11 = vector.broadcast %10 : vector<1x128xf32> to vector<128x128xf32>
    %12 = arith.addf %9, %11 : vector<128x128xf32>
    %cst_11 = arith.constant 0.000000e+00 : f32
    %13 = vector.broadcast %cst_11 : f32 to vector<128x128xf32>
    %14 = arith.maximumf %12, %13 : vector<128x128xf32>
    %c0_12 = arith.constant 0 : index
    %c0_13 = arith.constant 0 : index
    %15 = vector.load %arg6[%c0_12, %c0_13] : memref<128x128xf32, #tpu.memory_space<vmem>>, vector<128x128xf32>
    %cst_14 = arith.constant dense<0.000000e+00> : vector<128x128xf32>
    %16 = tpu.matmul %14, %15, %cst_14 {dimension_numbers = #tpu.dot_dimension_numbers<[1], [0], [0], [1], [0, 0, 1, 1], [], []>} : vector<128x128xf32>, vector<128x128xf32>, vector<128x128xf32> -> vector<128x128xf32>
    %c0_15 = arith.constant 0 : index
    %c0_16 = arith.constant 0 : index
    %17 = vector.load %arg7[%c0_15, %c0_16] : memref<1x128xf32, #tpu.memory_space<vmem>>, vector<1x128xf32>
    %18 = vector.broadcast %17 : vector<1x128xf32> to vector<128x128xf32>
    %19 = arith.addf %16, %18 : vector<128x128xf32>
    %cst_17 = arith.constant 0.000000e+00 : f32
    %20 = vector.broadcast %cst_17 : f32 to vector<128x128xf32>
    %21 = arith.maximumf %19, %20 : vector<128x128xf32>
    %c0_18 = arith.constant 0 : index
    %c0_19 = arith.constant 0 : index
    %22 = vector.load %arg8[%c0_18, %c0_19] : memref<128x128xf32, #tpu.memory_space<vmem>>, vector<128x128xf32>
    %cst_20 = arith.constant dense<0.000000e+00> : vector<128x128xf32>
    %23 = tpu.matmul %21, %22, %cst_20 {dimension_numbers = #tpu.dot_dimension_numbers<[1], [0], [0], [1], [0, 0, 1, 1], [], []>} : vector<128x128xf32>, vector<128x128xf32>, vector<128x128xf32> -> vector<128x128xf32>
    %c0_21 = arith.constant 0 : index
    %c0_22 = arith.constant 0 : index
    %24 = vector.load %arg9[%c0_21, %c0_22] : memref<1x128xf32, #tpu.memory_space<vmem>>, vector<1x128xf32>
    %25 = vector.broadcast %24 : vector<1x128xf32> to vector<128x128xf32>
    %26 = arith.addf %23, %25 : vector<128x128xf32>
    %c0_23 = arith.constant 0 : index
    %c0_24 = arith.constant 0 : index
    %27 = vector.load %arg10[%c0_23, %c0_24] : memref<128x128xf32, #tpu.memory_space<vmem>>, vector<128x128xf32>
    tpu.vector_store %arg10[%c0_23, %c0_24], %26 {strides = array<i32>} : memref<128x128xf32, #tpu.memory_space<vmem>>, vector<128x128xf32>,
    return
  }
  func.func @transform_0(%arg0: i32) -> (i32, i32) {
    %c0_i32 = arith.constant 0 : i32
    %c0_i32_0 = arith.constant 0 : i32
    return %arg0, %c0_i32 : i32, i32
  }
  func.func @transform_1(%arg0: i32) -> (i32, i32) {
    %c0_i32 = arith.constant 0 : i32
    %c0_i32_0 = arith.constant 0 : i32
    %c0_i32_1 = arith.constant 0 : i32
    return %c0_i32, %c0_i32_0 : i32, i32
  }
  func.func @transform_2(%arg0: i32) -> (i32, i32) {
    %c0_i32 = arith.constant 0 : i32
    %c0_i32_0 = arith.constant 0 : i32
    %c0_i32_1 = arith.constant 0 : i32
    return %c0_i32, %c0_i32_0 : i32, i32
  }
  func.func @transform_3(%arg0: i32) -> (i32, i32) {
    %c0_i32 = arith.constant 0 : i32
    %c0_i32_0 = arith.constant 0 : i32
    %c0_i32_1 = arith.constant 0 : i32
    return %c0_i32, %c0_i32_0 : i32, i32
  }
  func.func @transform_4(%arg0: i32) -> (i32, i32) {
    %c0_i32 = arith.constant 0 : i32
    %c0_i32_0 = arith.constant 0 : i32
    %c0_i32_1 = arith.constant 0 : i32
    return %c0_i32, %c0_i32_0 : i32, i32
  }
  func.func @transform_5(%arg0: i32) -> (i32, i32) {
    %c0_i32 = arith.constant 0 : i32
    %c0_i32_0 = arith.constant 0 : i32
    %c0_i32_1 = arith.constant 0 : i32
    return %c0_i32, %c0_i32_0 : i32, i32
  }
  func.func @transform_6(%arg0: i32) -> (i32, i32) {
    %c0_i32 = arith.constant 0 : i32
    %c0_i32_0 = arith.constant 0 : i32
    %c0_i32_1 = arith.constant 0 : i32
    return %c0_i32, %c0_i32_0 : i32, i32
  }
  func.func @transform_7(%arg0: i32) -> (i32, i32) {
    %c0_i32 = arith.constant 0 : i32
    %c0_i32_0 = arith.constant 0 : i32
    %c0_i32_1 = arith.constant 0 : i32
    return %c0_i32, %c0_i32_0 : i32, i32
  }
  func.func @transform_8(%arg0: i32) -> (i32, i32) {
    %c0_i32 = arith.constant 0 : i32
    %c0_i32_0 = arith.constant 0 : i32
    %c0_i32_1 = arith.constant 0 : i32
    return %c0_i32, %c0_i32_0 : i32, i32
  }
  func.func @transform_9(%arg0: i32) -> (i32, i32) {
    %c0_i32 = arith.constant 0 : i32
    %c0_i32_0 = arith.constant 0 : i32
    return %arg0, %c0_i32 : i32, i32
  }
}

</mosaic_0001>

<llo_original>
// kernel: sdcn_forward.12
$region0: #{sdcn_forward.12}
  #allocation0 [shape = 'u32[]', space=smem, size = 0x4, offset = 0x4, fixed_abs, tag = 'smem constant byte address 0x4 - core index']
  #allocation1 [shape = 'u32[72,128]{1,0:T(1,128)}', space=vmem, size = 0x9000, scoped, tag = 'internal scratch']
  %s0 = inlined_call_operand.hbm [shape: bf16[256,256], index: 0, kind: input, shape index: {}]
  %s1 = inlined_call_operand.vmem [shape: bf16[256,128], index: 1, kind: input, shape index: {}]
  %s2 = inlined_call_operand.vmem [shape: f32[256,128], index: 2, kind: input, shape index: {}]
  %s3 = inlined_call_operand.hbm [shape: f32[128,128], index: 3, kind: input, shape index: {}]
  %s4 = inlined_call_operand.vmem [shape: bf16[256,128], index: 4, kind: output, shape index: {}]
  %s5 = sld [smem:[#allocation0]]
  $region57: #{sdcn_forward.12} parent=0
    _
  %s7 = ssub.s32 1, %s5
  %s8 = scalar_select 0, %s7, %s5
  $region1: #{sdcn_forward.12} parent=0
    #allocation2 [shape = 'u8[131072]{0}', space=vmem, size = 0x20000, scoped, tag = 'input window, operand 0']
    #allocation3 [shape = 's32[2]{0}', space=sflag, size = 0x8, scoped, tag = 'scoped memory for sdcn_forward.12']
    #allocation4 [shape = 'u8[65536]{0}', space=vmem, size = 0x10000, scoped, tag = 'input window, operand 3, single buffered']
    #allocation5 [shape = 's32[1]{0}', space=sflag, size = 0x4, scoped, tag = 'scoped memory for sdcn_forward.12']
    %9 = vsyncpa [#allocation3], 0
    %s10 = scalar_lea.sflag [#allocation3], 1
    %11 = vsyncpa %s10, 0
    %12 = vsyncpa [#allocation5], 0
    loop: start=0, step=1, limit=4
    $region2: #{sdcn_forward.12} parent=1 // loop_pre_header
      _
    $region3: #{sdcn_forward.12} parent=1 // loop_header
      %s14 = sphi 0, %s18
      %p15 = scmp.ge.s32.totalorder %s14, 4
      %s24 = sphi 0, %s26
      %s27 = sphi 0, %s24
      %s28 = sphi 0, %s27
      %s44 = sphi 0, %s28
      %s48 = sphi 0, %s48
      %s50 = sphi 0, %s48
      %s51 = sphi 0, %s50
      %s65 = sphi 0, %s51
      %s71 = sphi 0, %s73
      %s74 = sphi 0, %s71
      %s75 = sphi 0, %s74
      %s91 = sphi 0, %s75
      %s95 = sphi 0, %s95
      %s97 = sphi 0, %s95
      %s98 = sphi 0, %s97
      %s112 = sphi 0, %s98
      %s118 = sphi 0, %s120
      %s121 = sphi 0, %s118
      %s122 = sphi 0, %s121
      %s138 = sphi 0, %s122
    $region4: #{sdcn_forward.12} parent=1 // loop_header_branch
      %17 = sbr.rel (%p15) target = $region8
    $region5: #{sdcn_forward.12} parent=1 // loop_body
      %s19 = ssub.s32 %s14, 1
      %s20 = ssub.s32 %s14, 2
      %s21 = sadd.s32 %s14, 1
      %s22 = ssub.s32 %s14, %s21
      %p23 = scmp.eq.s32.totalorder %s22, 0
      %s25 = sadd.s32 %s24, 1
      %s26 = scalar_select %p23, %s24, %s25
      %p29 = pneg %p23
      %p30 = scmp.eq.s32.totalorder %s14, 1
      %p31 = por %p29, %p30
      %p32 = scmp.ne.s32.totalorder %s24, %s27
      %p33 = scmp.eq.s32.totalorder %s14, 0
      %p34 = por %p32, %p33
      %p35 = scmp.ne.s32.totalorder %s24, %s27
      %p36 = scmp.eq.s32.totalorder %s19, 1
      %p37 = por %p35, %p36
      %p38 = scmp.ne.s32.totalorder %s27, %s28
      %p39 = scmp.eq.s32.totalorder %s19, 0
      %p40 = por %p38, %p39
      %p41 = scmp.ne.s32.totalorder %s27, %s28
      %p42 = scmp.eq.s32.totalorder %s20, 1
      %p43 = por %p41, %p42
      %p45 = scmp.ne.s32.totalorder %s28, %s44
      %p46 = scmp.eq.s32.totalorder %s20, 0
      %p47 = por %p45, %p46
      %s49 = sadd.s32 %s48, 1
      %p52 = scmp.eq.s32.totalorder %s14, 1
      %p53 = scmp.ne.s32.totalorder %s48, %s50
      %p54 = scmp.eq.s32.totalorder %s14, 0
      %p55 = por %p53, %p54
      %p56 = scmp.ne.s32.totalorder %s48, %s50
      %p57 = scmp.eq.s32.totalorder %s19, 1
      %p58 = por %p56, %p57
      %p59 = scmp.ne.s32.totalorder %s50, %s51
      %p60 = scmp.eq.s32.totalorder %s19, 0
      %p61 = por %p59, %p60
      %p62 = scmp.ne.s32.totalorder %s50, %s51
      %p63 = scmp.eq.s32.totalorder %s20, 1
      %p64 = por %p62, %p63
      %p66 = scmp.ne.s32.totalorder %s51, %s65
      %p67 = scmp.eq.s32.totalorder %s20, 0
      %p68 = por %p66, %p67
      %s69 = ssub.s32 %s14, %s21
      %p70 = scmp.eq.s32.totalorder %s69, 0
      %s72 = sadd.s32 %s71, 1
      %s73 = scalar_select %p70, %s71, %s72
      %p76 = pneg %p70
      %p77 = scmp.eq.s32.totalorder %s14, 1
      %p78 = por %p76, %p77
      %p79 = scmp.ne.s32.totalorder %s71, %s74
      %p80 = scmp.eq.s32.totalorder %s14, 0
      %p81 = por %p79, %p80
      %p82 = scmp.ne.s32.totalorder %s71, %s74
      %p83 = scmp.eq.s32.totalorder %s19, 1
      %p84 = por %p82, %p83
      %p85 = scmp.ne.s32.totalorder %s74, %s75
      %p86 = scmp.eq.s32.totalorder %s19, 0
      %p87 = por %p85, %p86
      %p88 = scmp.ne.s32.totalorder %s74, %s75
      %p89 = scmp.eq.s32.totalorder %s20, 1
      %p90 = por %p88, %p89
      %p92 = scmp.ne.s32.totalorder %s75, %s91
      %p93 = scmp.eq.s32.totalorder %s20, 0
      %p94 = por %p92, %p93
      %s96 = sadd.s32 %s95, 1
      %p99 = scmp.eq.s32.totalorder %s14, 1
      %p100 = scmp.ne.s32.totalorder %s95, %s97
      %p101 = scmp.eq.s32.totalorder %s14, 0
      %p102 = por %p100, %p101
      %p103 = scmp.ne.s32.totalorder %s95, %s97
      %p104 = scmp.eq.s32.totalorder %s19, 1
      %p105 = por %p103, %p104
      %p106 = scmp.ne.s32.totalorder %s97, %s98
      %p107 = scmp.eq.s32.totalorder %s19, 0
      %p108 = por %p106, %p107
      %p109 = scmp.ne.s32.totalorder %s97, %s98
      %p110 = scmp.eq.s32.totalorder %s20, 1
      %p111 = por %p109, %p110
      %p113 = scmp.ne.s32.totalorder %s98, %s112
      %p114 = scmp.eq.s32.totalorder %s20, 0
      %p115 = por %p113, %p114
      %s116 = ssub.s32 %s14, %s21
      %p117 = scmp.eq.s32.totalorder %s116, 0
      %s119 = sadd.s32 %s118, 1
      %s120 = scalar_select %p117, %s118, %s119
      %p123 = pneg %p117
      %p124 = scmp.eq.s32.totalorder %s14, 1
      %p125 = por %p123, %p124
      %p126 = scmp.ne.s32.totalorder %s118, %s121
      %p127 = scmp.eq.s32.totalorder %s14, 0
      %p128 = por %p126, %p127
      %p129 = scmp.ne.s32.totalorder %s118, %s121
      %p130 = scmp.eq.s32.totalorder %s19, 1
      %p131 = por %p129, %p130
      %p132 = scmp.ne.s32.totalorder %s121, %s122
      %p133 = scmp.eq.s32.totalorder %s19, 0
      %p134 = por %p132, %p133
      %p135 = scmp.ne.s32.totalorder %s121, %s122
      %p136 = scmp.eq.s32.totalorder %s20, 1
      %p137 = por %p135, %p136
      %p139 = scmp.ne.s32.totalorder %s122, %s138
      %p140 = scmp.eq.s32.totalorder %s20, 0
      %p141 = por %p139, %p140
      %p142 = scmp.le.s32.totalorder 1, %s14
      %p143 = scmp.lt.s32.totalorder %s14, 3
      %p144 = pnand %p142, %p143
      %p145 = pneg %p144
      // Predicated region
      $region9: #{sdcn_forward.12} parent=5 // pred_check
        _
      $region10: #{sdcn_forward.12} parent=5 // pred_check_branch
        %147 = sbr.rel (%p144) target = $region12
      $region11: #{sdcn_forward.12} parent=5 // pred_region
        %s148 = ssub.s32 %s14, 1
        // Predicated region
        $region13: #{sdcn_forward.12} parent=11 // pred_check
          %p149 = pneg %p61
        $region14: #{sdcn_forward.12} parent=11 // pred_check_branch
          %151 = sbr.rel (%p149) target = $region16
        $region15: #{sdcn_forward.12} parent=11 // pred_region
          _
        $region16: #{sdcn_forward.12} parent=11 // pred_fallthru
          _
        // Predicated region
        $region17: #{sdcn_forward.12} parent=11 // pred_check
          %p152 = pneg %p108
        $region18: #{sdcn_forward.12} parent=11 // pred_check_branch
          %154 = sbr.rel (%p152) target = $region20
        $region19: #{sdcn_forward.12} parent=11 // pred_region
          %156 = vsyncadd [#allocation5], 0
          %s157 = sshll.u32 %s3, 4
          %s158 = int_to_ptr.hbm [resolvable:$true] %s157
          %s159 = sshll.u32 [#allocation4], 4
          %s160 = int_to_ptr.vmem [resolvable:$true] %s159
          %165 = dma.hbm_to_vmem [thread:$0]  %s158, 2048, %s160, [#allocation5], 128, 128, 8
        $region20: #{sdcn_forward.12} parent=11 // pred_fallthru
          _
      $region12: #{sdcn_forward.12} parent=5 // pred_fallthru
        _
      %p166 = scmp.lt.s32.totalorder %s14, 2
      // Predicated region
      $region21: #{sdcn_forward.12} parent=5 // pred_check
        %p167 = pneg %p166
      $region22: #{sdcn_forward.12} parent=5 // pred_check_branch
        %169 = sbr.rel (%p167) target = $region24
      $region23: #{sdcn_forward.12} parent=5 // pred_region
        // Predicated region
        $region25: #{sdcn_forward.12} parent=23 // pred_check
          %p170 = pneg %p34
        $region26: #{sdcn_forward.12} parent=23 // pred_check_branch
          %172 = sbr.rel (%p170) target = $region28
        $region27: #{sdcn_forward.12} parent=23 // pred_region
          %s173 = sand.u32 %s24, 1
          %s174 = scalar_lea.sflag [#allocation3], %s173
          %s175 = sand.u32 %s24, 1
          %s176 = smul.addr %s175, 128
          %s177 = scalar_lea.vmem [#allocation2], %s176
          %s178 = smul.u32 16, %s14
          %180 = vsyncadd %s174, 0
          %s181 = smul.addr %s178, 2
          %s182 = smul.addr %s181, 4
          %s183 = scalar_lea.hbm %s0, %s182
          %s184 = sshll.u32 %s183, 4
          %s185 = int_to_ptr.hbm [resolvable:$true] %s184
          %s186 = sshll.u32 %s177, 4
          %s187 = int_to_ptr.vmem [resolvable:$true] %s186
          %192 = dma.hbm_to_vmem [thread:$0]  %s185, 2048, %s187, %s174, 128, 128, 8
        $region28: #{sdcn_forward.12} parent=23 // pred_fallthru
          _
        // Predicated region
        $region29: #{sdcn_forward.12} parent=23 // pred_check
          %p193 = pneg %p81
        $region30: #{sdcn_forward.12} parent=23 // pred_check_branch
          %195 = sbr.rel (%p193) target = $region32
        $region31: #{sdcn_forward.12} parent=23 // pred_region
          %s196 = smul.u32 16, %s14
          %p197 = scmp.lt.s32.totalorder %s196, 31
          %s198 = scalar_select %p197, %s196, 31
          %s199 = smul.addr %s198, 8
          %s200 = scalar_lea.vmem %s2, %s199
          %s201 = smul.u32 16, %s14
        $region32: #{sdcn_forward.12} parent=23 // pred_fallthru
          _
      $region24: #{sdcn_forward.12} parent=5 // pred_fallthru
        _
      %p202 = scmp.le.s32.totalorder 1, %s14
      %p203 = scmp.lt.s32.totalorder %s14, 3
      %p204 = pnand %p202, %p203
      %p205 = pneg %p204
      // Predicated region
      $region33: #{sdcn_forward.12} parent=5 // pred_check
        _
      $region34: #{sdcn_forward.12} parent=5 // pred_check_branch
        %207 = sbr.rel (%p204) target = $region36
      $region35: #{sdcn_forward.12} parent=5 // pred_region
        %s208 = ssub.s32 %s14, 1
        %s209 = sand.u32 %s27, 1
        %s210 = scalar_lea.sflag [#allocation3], %s209
        %s211 = sand.u32 %s27, 1
        %s212 = smul.addr %s211, 128
        %s213 = scalar_lea.vmem [#allocation2], %s212
        // Predicated region
        $region37: #{sdcn_forward.12} parent=35 // pred_check
          %p214 = pneg %p40
        $region38: #{sdcn_forward.12} parent=35 // pred_check_branch
          %216 = sbr.rel (%p214) target = $region40
        $region39: #{sdcn_forward.12} parent=35 // pred_region
          %218 = dma.done %s210, 2048
        $region40: #{sdcn_forward.12} parent=35 // pred_fallthru
          _
        // Predicated region
        $region41: #{sdcn_forward.12} parent=35 // pred_check
          %p219 = pneg %p108
        $region42: #{sdcn_forward.12} parent=35 // pred_check_branch
          %221 = sbr.rel (%p219) target = $region44
        $region43: #{sdcn_forward.12} parent=35 // pred_region
          %223 = dma.done [#allocation5], 2048
        $region44: #{sdcn_forward.12} parent=35 // pred_fallthru
          _
        %s224 = sand.u32 %s27, 1
        %s225 = scalar_lea.sflag [#allocation3], %s224
        %s226 = sand.u32 %s27, 1
        %s227 = smul.addr %s226, 128
        %s228 = scalar_lea.vmem [#allocation2], %s227
        %p229 = pneg %p40
        %p230 = pneg %p37
        %p231 = pneg %p61
        %p232 = pneg %p58
        %s233 = smul.u32 16, %s19
        %p234 = scmp.lt.s32.totalorder %s233, 31
        %s235 = scalar_select %p234, %s233, 31
        %s236 = smul.addr %s235, 8
        %s237 = scalar_lea.vmem %s2, %s236
        %p238 = pneg %p87
        %p239 = pneg %p84
        %p240 = pneg %p108
        %p241 = pneg %p105
        %p242 = pneg %p134
        %p243 = pneg %p131
        %s244 = smul.u32 16, %s19
        %p245 = scmp.lt.s32.totalorder %s244, 31
        %s246 = scalar_select %p245, %s244, 31
        %s247 = smul.addr %s246, 4
        %s248 = scalar_lea.vmem %s4, %s247
        %s249 = smul.u32 16, %s19
        %s250 = smul.u32 16, %s19
        %p251 = scmp.lt.s32.totalorder %s250, 31
        %s252 = scalar_select %p251, %s250, 31
        %s253 = smul.addr %s252, 8
        %s254 = scalar_lea.vmem %s2, %s253
        %s255 = smul.u32 16, %s19
        %s256 = smul.u32 16, %s19
        %p257 = scmp.lt.s32.totalorder %s256, 31
        %s258 = scalar_select %p257, %s256, 31
        %s259 = smul.addr %s258, 4
        %s260 = scalar_lea.vmem %s4, %s259
        %s261 = smul.u32 16, %s19
        %v262 = vld [vmem:[%s213] sm:$0xff]
        %v263 = vld [vmem:[%s213 + $0x8] sm:$0xff]
        %v264 = vld [vmem:[%s213 + $0x10] sm:$0xff]
        %v265 = vld [vmem:[%s213 + $0x18] sm:$0xff]
        %v266 = vld [vmem:[%s213 + $0x20] sm:$0xff]
        %v267 = vld [vmem:[%s213 + $0x28] sm:$0xff]
        %v268 = vld [vmem:[%s213 + $0x30] sm:$0xff]
        %v269 = vld [vmem:[%s213 + $0x38] sm:$0xff]
        %v270 = vld [vmem:[%s213 + $0x40] sm:$0xff]
        %v271 = vld [vmem:[%s213 + $0x48] sm:$0xff]
        %v272 = vld [vmem:[%s213 + $0x50] sm:$0xff]
        %v273 = vld [vmem:[%s213 + $0x58] sm:$0xff]
        %v274 = vld [vmem:[%s213 + $0x60] sm:$0xff]
        %v275 = vld [vmem:[%s213 + $0x68] sm:$0xff]
        %v276 = vld [vmem:[%s213 + $0x70] sm:$0xff]
        %v277 = vld [vmem:[%s213 + $0x78] sm:$0xff]
        %v278 = vld [vmem:[%s1] sm:$0xf]
        %v279 = vld [vmem:[%s1 + $0x4] sm:$0xf]
        %v280 = vld [vmem:[%s1 + $0x8] sm:$0xf]
        %v281 = vld [vmem:[%s1 + $0xc] sm:$0xf]
        %v282 = vld [vmem:[%s1 + $0x10] sm:$0xf]
        %v283 = vld [vmem:[%s1 + $0x14] sm:$0xf]
        %v284 = vld [vmem:[%s1 + $0x18] sm:$0xf]
        %v285 = vld [vmem:[%s1 + $0x1c] sm:$0xf]
        %v286 = vld [vmem:[%s1 + $0x20] sm:$0xf]
        %v287 = vld [vmem:[%s1 + $0x24] sm:$0xf]
        %v288 = vld [vmem:[%s1 + $0x28] sm:$0xf]
        %v289 = vld [vmem:[%s1 + $0x2c] sm:$0xf]
        %v290 = vld [vmem:[%s1 + $0x30] sm:$0xf]
        %v291 = vld [vmem:[%s1 + $0x34] sm:$0xf]
        %v292 = vld [vmem:[%s1 + $0x38] sm:$0xf]
        %v293 = vld [vmem:[%s1 + $0x3c] sm:$0xf]
        %v294 = vld [vmem:[%s1 + $0x40] sm:$0xf]
        %v295 = vld [vmem:[%s1 + $0x44] sm:$0xf]
        %v296 = vld [vmem:[%s1 + $0x48] sm:$0xf]
        %v297 = vld [vmem:[%s1 + $0x4c] sm:$0xf]
        %v298 = vld [vmem:[%s1 + $0x50] sm:$0xf]
        %v299 = vld [vmem:[%s1 + $0x54] sm:$0xf]
        %v300 = vld [vmem:[%s1 + $0x58] sm:$0xf]
        %v301 = vld [vmem:[%s1 + $0x5c] sm:$0xf]
        %v302 = vld [vmem:[%s1 + $0x60] sm:$0xf]
        %v303 = vld [vmem:[%s1 + $0x64] sm:$0xf]
        %v304 = vld [vmem:[%s1 + $0x68] sm:$0xf]
        %v305 = vld [vmem:[%s1 + $0x6c] sm:$0xf]
        %v306 = vld [vmem:[%s1 + $0x70] sm:$0xf]
        %v307 = vld [vmem:[%s1 + $0x74] sm:$0xf]
        %v308 = vld [vmem:[%s1 + $0x78] sm:$0xf]
        %v309 = vld [vmem:[%s1 + $0x7c] sm:$0xf]
        %v326 = vunpack.c.l.b16 %v262
        %v327 = vunpack.c.h.b16 %v262
        %v328 = vunpack.c.l.b16 %v263
        %v329 = vunpack.c.h.b16 %v263
        %v330 = vunpack.c.l.b16 %v264
        %v331 = vunpack.c.h.b16 %v264
        %v332 = vunpack.c.l.b16 %v265
        %v333 = vunpack.c.h.b16 %v265
        %v334 = vunpack.c.l.b16 %v266
        %v335 = vunpack.c.h.b16 %v266
        %v336 = vunpack.c.l.b16 %v267
        %v337 = vunpack.c.h.b16 %v267
        %v338 = vunpack.c.l.b16 %v268
        %v339 = vunpack.c.h.b16 %v268
        %v340 = vunpack.c.l.b16 %v269
        %v341 = vunpack.c.h.b16 %v269
        %v342 = vunpack.c.l.b16 %v270
        %v343 = vunpack.c.h.b16 %v270
        %v344 = vunpack.c.l.b16 %v271
        %v345 = vunpack.c.h.b16 %v271
        %v346 = vunpack.c.l.b16 %v272
        %v347 = vunpack.c.h.b16 %v272
        %v348 = vunpack.c.l.b16 %v273
        %v349 = vunpack.c.h.b16 %v273
        %v350 = vunpack.c.l.b16 %v274
        %v351 = vunpack.c.h.b16 %v274
        %v352 = vunpack.c.l.b16 %v275
        %v353 = vunpack.c.h.b16 %v275
        %v354 = vunpack.c.l.b16 %v276
        %v355 = vunpack.c.h.b16 %v276
        %v356 = vunpack.c.l.b16 %v277
        %v357 = vunpack.c.h.b16 %v277
        %v358 = vpack.c.b16 %v328, %v326
        %v359 = vpack.c.b16 %v329, %v327
        %v360 = vpack.c.b16 %v332, %v330
        %v361 = vpack.c.b16 %v333, %v331
        %v362 = vpack.c.b16 %v336, %v334
        %v363 = vpack.c.b16 %v337, %v335
        %v364 = vpack.c.b16 %v340, %v338
        %v365 = vpack.c.b16 %v341, %v339
        %v366 = vpack.c.b16 %v344, %v342
        %v367 = vpack.c.b16 %v345, %v343
        %v368 = vpack.c.b16 %v348, %v346
        %v369 = vpack.c.b16 %v349, %v347
        %v370 = vpack.c.b16 %v352, %v350
        %v371 = vpack.c.b16 %v353, %v351
        %v372 = vpack.c.b16 %v356, %v354
        %v373 = vpack.c.b16 %v357, %v355
        %v422 = vunpack.c.l.b16 %v278
        %v423 = vunpack.c.l.b16 %v279
        %v424 = vunpack.c.l.b16 %v280
        %v425 = vunpack.c.l.b16 %v281
        %v426 = vunpack.c.l.b16 %v282
        %v427 = vunpack.c.l.b16 %v283
        %v428 = vunpack.c.l.b16 %v284
        %v429 = vunpack.c.l.b16 %v285
        %v430 = vunpack.c.l.b16 %v286
        %v431 = vunpack.c.l.b16 %v287
        %v432 = vunpack.c.l.b16 %v288
        %v433 = vunpack.c.l.b16 %v289
        %v434 = vunpack.c.l.b16 %v290
        %v435 = vunpack.c.l.b16 %v291
        %v436 = vunpack.c.l.b16 %v292
        %v437 = vunpack.c.l.b16 %v293
        %v438 = vunpack.c.l.b16 %v294
        %v439 = vunpack.c.l.b16 %v295
        %v440 = vunpack.c.l.b16 %v296
        %v441 = vunpack.c.l.b16 %v297
        %v442 = vunpack.c.l.b16 %v298
        %v443 = vunpack.c.l.b16 %v299
        %v444 = vunpack.c.l.b16 %v300
        %v445 = vunpack.c.l.b16 %v301
        %v446 = vunpack.c.l.b16 %v302
        %v447 = vunpack.c.l.b16 %v303
        %v448 = vunpack.c.l.b16 %v304
        %v449 = vunpack.c.l.b16 %v305
        %v450 = vunpack.c.l.b16 %v306
        %v451 = vunpack.c.l.b16 %v307
        %v452 = vunpack.c.l.b16 %v308
        %v453 = vunpack.c.l.b16 %v309
        %v454 = vpack.c.b16 %v423, %v422
        %v455 = vpack.c.b16 %v425, %v424
        %v456 = vpack.c.b16 %v427, %v426
        %v457 = vpack.c.b16 %v429, %v428
        %v458 = vpack.c.b16 %v431, %v430
        %v459 = vpack.c.b16 %v433, %v432
        %v460 = vpack.c.b16 %v435, %v434
        %v461 = vpack.c.b16 %v437, %v436
        %v462 = vpack.c.b16 %v439, %v438
        %v463 = vpack.c.b16 %v441, %v440
        %v464 = vpack.c.b16 %v443, %v442
        %v465 = vpack.c.b16 %v445, %v444
        %v466 = vpack.c.b16 %v447, %v446
        %v467 = vpack.c.b16 %v449, %v448
        %v468 = vpack.c.b16 %v451, %v450
        %v469 = vpack.c.b16 %v453, %v452
        %486 = vmatpush.bf16.msra.mxu0 %v461
        %487 = vmatpush.bf16.msra.mxu0 %v460
        %488 = vmatpush.bf16.msra.mxu0 %v459
        %489 = vmatpush.bf16.msra.mxu0 %v458
        %490 = vmatpush.bf16.msra.mxu0 %v457
        %491 = vmatpush.bf16.msra.mxu0 %v456
        %492 = vmatpush.bf16.msra.mxu0 %v455
        %493 = vmatpush.bf16.msra.mxu0 %v454
        %494 = vmatmul.bf16.gmra.mxu0 %v358
        %v495 = vpop.f32.mrf.mxu0
        %v496 = vadd.f32 0.0, %v495
        %v497 = vpop.f32.mrf.mxu0
        %v498 = vadd.f32 0.0, %v497
        %499 = vmatmul.bf16.gmra.mxu0 %v360
        %v500 = vpop.f32.mrf.mxu0
        %v501 = vadd.f32 0.0, %v500
        %v502 = vpop.f32.mrf.mxu0
        %v503 = vadd.f32 0.0, %v502
        %504 = vmatmul.bf16.gmra.mxu0 %v362
        %v505 = vpop.f32.mrf.mxu0
        %v506 = vadd.f32 0.0, %v505
        %v507 = vpop.f32.mrf.mxu0
        %v508 = vadd.f32 0.0, %v507
        %509 = vmatmul.bf16.gmra.mxu0 %v364
        %v510 = vpop.f32.mrf.mxu0
        %v511 = vadd.f32 0.0, %v510
        %v512 = vpop.f32.mrf.mxu0
        %v513 = vadd.f32 0.0, %v512
        %514 = vmatmul.bf16.gmra.mxu0 %v366
        %v515 = vpop.f32.mrf.mxu0
        %v516 = vadd.f32 0.0, %v515
        %v517 = vpop.f32.mrf.mxu0
        %v518 = vadd.f32 0.0, %v517
        %519 = vmatmul.bf16.gmra.mxu0 %v368
        %v520 = vpop.f32.mrf.mxu0
        %v521 = vadd.f32 0.0, %v520
        %v522 = vpop.f32.mrf.mxu0
        %v523 = vadd.f32 0.0, %v522
        %524 = vmatmul.bf16.gmra.mxu0 %v370
        %v525 = vpop.f32.mrf.mxu0
        %v526 = vadd.f32 0.0, %v525
        %v527 = vpop.f32.mrf.mxu0
        %v528 = vadd.f32 0.0, %v527
        %529 = vmatmul.bf16.gmra.mxu0 %v372
        %v530 = vpop.f32.mrf.mxu0
        %v531 = vadd.f32 0.0, %v530
        %v532 = vpop.f32.mrf.mxu0
        %v533 = vadd.f32 0.0, %v532
        %534 = vdwg.mxu0
        %535 = vmatpush.bf16.msra.mxu0 %v469
        %536 = vmatpush.bf16.msra.mxu0 %v468
        %537 = vmatpush.bf16.msra.mxu0 %v467
        %538 = vmatpush.bf16.msra.mxu0 %v466
        %539 = vmatpush.bf16.msra.mxu0 %v465
        %540 = vmatpush.bf16.msra.mxu0 %v464
        %541 = vmatpush.bf16.msra.mxu0 %v463
        %542 = vmatpush.bf16.msra.mxu0 %v462
        %543 = vmatmul.bf16.gmra.mxu0 %v359
        %v544 = vpop.f32.mrf.mxu0
        %v545 = vadd.f32 %v496, %v544
        %v546 = vpop.f32.mrf.mxu0
        %v547 = vadd.f32 %v498, %v546
        %548 = vmatmul.bf16.gmra.mxu0 %v361
        %v549 = vpop.f32.mrf.mxu0
        %v550 = vadd.f32 %v501, %v549
        %v551 = vpop.f32.mrf.mxu0
        %v552 = vadd.f32 %v503, %v551
        %553 = vmatmul.bf16.gmra.mxu0 %v363
        %v554 = vpop.f32.mrf.mxu0
        %v555 = vadd.f32 %v506, %v554
        %v556 = vpop.f32.mrf.mxu0
        %v557 = vadd.f32 %v508, %v556
        %558 = vmatmul.bf16.gmra.mxu0 %v365
        %v559 = vpop.f32.mrf.mxu0
        %v560 = vadd.f32 %v511, %v559
        %v561 = vpop.f32.mrf.mxu0
        %v562 = vadd.f32 %v513, %v561
        %563 = vmatmul.bf16.gmra.mxu0 %v367
        %v564 = vpop.f32.mrf.mxu0
        %v565 = vadd.f32 %v516, %v564
        %v566 = vpop.f32.mrf.mxu0
        %v567 = vadd.f32 %v518, %v566
        %568 = vmatmul.bf16.gmra.mxu0 %v369
        %v569 = vpop.f32.mrf.mxu0
        %v570 = vadd.f32 %v521, %v569
        %v571 = vpop.f32.mrf.mxu0
        %v572 = vadd.f32 %v523, %v571
        %573 = vmatmul.bf16.gmra.mxu0 %v371
        %v574 = vpop.f32.mrf.mxu0
        %v575 = vadd.f32 %v526, %v574
        %v576 = vpop.f32.mrf.mxu0
        %v577 = vadd.f32 %v528, %v576
        %578 = vmatmul.bf16.gmra.mxu0 %v373
        %v579 = vpop.f32.mrf.mxu0
        %v580 = vadd.f32 %v531, %v579
        %v581 = vpop.f32.mrf.mxu0
        %v582 = vadd.f32 %v533, %v581
        %583 = vdwg.mxu0
        %v584 = vmax.f32 %v545, 0.0
        %v585 = vmax.f32 %v547, 0.0
        %v586 = vmax.f32 %v550, 0.0
        %v587 = vmax.f32 %v552, 0.0
        %v588 = vmax.f32 %v555, 0.0
        %v589 = vmax.f32 %v557, 0.0
        %v590 = vmax.f32 %v560, 0.0
        %v591 = vmax.f32 %v562, 0.0
        %v592 = vmax.f32 %v565, 0.0
        %v593 = vmax.f32 %v567, 0.0
        %v594 = vmax.f32 %v570, 0.0
        %v595 = vmax.f32 %v572, 0.0
        %v596 = vmax.f32 %v575, 0.0
        %v597 = vmax.f32 %v577, 0.0
        %v598 = vmax.f32 %v580, 0.0
        %v599 = vmax.f32 %v582, 0.0
        %v600 = vld [vmem:[%s254] sm:$0xff]
        %v601 = vld [vmem:[%s254 + $0x8] sm:$0xff]
        %v602 = vld [vmem:[%s254 + $0x10] sm:$0xff]
        %v603 = vld [vmem:[%s254 + $0x18] sm:$0xff]
        %v604 = vld [vmem:[%s254 + $0x20] sm:$0xff]
        %v605 = vld [vmem:[%s254 + $0x28] sm:$0xff]
        %v606 = vld [vmem:[%s254 + $0x30] sm:$0xff]
        %v607 = vld [vmem:[%s254 + $0x38] sm:$0xff]
        %v608 = vld [vmem:[%s254 + $0x40] sm:$0xff]
        %v609 = vld [vmem:[%s254 + $0x48] sm:$0xff]
        %v610 = vld [vmem:[%s254 + $0x50] sm:$0xff]
        %v611 = vld [vmem:[%s254 + $0x58] sm:$0xff]
        %v612 = vld [vmem:[%s254 + $0x60] sm:$0xff]
        %v613 = vld [vmem:[%s254 + $0x68] sm:$0xff]
        %v614 = vld [vmem:[%s254 + $0x70] sm:$0xff]
        %v615 = vld [vmem:[%s254 + $0x78] sm:$0xff]
        %v616 = vadd.f32 %v584, %v600
        %v617 = vadd.f32 %v585, %v601
        %v618 = vadd.f32 %v586, %v602
        %v619 = vadd.f32 %v587, %v603
        %v620 = vadd.f32 %v588, %v604
        %v621 = vadd.f32 %v589, %v605
        %v622 = vadd.f32 %v590, %v606
        %v623 = vadd.f32 %v591, %v607
        %v624 = vadd.f32 %v592, %v608
        %v625 = vadd.f32 %v593, %v609
        %v626 = vadd.f32 %v594, %v610
        %v627 = vadd.f32 %v595, %v611
        %v628 = vadd.f32 %v596, %v612
        %v629 = vadd.f32 %v597, %v613
        %v630 = vadd.f32 %v598, %v614
        %v631 = vadd.f32 %v599, %v615
        %v632 = vmul.f32 %v616, 0.5
        %v633 = vmul.f32 %v617, 0.5
        %v634 = vmul.f32 %v618, 0.5
        %v635 = vmul.f32 %v619, 0.5
        %v636 = vmul.f32 %v620, 0.5
        %v637 = vmul.f32 %v621, 0.5
        %v638 = vmul.f32 %v622, 0.5
        %v639 = vmul.f32 %v623, 0.5
        %v640 = vmul.f32 %v624, 0.5
        %v641 = vmul.f32 %v625, 0.5
        %v642 = vmul.f32 %v626, 0.5
        %v643 = vmul.f32 %v627, 0.5
        %v644 = vmul.f32 %v628, 0.5
        %v645 = vmul.f32 %v629, 0.5
        %v646 = vmul.f32 %v630, 0.5
        %v647 = vmul.f32 %v631, 0.5
        %v648 = vld [vmem:[#allocation4] sm:$0xff]
        %v649 = vld [vmem:[#allocation4 + $0x8] sm:$0xff]
        %v650 = vld [vmem:[#allocation4 + $0x10] sm:$0xff]
        %v651 = vld [vmem:[#allocation4 + $0x18] sm:$0xff]
        %v652 = vld [vmem:[#allocation4 + $0x20] sm:$0xff]
        %v653 = vld [vmem:[#allocation4 + $0x28] sm:$0xff]
        %v654 = vld [vmem:[#allocation4 + $0x30] sm:$0xff]
        %v655 = vld [vmem:[#allocation4 + $0x38] sm:$0xff]
        %v656 = vld [vmem:[#allocation4 + $0x40] sm:$0xff]
        %v657 = vld [vmem:[#allocation4 + $0x48] sm:$0xff]
        %v658 = vld [vmem:[#allocation4 + $0x50] sm:$0xff]
        %v659 = vld [vmem:[#allocation4 + $0x58] sm:$0xff]
        %v660 = vld [vmem:[#allocation4 + $0x60] sm:$0xff]
        %v661 = vld [vmem:[#allocation4 + $0x68] sm:$0xff]
        %v662 = vld [vmem:[#allocation4 + $0x70] sm:$0xff]
        %v663 = vld [vmem:[#allocation4 + $0x78] sm:$0xff]
        %664 = vmatpush.msra.mxu0 %v663
        %665 = vmatpush.msra.mxu0 %v662
        %666 = vmatpush.msra.mxu0 %v661
        %667 = vmatpush.msra.mxu0 %v660
        %668 = vmatpush.msra.mxu0 %v659
        %669 = vmatpush.msra.mxu0 %v658
        %670 = vmatpush.msra.mxu0 %v657
        %671 = vmatpush.msra.mxu0 %v656
        %672 = vmatpush.msra.mxu0 %v655
        %673 = vmatpush.msra.mxu0 %v654
        %674 = vmatpush.msra.mxu0 %v653
        %675 = vmatpush.msra.mxu0 %v652
        %676 = vmatpush.msra.mxu0 %v651
        %677 = vmatpush.msra.mxu0 %v650
        %678 = vmatpush.msra.mxu0 %v649
        %679 = vmatpush.msra.mxu0 %v648
        %680 = vmatmul.f32.gmra.mxu0 %v632
        %v681 = vpop.f32.mrf.mxu0
        %v682 = vadd.f32 0.0, %v681
        %683 = vmatmul.f32.gmra.mxu0 %v633
        %v684 = vpop.f32.mrf.mxu0
        %v685 = vadd.f32 0.0, %v684
        %686 = vmatmul.f32.gmra.mxu0 %v634
        %v687 = vpop.f32.mrf.mxu0
        %v688 = vadd.f32 0.0, %v687
        %689 = vmatmul.f32.gmra.mxu0 %v635
        %v690 = vpop.f32.mrf.mxu0
        %v691 = vadd.f32 0.0, %v690
        %692 = vmatmul.f32.gmra.mxu0 %v636
        %v693 = vpop.f32.mrf.mxu0
        %v694 = vadd.f32 0.0, %v693
        %695 = vmatmul.f32.gmra.mxu0 %v637
        %v696 = vpop.f32.mrf.mxu0
        %v697 = vadd.f32 0.0, %v696
        %698 = vmatmul.f32.gmra.mxu0 %v638
        %v699 = vpop.f32.mrf.mxu0
        %v700 = vadd.f32 0.0, %v699
        %701 = vmatmul.f32.gmra.mxu0 %v639
        %v702 = vpop.f32.mrf.mxu0
        %v703 = vadd.f32 0.0, %v702
        %704 = vmatmul.f32.gmra.mxu0 %v640
        %v705 = vpop.f32.mrf.mxu0
        %v706 = vadd.f32 0.0, %v705
        %707 = vmatmul.f32.gmra.mxu0 %v641
        %v708 = vpop.f32.mrf.mxu0
        %v709 = vadd.f32 0.0, %v708
        %710 = vmatmul.f32.gmra.mxu0 %v642
        %v711 = vpop.f32.mrf.mxu0
        %v712 = vadd.f32 0.0, %v711
        %713 = vmatmul.f32.gmra.mxu0 %v643
        %v714 = vpop.f32.mrf.mxu0
        %v715 = vadd.f32 0.0, %v714
        %716 = vmatmul.f32.gmra.mxu0 %v644
        %v717 = vpop.f32.mrf.mxu0
        %v718 = vadd.f32 0.0, %v717
        %719 = vmatmul.f32.gmra.mxu0 %v645
        %v720 = vpop.f32.mrf.mxu0
        %v721 = vadd.f32 0.0, %v720
        %722 = vmatmul.f32.gmra.mxu0 %v646
        %v723 = vpop.f32.mrf.mxu0
        %v724 = vadd.f32 0.0, %v723
        %725 = vmatmul.f32.gmra.mxu0 %v647
        %v726 = vpop.f32.mrf.mxu0
        %v727 = vadd.f32 0.0, %v726
        %728 = vdwg.mxu0
        %v729 = vpack.c.bf16 %v682, %v682
        %v730 = vpack.c.bf16 %v685, %v685
        %v731 = vpack.c.bf16 %v688, %v688
        %v732 = vpack.c.bf16 %v691, %v691
        %v733 = vpack.c.bf16 %v694, %v694
        %v734 = vpack.c.bf16 %v697, %v697
        %v735 = vpack.c.bf16 %v700, %v700
        %v736 = vpack.c.bf16 %v703, %v703
        %v737 = vpack.c.bf16 %v706, %v706
        %v738 = vpack.c.bf16 %v709, %v709
        %v739 = vpack.c.bf16 %v712, %v712
        %v740 = vpack.c.bf16 %v715, %v715
        %v741 = vpack.c.bf16 %v718, %v718
        %v742 = vpack.c.bf16 %v721, %v721
        %v743 = vpack.c.bf16 %v724, %v724
        %v744 = vpack.c.bf16 %v727, %v727
        %745 = vst [vmem:[%s260] sm:$0xf] %v729
        %746 = vst [vmem:[%s260 + $0x4] sm:$0xf] %v730
        %747 = vst [vmem:[%s260 + $0x8] sm:$0xf] %v731
        %748 = vst [vmem:[%s260 + $0xc] sm:$0xf] %v732
        %749 = vst [vmem:[%s260 + $0x10] sm:$0xf] %v733
        %750 = vst [vmem:[%s260 + $0x14] sm:$0xf] %v734
        %751 = vst [vmem:[%s260 + $0x18] sm:$0xf] %v735
        %752 = vst [vmem:[%s260 + $0x1c] sm:$0xf] %v736
        %753 = vst [vmem:[%s260 + $0x20] sm:$0xf] %v737
        %754 = vst [vmem:[%s260 + $0x24] sm:$0xf] %v738
        %755 = vst [vmem:[%s260 + $0x28] sm:$0xf] %v739
        %756 = vst [vmem:[%s260 + $0x2c] sm:$0xf] %v740
        %757 = vst [vmem:[%s260 + $0x30] sm:$0xf] %v741
        %758 = vst [vmem:[%s260 + $0x34] sm:$0xf] %v742
        %759 = vst [vmem:[%s260 + $0x38] sm:$0xf] %v743
        %760 = vst [vmem:[%s260 + $0x3c] sm:$0xf] %v744
        %s761 = smul.u32 16, %s19
        %p762 = scmp.lt.s32.totalorder %s761, 31
        %s763 = scalar_select %p762, %s761, 31
        %s764 = smul.addr %s763, 4
        %s765 = scalar_lea.vmem %s4, %s764
        // Predicated region
        $region45: #{sdcn_forward.12} parent=35 // pred_check
          %p766 = pneg %p131
        $region46: #{sdcn_forward.12} parent=35 // pred_check_branch
          %768 = sbr.rel (%p766) target = $region48
        $region47: #{sdcn_forward.12} parent=35 // pred_region
          %s769 = smul.u32 16, %s19
        $region48: #{sdcn_forward.12} parent=35 // pred_fallthru
          _
      $region36: #{sdcn_forward.12} parent=5 // pred_fallthru
        _
      %p770 = scmp.le.s32.totalorder 2, %s14
      // Predicated region
      $region49: #{sdcn_forward.12} parent=5 // pred_check
        %p771 = pneg %p770
      $region50: #{sdcn_forward.12} parent=5 // pred_check_branch
        %773 = sbr.rel (%p771) target = $region52
      $region51: #{sdcn_forward.12} parent=5 // pred_region
        %s774 = ssub.s32 %s14, 2
        // Predicated region
        $region53: #{sdcn_forward.12} parent=51 // pred_check
          %p775 = pneg %p137
        $region54: #{sdcn_forward.12} parent=51 // pred_check_branch
          %777 = sbr.rel (%p775) target = $region56
        $region55: #{sdcn_forward.12} parent=51 // pred_region
          %s778 = smul.u32 16, %s20
          %p779 = scmp.lt.s32.totalorder %s778, 31
          %s780 = scalar_select %p779, %s778, 31
          %s781 = smul.addr %s780, 4
          %s782 = scalar_lea.vmem %s4, %s781
        $region56: #{sdcn_forward.12} parent=51 // pred_fallthru
          _
      $region52: #{sdcn_forward.12} parent=5 // pred_fallthru
        _
    $region6: #{sdcn_forward.12} parent=1 // loop_footer
      %s18 = sadd.s32 1, %s14
    $region7: #{sdcn_forward.12} parent=1 // loop_footer_branch
      %13 = sbr.rel target = $region3
    $region8: #{sdcn_forward.12} parent=1 // loop_exit
      _
    %783 = vsyncpa [#allocation3], 1
    %s784 = scalar_lea.sflag [#allocation3], 1
    %785 = vsyncpa %s784, 1
    %786 = vsyncpa [#allocation5], 1

// kernel: sdcn_forward.9
$region0: #{sdcn_forward.9}
  #allocation0 [shape = 'u32[]', space=smem, size = 0x4, offset = 0x4, fixed_abs, tag = 'smem constant byte address 0x4 - core index']
  #allocation1 [shape = 'u32[72,128]{1,0:T(1,128)}', space=vmem, size = 0x9000, scoped, tag = 'internal scratch']
  %s0 = inlined_call_operand.hbm [shape: bf16[256,256], index: 0, kind: input, shape index: {}]
  %s1 = inlined_call_operand.vmem [shape: bf16[256,128], index: 1, kind: input, shape index: {}]
  %s2 = inlined_call_operand.vmem [shape: bf16[256,128], index: 2, kind: input, shape index: {}]
  %s3 = inlined_call_operand.hbm [shape: f32[128,128], index: 3, kind: input, shape index: {}]
  %s4 = inlined_call_operand.vmem [shape: bf16[256,128], index: 4, kind: output, shape index: {}]
  %s5 = sld [smem:[#allocation0]]
  $region57: #{sdcn_forward.9} parent=0
    _
  %s7 = ssub.s32 1, %s5
  %s8 = scalar_select 0, %s7, %s5
  $region1: #{sdcn_forward.9} parent=0
    #allocation2 [shape = 'u8[131072]{0}', space=vmem, size = 0x20000, scoped, tag = 'input window, operand 0']
    #allocation3 [shape = 's32[2]{0}', space=sflag, size = 0x8, scoped, tag = 'scoped memory for sdcn_forward.9']
    #allocation4 [shape = 'u8[65536]{0}', space=vmem, size = 0x10000, scoped, tag = 'input window, operand 3, single buffered']
    #allocation5 [shape = 's32[1]{0}', space=sflag, size = 0x4, scoped, tag = 'scoped memory for sdcn_forward.9']
    %9 = vsyncpa [#allocation3], 0
    %s10 = scalar_lea.sflag [#allocation3], 1
    %11 = vsyncpa %s10, 0
    %12 = vsyncpa [#allocation5], 0
    loop: start=0, step=1, limit=4
    $region2: #{sdcn_forward.9} parent=1 // loop_pre_header
      _
    $region3: #{sdcn_forward.9} parent=1 // loop_header
      %s14 = sphi 0, %s18
      %p15 = scmp.ge.s32.totalorder %s14, 4
      %s24 = sphi 0, %s26
      %s27 = sphi 0, %s24
      %s28 = sphi 0, %s27
      %s44 = sphi 0, %s28
      %s48 = sphi 0, %s48
      %s50 = sphi 0, %s48
      %s51 = sphi 0, %s50
      %s65 = sphi 0, %s51
      %s71 = sphi 0, %s73
      %s74 = sphi 0, %s71
      %s75 = sphi 0, %s74
      %s91 = sphi 0, %s75
      %s95 = sphi 0, %s95
      %s97 = sphi 0, %s95
      %s98 = sphi 0, %s97
      %s112 = sphi 0, %s98
      %s118 = sphi 0, %s120
      %s121 = sphi 0, %s118
      %s122 = sphi 0, %s121
      %s138 = sphi 0, %s122
    $region4: #{sdcn_forward.9} parent=1 // loop_header_branch
      %17 = sbr.rel (%p15) target = $region8
    $region5: #{sdcn_forward.9} parent=1 // loop_body
      %s19 = ssub.s32 %s14, 1
      %s20 = ssub.s32 %s14, 2
      %s21 = sadd.s32 %s14, 1
      %s22 = ssub.s32 %s14, %s21
      %p23 = scmp.eq.s32.totalorder %s22, 0
      %s25 = sadd.s32 %s24, 1
      %s26 = scalar_select %p23, %s24, %s25
      %p29 = pneg %p23
      %p30 = scmp.eq.s32.totalorder %s14, 1
      %p31 = por %p29, %p30
      %p32 = scmp.ne.s32.totalorder %s24, %s27
      %p33 = scmp.eq.s32.totalorder %s14, 0
      %p34 = por %p32, %p33
      %p35 = scmp.ne.s32.totalorder %s24, %s27
      %p36 = scmp.eq.s32.totalorder %s19, 1
      %p37 = por %p35, %p36
      %p38 = scmp.ne.s32.totalorder %s27, %s28
      %p39 = scmp.eq.s32.totalorder %s19, 0
      %p40 = por %p38, %p39
      %p41 = scmp.ne.s32.totalorder %s27, %s28
      %p42 = scmp.eq.s32.totalorder %s20, 1
      %p43 = por %p41, %p42
      %p45 = scmp.ne.s32.totalorder %s28, %s44
      %p46 = scmp.eq.s32.totalorder %s20, 0
      %p47 = por %p45, %p46
      %s49 = sadd.s32 %s48, 1
      %p52 = scmp.eq.s32.totalorder %s14, 1
      %p53 = scmp.ne.s32.totalorder %s48, %s50
      %p54 = scmp.eq.s32.totalorder %s14, 0
      %p55 = por %p53, %p54
      %p56 = scmp.ne.s32.totalorder %s48, %s50
      %p57 = scmp.eq.s32.totalorder %s19, 1
      %p58 = por %p56, %p57
      %p59 = scmp.ne.s32.totalorder %s50, %s51
      %p60 = scmp.eq.s32.totalorder %s19, 0
      %p61 = por %p59, %p60
      %p62 = scmp.ne.s32.totalorder %s50, %s51
      %p63 = scmp.eq.s32.totalorder %s20, 1
      %p64 = por %p62, %p63
      %p66 = scmp.ne.s32.totalorder %s51, %s65
      %p67 = scmp.eq.s32.totalorder %s20, 0
      %p68 = por %p66, %p67
      %s69 = ssub.s32 %s14, %s21
      %p70 = scmp.eq.s32.totalorder %s69, 0
      %s72 = sadd.s32 %s71, 1
      %s73 = scalar_select %p70, %s71, %s72
      %p76 = pneg %p70
      %p77 = scmp.eq.s32.totalorder %s14, 1
      %p78 = por %p76, %p77
      %p79 = scmp.ne.s32.totalorder %s71, %s74
      %p80 = scmp.eq.s32.totalorder %s14, 0
      %p81 = por %p79, %p80
      %p82 = scmp.ne.s32.totalorder %s71, %s74
      %p83 = scmp.eq.s32.totalorder %s19, 1
      %p84 = por %p82, %p83
      %p85 = scmp.ne.s32.totalorder %s74, %s75
      %p86 = scmp.eq.s32.totalorder %s19, 0
      %p87 = por %p85, %p86
      %p88 = scmp.ne.s32.totalorder %s74, %s75
      %p89 = scmp.eq.s32.totalorder %s20, 1
      %p90 = por %p88, %p89
      %p92 = scmp.ne.s32.totalorder %s75, %s91
      %p93 = scmp.eq.s32.totalorder %s20, 0
      %p94 = por %p92, %p93
      %s96 = sadd.s32 %s95, 1
      %p99 = scmp.eq.s32.totalorder %s14, 1
      %p100 = scmp.ne.s32.totalorder %s95, %s97
      %p101 = scmp.eq.s32.totalorder %s14, 0
      %p102 = por %p100, %p101
      %p103 = scmp.ne.s32.totalorder %s95, %s97
      %p104 = scmp.eq.s32.totalorder %s19, 1
      %p105 = por %p103, %p104
      %p106 = scmp.ne.s32.totalorder %s97, %s98
      %p107 = scmp.eq.s32.totalorder %s19, 0
      %p108 = por %p106, %p107
      %p109 = scmp.ne.s32.totalorder %s97, %s98
      %p110 = scmp.eq.s32.totalorder %s20, 1
      %p111 = por %p109, %p110
      %p113 = scmp.ne.s32.totalorder %s98, %s112
      %p114 = scmp.eq.s32.totalorder %s20, 0
      %p115 = por %p113, %p114
      %s116 = ssub.s32 %s14, %s21
      %p117 = scmp.eq.s32.totalorder %s116, 0
      %s119 = sadd.s32 %s118, 1
      %s120 = scalar_select %p117, %s118, %s119
      %p123 = pneg %p117
      %p124 = scmp.eq.s32.totalorder %s14, 1
      %p125 = por %p123, %p124
      %p126 = scmp.ne.s32.totalorder %s118, %s121
      %p127 = scmp.eq.s32.totalorder %s14, 0
      %p128 = por %p126, %p127
      %p129 = scmp.ne.s32.totalorder %s118, %s121
      %p130 = scmp.eq.s32.totalorder %s19, 1
      %p131 = por %p129, %p130
      %p132 = scmp.ne.s32.totalorder %s121, %s122
      %p133 = scmp.eq.s32.totalorder %s19, 0
      %p134 = por %p132, %p133
      %p135 = scmp.ne.s32.totalorder %s121, %s122
      %p136 = scmp.eq.s32.totalorder %s20, 1
      %p137 = por %p135, %p136
      %p139 = scmp.ne.s32.totalorder %s122, %s138
      %p140 = scmp.eq.s32.totalorder %s20, 0
      %p141 = por %p139, %p140
      %p142 = scmp.le.s32.totalorder 1, %s14
      %p143 = scmp.lt.s32.totalorder %s14, 3
      %p144 = pnand %p142, %p143
      %p145 = pneg %p144
      // Predicated region
      $region9: #{sdcn_forward.9} parent=5 // pred_check
        _
      $region10: #{sdcn_forward.9} parent=5 // pred_check_branch
        %147 = sbr.rel (%p144) target = $region12
      $region11: #{sdcn_forward.9} parent=5 // pred_region
        %s148 = ssub.s32 %s14, 1
        // Predicated region
        $region13: #{sdcn_forward.9} parent=11 // pred_check
          %p149 = pneg %p61
        $region14: #{sdcn_forward.9} parent=11 // pred_check_branch
          %151 = sbr.rel (%p149) target = $region16
        $region15: #{sdcn_forward.9} parent=11 // pred_region
          _
        $region16: #{sdcn_forward.9} parent=11 // pred_fallthru
          _
        // Predicated region
        $region17: #{sdcn_forward.9} parent=11 // pred_check
          %p152 = pneg %p108
        $region18: #{sdcn_forward.9} parent=11 // pred_check_branch
          %154 = sbr.rel (%p152) target = $region20
        $region19: #{sdcn_forward.9} parent=11 // pred_region
          %156 = vsyncadd [#allocation5], 0
          %s157 = sshll.u32 %s3, 4
          %s158 = int_to_ptr.hbm [resolvable:$true] %s157
          %s159 = sshll.u32 [#allocation4], 4
          %s160 = int_to_ptr.vmem [resolvable:$true] %s159
          %165 = dma.hbm_to_vmem [thread:$0]  %s158, 2048, %s160, [#allocation5], 128, 128, 8
        $region20: #{sdcn_forward.9} parent=11 // pred_fallthru
          _
      $region12: #{sdcn_forward.9} parent=5 // pred_fallthru
        _
      %p166 = scmp.lt.s32.totalorder %s14, 2
      // Predicated region
      $region21: #{sdcn_forward.9} parent=5 // pred_check
        %p167 = pneg %p166
      $region22: #{sdcn_forward.9} parent=5 // pred_check_branch
        %169 = sbr.rel (%p167) target = $region24
      $region23: #{sdcn_forward.9} parent=5 // pred_region
        // Predicated region
        $region25: #{sdcn_forward.9} parent=23 // pred_check
          %p170 = pneg %p34
        $region26: #{sdcn_forward.9} parent=23 // pred_check_branch
          %172 = sbr.rel (%p170) target = $region28
        $region27: #{sdcn_forward.9} parent=23 // pred_region
          %s173 = sand.u32 %s24, 1
          %s174 = scalar_lea.sflag [#allocation3], %s173
          %s175 = sand.u32 %s24, 1
          %s176 = smul.addr %s175, 128
          %s177 = scalar_lea.vmem [#allocation2], %s176
          %s178 = smul.u32 16, %s14
          %180 = vsyncadd %s174, 0
          %s181 = smul.addr %s178, 2
          %s182 = smul.addr %s181, 4
          %s183 = scalar_lea.hbm %s0, %s182
          %s184 = sshll.u32 %s183, 4
          %s185 = int_to_ptr.hbm [resolvable:$true] %s184
          %s186 = sshll.u32 %s177, 4
          %s187 = int_to_ptr.vmem [resolvable:$true] %s186
          %192 = dma.hbm_to_vmem [thread:$0]  %s185, 2048, %s187, %s174, 128, 128, 8
        $region28: #{sdcn_forward.9} parent=23 // pred_fallthru
          _
        // Predicated region
        $region29: #{sdcn_forward.9} parent=23 // pred_check
          %p193 = pneg %p81
        $region30: #{sdcn_forward.9} parent=23 // pred_check_branch
          %195 = sbr.rel (%p193) target = $region32
        $region31: #{sdcn_forward.9} parent=23 // pred_region
          %s196 = smul.u32 16, %s14
          %p197 = scmp.lt.s32.totalorder %s196, 31
          %s198 = scalar_select %p197, %s196, 31
          %s199 = smul.addr %s198, 4
          %s200 = scalar_lea.vmem %s2, %s199
          %s201 = smul.u32 16, %s14
        $region32: #{sdcn_forward.9} parent=23 // pred_fallthru
          _
      $region24: #{sdcn_forward.9} parent=5 // pred_fallthru
        _
      %p202 = scmp.le.s32.totalorder 1, %s14
      %p203 = scmp.lt.s32.totalorder %s14, 3
      %p204 = pnand %p202, %p203
      %p205 = pneg %p204
      // Predicated region
      $region33: #{sdcn_forward.9} parent=5 // pred_check
        _
      $region34: #{sdcn_forward.9} parent=5 // pred_check_branch
        %207 = sbr.rel (%p204) target = $region36
      $region35: #{sdcn_forward.9} parent=5 // pred_region
        %s208 = ssub.s32 %s14, 1
        %s209 = sand.u32 %s27, 1
        %s210 = scalar_lea.sflag [#allocation3], %s209
        %s211 = sand.u32 %s27, 1
        %s212 = smul.addr %s211, 128
        %s213 = scalar_lea.vmem [#allocation2], %s212
        // Predicated region
        $region37: #{sdcn_forward.9} parent=35 // pred_check
          %p214 = pneg %p40
        $region38: #{sdcn_forward.9} parent=35 // pred_check_branch
          %216 = sbr.rel (%p214) target = $region40
        $region39: #{sdcn_forward.9} parent=35 // pred_region
          %218 = dma.done %s210, 2048
        $region40: #{sdcn_forward.9} parent=35 // pred_fallthru
          _
        // Predicated region
        $region41: #{sdcn_forward.9} parent=35 // pred_check
          %p219 = pneg %p108
        $region42: #{sdcn_forward.9} parent=35 // pred_check_branch
          %221 = sbr.rel (%p219) target = $region44
        $region43: #{sdcn_forward.9} parent=35 // pred_region
          %223 = dma.done [#allocation5], 2048
        $region44: #{sdcn_forward.9} parent=35 // pred_fallthru
          _
        %s224 = sand.u32 %s27, 1
        %s225 = scalar_lea.sflag [#allocation3], %s224
        %s226 = sand.u32 %s27, 1
        %s227 = smul.addr %s226, 128
        %s228 = scalar_lea.vmem [#allocation2], %s227
        %p229 = pneg %p40
        %p230 = pneg %p37
        %p231 = pneg %p61
        %p232 = pneg %p58
        %s233 = smul.u32 16, %s19
        %p234 = scmp.lt.s32.totalorder %s233, 31
        %s235 = scalar_select %p234, %s233, 31
        %s236 = smul.addr %s235, 4
        %s237 = scalar_lea.vmem %s2, %s236
        %p238 = pneg %p87
        %p239 = pneg %p84
        %p240 = pneg %p108
        %p241 = pneg %p105
        %p242 = pneg %p134
        %p243 = pneg %p131
        %s244 = smul.u32 16, %s19
        %p245 = scmp.lt.s32.totalorder %s244, 31
        %s246 = scalar_select %p245, %s244, 31
        %s247 = smul.addr %s246, 4
        %s248 = scalar_lea.vmem %s4, %s247
        %s249 = smul.u32 16, %s19
        %s250 = smul.u32 16, %s19
        %p251 = scmp.lt.s32.totalorder %s250, 31
        %s252 = scalar_select %p251, %s250, 31
        %s253 = smul.addr %s252, 4
        %s254 = scalar_lea.vmem %s2, %s253
        %s255 = smul.u32 16, %s19
        %s256 = smul.u32 16, %s19
        %p257 = scmp.lt.s32.totalorder %s256, 31
        %s258 = scalar_select %p257, %s256, 31
        %s259 = smul.addr %s258, 4
        %s260 = scalar_lea.vmem %s4, %s259
        %s261 = smul.u32 16, %s19
        %v262 = vld [vmem:[%s213] sm:$0xff]
        %v263 = vld [vmem:[%s213 + $0x8] sm:$0xff]
        %v264 = vld [vmem:[%s213 + $0x10] sm:$0xff]
        %v265 = vld [vmem:[%s213 + $0x18] sm:$0xff]
        %v266 = vld [vmem:[%s213 + $0x20] sm:$0xff]
        %v267 = vld [vmem:[%s213 + $0x28] sm:$0xff]
        %v268 = vld [vmem:[%s213 + $0x30] sm:$0xff]
        %v269 = vld [vmem:[%s213 + $0x38] sm:$0xff]
        %v270 = vld [vmem:[%s213 + $0x40] sm:$0xff]
        %v271 = vld [vmem:[%s213 + $0x48] sm:$0xff]
        %v272 = vld [vmem:[%s213 + $0x50] sm:$0xff]
        %v273 = vld [vmem:[%s213 + $0x58] sm:$0xff]
        %v274 = vld [vmem:[%s213 + $0x60] sm:$0xff]
        %v275 = vld [vmem:[%s213 + $0x68] sm:$0xff]
        %v276 = vld [vmem:[%s213 + $0x70] sm:$0xff]
        %v277 = vld [vmem:[%s213 + $0x78] sm:$0xff]
        %v278 = vld [vmem:[%s1] sm:$0xf]
        %v279 = vld [vmem:[%s1 + $0x4] sm:$0xf]
        %v280 = vld [vmem:[%s1 + $0x8] sm:$0xf]
        %v281 = vld [vmem:[%s1 + $0xc] sm:$0xf]
        %v282 = vld [vmem:[%s1 + $0x10] sm:$0xf]
        %v283 = vld [vmem:[%s1 + $0x14] sm:$0xf]
        %v284 = vld [vmem:[%s1 + $0x18] sm:$0xf]
        %v285 = vld [vmem:[%s1 + $0x1c] sm:$0xf]
        %v286 = vld [vmem:[%s1 + $0x20] sm:$0xf]
        %v287 = vld [vmem:[%s1 + $0x24] sm:$0xf]
        %v288 = vld [vmem:[%s1 + $0x28] sm:$0xf]
        %v289 = vld [vmem:[%s1 + $0x2c] sm:$0xf]
        %v290 = vld [vmem:[%s1 + $0x30] sm:$0xf]
        %v291 = vld [vmem:[%s1 + $0x34] sm:$0xf]
        %v292 = vld [vmem:[%s1 + $0x38] sm:$0xf]
        %v293 = vld [vmem:[%s1 + $0x3c] sm:$0xf]
        %v294 = vld [vmem:[%s1 + $0x40] sm:$0xf]
        %v295 = vld [vmem:[%s1 + $0x44] sm:$0xf]
        %v296 = vld [vmem:[%s1 + $0x48] sm:$0xf]
        %v297 = vld [vmem:[%s1 + $0x4c] sm:$0xf]
        %v298 = vld [vmem:[%s1 + $0x50] sm:$0xf]
        %v299 = vld [vmem:[%s1 + $0x54] sm:$0xf]
        %v300 = vld [vmem:[%s1 + $0x58] sm:$0xf]
        %v301 = vld [vmem:[%s1 + $0x5c] sm:$0xf]
        %v302 = vld [vmem:[%s1 + $0x60] sm:$0xf]
        %v303 = vld [vmem:[%s1 + $0x64] sm:$0xf]
        %v304 = vld [vmem:[%s1 + $0x68] sm:$0xf]
        %v305 = vld [vmem:[%s1 + $0x6c] sm:$0xf]
        %v306 = vld [vmem:[%s1 + $0x70] sm:$0xf]
        %v307 = vld [vmem:[%s1 + $0x74] sm:$0xf]
        %v308 = vld [vmem:[%s1 + $0x78] sm:$0xf]
        %v309 = vld [vmem:[%s1 + $0x7c] sm:$0xf]
        %v326 = vunpack.c.l.b16 %v262
        %v327 = vunpack.c.h.b16 %v262
        %v328 = vunpack.c.l.b16 %v263
        %v329 = vunpack.c.h.b16 %v263
        %v330 = vunpack.c.l.b16 %v264
        %v331 = vunpack.c.h.b16 %v264
        %v332 = vunpack.c.l.b16 %v265
        %v333 = vunpack.c.h.b16 %v265
        %v334 = vunpack.c.l.b16 %v266
        %v335 = vunpack.c.h.b16 %v266
        %v336 = vunpack.c.l.b16 %v267
        %v337 = vunpack.c.h.b16 %v267
        %v338 = vunpack.c.l.b16 %v268
        %v339 = vunpack.c.h.b16 %v268
        %v340 = vunpack.c.l.b16 %v269
        %v341 = vunpack.c.h.b16 %v269
        %v342 = vunpack.c.l.b16 %v270
        %v343 = vunpack.c.h.b16 %v270
        %v344 = vunpack.c.l.b16 %v271
        %v345 = vunpack.c.h.b16 %v271
        %v346 = vunpack.c.l.b16 %v272
        %v347 = vunpack.c.h.b16 %v272
        %v348 = vunpack.c.l.b16 %v273
        %v349 = vunpack.c.h.b16 %v273
        %v350 = vunpack.c.l.b16 %v274
        %v351 = vunpack.c.h.b16 %v274
        %v352 = vunpack.c.l.b16 %v275
        %v353 = vunpack.c.h.b16 %v275
        %v354 = vunpack.c.l.b16 %v276
        %v355 = vunpack.c.h.b16 %v276
        %v356 = vunpack.c.l.b16 %v277
        %v357 = vunpack.c.h.b16 %v277
        %v358 = vpack.c.b16 %v328, %v326
        %v359 = vpack.c.b16 %v329, %v327
        %v360 = vpack.c.b16 %v332, %v330
        %v361 = vpack.c.b16 %v333, %v331
        %v362 = vpack.c.b16 %v336, %v334
        %v363 = vpack.c.b16 %v337, %v335
        %v364 = vpack.c.b16 %v340, %v338
        %v365 = vpack.c.b16 %v341, %v339
        %v366 = vpack.c.b16 %v344, %v342
        %v367 = vpack.c.b16 %v345, %v343
        %v368 = vpack.c.b16 %v348, %v346
        %v369 = vpack.c.b16 %v349, %v347
        %v370 = vpack.c.b16 %v352, %v350
        %v371 = vpack.c.b16 %v353, %v351
        %v372 = vpack.c.b16 %v356, %v354
        %v373 = vpack.c.b16 %v357, %v355
        %v422 = vunpack.c.l.b16 %v278
        %v423 = vunpack.c.l.b16 %v279
        %v424 = vunpack.c.l.b16 %v280
        %v425 = vunpack.c.l.b16 %v281
        %v426 = vunpack.c.l.b16 %v282
        %v427 = vunpack.c.l.b16 %v283
        %v428 = vunpack.c.l.b16 %v284
        %v429 = vunpack.c.l.b16 %v285
        %v430 = vunpack.c.l.b16 %v286
        %v431 = vunpack.c.l.b16 %v287
        %v432 = vunpack.c.l.b16 %v288
        %v433 = vunpack.c.l.b16 %v289
        %v434 = vunpack.c.l.b16 %v290
        %v435 = vunpack.c.l.b16 %v291
        %v436 = vunpack.c.l.b16 %v292
        %v437 = vunpack.c.l.b16 %v293
        %v438 = vunpack.c.l.b16 %v294
        %v439 = vunpack.c.l.b16 %v295
        %v440 = vunpack.c.l.b16 %v296
        %v441 = vunpack.c.l.b16 %v297
        %v442 = vunpack.c.l.b16 %v298
        %v443 = vunpack.c.l.b16 %v299
        %v444 = vunpack.c.l.b16 %v300
        %v445 = vunpack.c.l.b16 %v301
        %v446 = vunpack.c.l.b16 %v302
        %v447 = vunpack.c.l.b16 %v303
        %v448 = vunpack.c.l.b16 %v304
        %v449 = vunpack.c.l.b16 %v305
        %v450 = vunpack.c.l.b16 %v306
        %v451 = vunpack.c.l.b16 %v307
        %v452 = vunpack.c.l.b16 %v308
        %v453 = vunpack.c.l.b16 %v309
        %v454 = vpack.c.b16 %v423, %v422
        %v455 = vpack.c.b16 %v425, %v424
        %v456 = vpack.c.b16 %v427, %v426
        %v457 = vpack.c.b16 %v429, %v428
        %v458 = vpack.c.b16 %v431, %v430
        %v459 = vpack.c.b16 %v433, %v432
        %v460 = vpack.c.b16 %v435, %v434
        %v461 = vpack.c.b16 %v437, %v436
        %v462 = vpack.c.b16 %v439, %v438
        %v463 = vpack.c.b16 %v441, %v440
        %v464 = vpack.c.b16 %v443, %v442
        %v465 = vpack.c.b16 %v445, %v444
        %v466 = vpack.c.b16 %v447, %v446
        %v467 = vpack.c.b16 %v449, %v448
        %v468 = vpack.c.b16 %v451, %v450
        %v469 = vpack.c.b16 %v453, %v452
        %486 = vmatpush.bf16.msra.mxu0 %v461
        %487 = vmatpush.bf16.msra.mxu0 %v460
        %488 = vmatpush.bf16.msra.mxu0 %v459
        %489 = vmatpush.bf16.msra.mxu0 %v458
        %490 = vmatpush.bf16.msra.mxu0 %v457
        %491 = vmatpush.bf16.msra.mxu0 %v456
        %492 = vmatpush.bf16.msra.mxu0 %v455
        %493 = vmatpush.bf16.msra.mxu0 %v454
        %494 = vmatmul.bf16.gmra.mxu0 %v358
        %v495 = vpop.f32.mrf.mxu0
        %v496 = vadd.f32 0.0, %v495
        %v497 = vpop.f32.mrf.mxu0
        %v498 = vadd.f32 0.0, %v497
        %499 = vmatmul.bf16.gmra.mxu0 %v360
        %v500 = vpop.f32.mrf.mxu0
        %v501 = vadd.f32 0.0, %v500
        %v502 = vpop.f32.mrf.mxu0
        %v503 = vadd.f32 0.0, %v502
        %504 = vmatmul.bf16.gmra.mxu0 %v362
        %v505 = vpop.f32.mrf.mxu0
        %v506 = vadd.f32 0.0, %v505
        %v507 = vpop.f32.mrf.mxu0
        %v508 = vadd.f32 0.0, %v507
        %509 = vmatmul.bf16.gmra.mxu0 %v364
        %v510 = vpop.f32.mrf.mxu0
        %v511 = vadd.f32 0.0, %v510
        %v512 = vpop.f32.mrf.mxu0
        %v513 = vadd.f32 0.0, %v512
        %514 = vmatmul.bf16.gmra.mxu0 %v366
        %v515 = vpop.f32.mrf.mxu0
        %v516 = vadd.f32 0.0, %v515
        %v517 = vpop.f32.mrf.mxu0
        %v518 = vadd.f32 0.0, %v517
        %519 = vmatmul.bf16.gmra.mxu0 %v368
        %v520 = vpop.f32.mrf.mxu0
        %v521 = vadd.f32 0.0, %v520
        %v522 = vpop.f32.mrf.mxu0
        %v523 = vadd.f32 0.0, %v522
        %524 = vmatmul.bf16.gmra.mxu0 %v370
        %v525 = vpop.f32.mrf.mxu0
        %v526 = vadd.f32 0.0, %v525
        %v527 = vpop.f32.mrf.mxu0
        %v528 = vadd.f32 0.0, %v527
        %529 = vmatmul.bf16.gmra.mxu0 %v372
        %v530 = vpop.f32.mrf.mxu0
        %v531 = vadd.f32 0.0, %v530
        %v532 = vpop.f32.mrf.mxu0
        %v533 = vadd.f32 0.0, %v532
        %534 = vdwg.mxu0
        %535 = vmatpush.bf16.msra.mxu0 %v469
        %536 = vmatpush.bf16.msra.mxu0 %v468
        %537 = vmatpush.bf16.msra.mxu0 %v467
        %538 = vmatpush.bf16.msra.mxu0 %v466
        %539 = vmatpush.bf16.msra.mxu0 %v465
        %540 = vmatpush.bf16.msra.mxu0 %v464
        %541 = vmatpush.bf16.msra.mxu0 %v463
        %542 = vmatpush.bf16.msra.mxu0 %v462
        %543 = vmatmul.bf16.gmra.mxu0 %v359
        %v544 = vpop.f32.mrf.mxu0
        %v545 = vadd.f32 %v496, %v544
        %v546 = vpop.f32.mrf.mxu0
        %v547 = vadd.f32 %v498, %v546
        %548 = vmatmul.bf16.gmra.mxu0 %v361
        %v549 = vpop.f32.mrf.mxu0
        %v550 = vadd.f32 %v501, %v549
        %v551 = vpop.f32.mrf.mxu0
        %v552 = vadd.f32 %v503, %v551
        %553 = vmatmul.bf16.gmra.mxu0 %v363
        %v554 = vpop.f32.mrf.mxu0
        %v555 = vadd.f32 %v506, %v554
        %v556 = vpop.f32.mrf.mxu0
        %v557 = vadd.f32 %v508, %v556
        %558 = vmatmul.bf16.gmra.mxu0 %v365
        %v559 = vpop.f32.mrf.mxu0
        %v560 = vadd.f32 %v511, %v559
        %v561 = vpop.f32.mrf.mxu0
        %v562 = vadd.f32 %v513, %v561
        %563 = vmatmul.bf16.gmra.mxu0 %v367
        %v564 = vpop.f32.mrf.mxu0
        %v565 = vadd.f32 %v516, %v564
        %v566 = vpop.f32.mrf.mxu0
        %v567 = vadd.f32 %v518, %v566
        %568 = vmatmul.bf16.gmra.mxu0 %v369
        %v569 = vpop.f32.mrf.mxu0
        %v570 = vadd.f32 %v521, %v569
        %v571 = vpop.f32.mrf.mxu0
        %v572 = vadd.f32 %v523, %v571
        %573 = vmatmul.bf16.gmra.mxu0 %v371
        %v574 = vpop.f32.mrf.mxu0
        %v575 = vadd.f32 %v526, %v574
        %v576 = vpop.f32.mrf.mxu0
        %v577 = vadd.f32 %v528, %v576
        %578 = vmatmul.bf16.gmra.mxu0 %v373
        %v579 = vpop.f32.mrf.mxu0
        %v580 = vadd.f32 %v531, %v579
        %v581 = vpop.f32.mrf.mxu0
        %v582 = vadd.f32 %v533, %v581
        %583 = vdwg.mxu0
        %v584 = vmax.f32 %v545, 0.0
        %v585 = vmax.f32 %v547, 0.0
        %v586 = vmax.f32 %v550, 0.0
        %v587 = vmax.f32 %v552, 0.0
        %v588 = vmax.f32 %v555, 0.0
        %v589 = vmax.f32 %v557, 0.0
        %v590 = vmax.f32 %v560, 0.0
        %v591 = vmax.f32 %v562, 0.0
        %v592 = vmax.f32 %v565, 0.0
        %v593 = vmax.f32 %v567, 0.0
        %v594 = vmax.f32 %v570, 0.0
        %v595 = vmax.f32 %v572, 0.0
        %v596 = vmax.f32 %v575, 0.0
        %v597 = vmax.f32 %v577, 0.0
        %v598 = vmax.f32 %v580, 0.0
        %v599 = vmax.f32 %v582, 0.0
        %v600 = vld [vmem:[%s254] sm:$0xf]
        %v601 = vld [vmem:[%s254 + $0x4] sm:$0xf]
        %v602 = vld [vmem:[%s254 + $0x8] sm:$0xf]
        %v603 = vld [vmem:[%s254 + $0xc] sm:$0xf]
        %v604 = vld [vmem:[%s254 + $0x10] sm:$0xf]
        %v605 = vld [vmem:[%s254 + $0x14] sm:$0xf]
        %v606 = vld [vmem:[%s254 + $0x18] sm:$0xf]
        %v607 = vld [vmem:[%s254 + $0x1c] sm:$0xf]
        %v608 = vld [vmem:[%s254 + $0x20] sm:$0xf]
        %v609 = vld [vmem:[%s254 + $0x24] sm:$0xf]
        %v610 = vld [vmem:[%s254 + $0x28] sm:$0xf]
        %v611 = vld [vmem:[%s254 + $0x2c] sm:$0xf]
        %v612 = vld [vmem:[%s254 + $0x30] sm:$0xf]
        %v613 = vld [vmem:[%s254 + $0x34] sm:$0xf]
        %v614 = vld [vmem:[%s254 + $0x38] sm:$0xf]
        %v615 = vld [vmem:[%s254 + $0x3c] sm:$0xf]
        %v616 = vunpack.c.l.bf16 %v600
        %v617 = vunpack.c.l.bf16 %v601
        %v618 = vunpack.c.l.bf16 %v602
        %v619 = vunpack.c.l.bf16 %v603
        %v620 = vunpack.c.l.bf16 %v604
        %v621 = vunpack.c.l.bf16 %v605
        %v622 = vunpack.c.l.bf16 %v606
        %v623 = vunpack.c.l.bf16 %v607
        %v624 = vunpack.c.l.bf16 %v608
        %v625 = vunpack.c.l.bf16 %v609
        %v626 = vunpack.c.l.bf16 %v610
        %v627 = vunpack.c.l.bf16 %v611
        %v628 = vunpack.c.l.bf16 %v612
        %v629 = vunpack.c.l.bf16 %v613
        %v630 = vunpack.c.l.bf16 %v614
        %v631 = vunpack.c.l.bf16 %v615
        %v632 = vadd.f32 %v584, %v616
        %v633 = vadd.f32 %v585, %v617
        %v634 = vadd.f32 %v586, %v618
        %v635 = vadd.f32 %v587, %v619
        %v636 = vadd.f32 %v588, %v620
        %v637 = vadd.f32 %v589, %v621
        %v638 = vadd.f32 %v590, %v622
        %v639 = vadd.f32 %v591, %v623
        %v640 = vadd.f32 %v592, %v624
        %v641 = vadd.f32 %v593, %v625
        %v642 = vadd.f32 %v594, %v626
        %v643 = vadd.f32 %v595, %v627
        %v644 = vadd.f32 %v596, %v628
        %v645 = vadd.f32 %v597, %v629
        %v646 = vadd.f32 %v598, %v630
        %v647 = vadd.f32 %v599, %v631
        %v648 = vmul.f32 %v632, 0.5
        %v649 = vmul.f32 %v633, 0.5
        %v650 = vmul.f32 %v634, 0.5
        %v651 = vmul.f32 %v635, 0.5
        %v652 = vmul.f32 %v636, 0.5
        %v653 = vmul.f32 %v637, 0.5
        %v654 = vmul.f32 %v638, 0.5
        %v655 = vmul.f32 %v639, 0.5
        %v656 = vmul.f32 %v640, 0.5
        %v657 = vmul.f32 %v641, 0.5
        %v658 = vmul.f32 %v642, 0.5
        %v659 = vmul.f32 %v643, 0.5
        %v660 = vmul.f32 %v644, 0.5
        %v661 = vmul.f32 %v645, 0.5
        %v662 = vmul.f32 %v646, 0.5
        %v663 = vmul.f32 %v647, 0.5
        %v664 = vld [vmem:[#allocation4] sm:$0xff]
        %v665 = vld [vmem:[#allocation4 + $0x8] sm:$0xff]
        %v666 = vld [vmem:[#allocation4 + $0x10] sm:$0xff]
        %v667 = vld [vmem:[#allocation4 + $0x18] sm:$0xff]
        %v668 = vld [vmem:[#allocation4 + $0x20] sm:$0xff]
        %v669 = vld [vmem:[#allocation4 + $0x28] sm:$0xff]
        %v670 = vld [vmem:[#allocation4 + $0x30] sm:$0xff]
        %v671 = vld [vmem:[#allocation4 + $0x38] sm:$0xff]
        %v672 = vld [vmem:[#allocation4 + $0x40] sm:$0xff]
        %v673 = vld [vmem:[#allocation4 + $0x48] sm:$0xff]
        %v674 = vld [vmem:[#allocation4 + $0x50] sm:$0xff]
        %v675 = vld [vmem:[#allocation4 + $0x58] sm:$0xff]
        %v676 = vld [vmem:[#allocation4 + $0x60] sm:$0xff]
        %v677 = vld [vmem:[#allocation4 + $0x68] sm:$0xff]
        %v678 = vld [vmem:[#allocation4 + $0x70] sm:$0xff]
        %v679 = vld [vmem:[#allocation4 + $0x78] sm:$0xff]
        %680 = vmatpush.msra.mxu0 %v679
        %681 = vmatpush.msra.mxu0 %v678
        %682 = vmatpush.msra.mxu0 %v677
        %683 = vmatpush.msra.mxu0 %v676
        %684 = vmatpush.msra.mxu0 %v675
        %685 = vmatpush.msra.mxu0 %v674
        %686 = vmatpush.msra.mxu0 %v673
        %687 = vmatpush.msra.mxu0 %v672
        %688 = vmatpush.msra.mxu0 %v671
        %689 = vmatpush.msra.mxu0 %v670
        %690 = vmatpush.msra.mxu0 %v669
        %691 = vmatpush.msra.mxu0 %v668
        %692 = vmatpush.msra.mxu0 %v667
        %693 = vmatpush.msra.mxu0 %v666
        %694 = vmatpush.msra.mxu0 %v665
        %695 = vmatpush.msra.mxu0 %v664
        %696 = vmatmul.f32.gmra.mxu0 %v648
        %v697 = vpop.f32.mrf.mxu0
        %v698 = vadd.f32 0.0, %v697
        %699 = vmatmul.f32.gmra.mxu0 %v649
        %v700 = vpop.f32.mrf.mxu0
        %v701 = vadd.f32 0.0, %v700
        %702 = vmatmul.f32.gmra.mxu0 %v650
        %v703 = vpop.f32.mrf.mxu0
        %v704 = vadd.f32 0.0, %v703
        %705 = vmatmul.f32.gmra.mxu0 %v651
        %v706 = vpop.f32.mrf.mxu0
        %v707 = vadd.f32 0.0, %v706
        %708 = vmatmul.f32.gmra.mxu0 %v652
        %v709 = vpop.f32.mrf.mxu0
        %v710 = vadd.f32 0.0, %v709
        %711 = vmatmul.f32.gmra.mxu0 %v653
        %v712 = vpop.f32.mrf.mxu0
        %v713 = vadd.f32 0.0, %v712
        %714 = vmatmul.f32.gmra.mxu0 %v654
        %v715 = vpop.f32.mrf.mxu0
        %v716 = vadd.f32 0.0, %v715
        %717 = vmatmul.f32.gmra.mxu0 %v655
        %v718 = vpop.f32.mrf.mxu0
        %v719 = vadd.f32 0.0, %v718
        %720 = vmatmul.f32.gmra.mxu0 %v656
        %v721 = vpop.f32.mrf.mxu0
        %v722 = vadd.f32 0.0, %v721
        %723 = vmatmul.f32.gmra.mxu0 %v657
        %v724 = vpop.f32.mrf.mxu0
        %v725 = vadd.f32 0.0, %v724
        %726 = vmatmul.f32.gmra.mxu0 %v658
        %v727 = vpop.f32.mrf.mxu0
        %v728 = vadd.f32 0.0, %v727
        %729 = vmatmul.f32.gmra.mxu0 %v659
        %v730 = vpop.f32.mrf.mxu0
        %v731 = vadd.f32 0.0, %v730
        %732 = vmatmul.f32.gmra.mxu0 %v660
        %v733 = vpop.f32.mrf.mxu0
        %v734 = vadd.f32 0.0, %v733
        %735 = vmatmul.f32.gmra.mxu0 %v661
        %v736 = vpop.f32.mrf.mxu0
        %v737 = vadd.f32 0.0, %v736
        %738 = vmatmul.f32.gmra.mxu0 %v662
        %v739 = vpop.f32.mrf.mxu0
        %v740 = vadd.f32 0.0, %v739
        %741 = vmatmul.f32.gmra.mxu0 %v663
        %v742 = vpop.f32.mrf.mxu0
        %v743 = vadd.f32 0.0, %v742
        %744 = vdwg.mxu0
        %v745 = vpack.c.bf16 %v698, %v698
        %v746 = vpack.c.bf16 %v701, %v701
        %v747 = vpack.c.bf16 %v704, %v704
        %v748 = vpack.c.bf16 %v707, %v707
        %v749 = vpack.c.bf16 %v710, %v710
        %v750 = vpack.c.bf16 %v713, %v713
        %v751 = vpack.c.bf16 %v716, %v716
        %v752 = vpack.c.bf16 %v719, %v719
        %v753 = vpack.c.bf16 %v722, %v722
        %v754 = vpack.c.bf16 %v725, %v725
        %v755 = vpack.c.bf16 %v728, %v728
        %v756 = vpack.c.bf16 %v731, %v731
        %v757 = vpack.c.bf16 %v734, %v734
        %v758 = vpack.c.bf16 %v737, %v737
        %v759 = vpack.c.bf16 %v740, %v740
        %v760 = vpack.c.bf16 %v743, %v743
        %761 = vst [vmem:[%s260] sm:$0xf] %v745
        %762 = vst [vmem:[%s260 + $0x4] sm:$0xf] %v746
        %763 = vst [vmem:[%s260 + $0x8] sm:$0xf] %v747
        %764 = vst [vmem:[%s260 + $0xc] sm:$0xf] %v748
        %765 = vst [vmem:[%s260 + $0x10] sm:$0xf] %v749
        %766 = vst [vmem:[%s260 + $0x14] sm:$0xf] %v750
        %767 = vst [vmem:[%s260 + $0x18] sm:$0xf] %v751
        %768 = vst [vmem:[%s260 + $0x1c] sm:$0xf] %v752
        %769 = vst [vmem:[%s260 + $0x20] sm:$0xf] %v753
        %770 = vst [vmem:[%s260 + $0x24] sm:$0xf] %v754
        %771 = vst [vmem:[%s260 + $0x28] sm:$0xf] %v755
        %772 = vst [vmem:[%s260 + $0x2c] sm:$0xf] %v756
        %773 = vst [vmem:[%s260 + $0x30] sm:$0xf] %v757
        %774 = vst [vmem:[%s260 + $0x34] sm:$0xf] %v758
        %775 = vst [vmem:[%s260 + $0x38] sm:$0xf] %v759
        %776 = vst [vmem:[%s260 + $0x3c] sm:$0xf] %v760
        %s777 = smul.u32 16, %s19
        %p778 = scmp.lt.s32.totalorder %s777, 31
        %s779 = scalar_select %p778, %s777, 31
        %s780 = smul.addr %s779, 4
        %s781 = scalar_lea.vmem %s4, %s780
        // Predicated region
        $region45: #{sdcn_forward.9} parent=35 // pred_check
          %p782 = pneg %p131
        $region46: #{sdcn_forward.9} parent=35 // pred_check_branch
          %784 = sbr.rel (%p782) target = $region48
        $region47: #{sdcn_forward.9} parent=35 // pred_region
          %s785 = smul.u32 16, %s19
        $region48: #{sdcn_forward.9} parent=35 // pred_fallthru
          _
      $region36: #{sdcn_forward.9} parent=5 // pred_fallthru
        _
      %p786 = scmp.le.s32.totalorder 2, %s14
      // Predicated region
      $region49: #{sdcn_forward.9} parent=5 // pred_check
        %p787 = pneg %p786
      $region50: #{sdcn_forward.9} parent=5 // pred_check_branch
        %789 = sbr.rel (%p787) target = $region52
      $region51: #{sdcn_forward.9} parent=5 // pred_region
        %s790 = ssub.s32 %s14, 2
        // Predicated region
        $region53: #{sdcn_forward.9} parent=51 // pred_check
          %p791 = pneg %p137
        $region54: #{sdcn_forward.9} parent=51 // pred_check_branch
          %793 = sbr.rel (%p791) target = $region56
        $region55: #{sdcn_forward.9} parent=51 // pred_region
          %s794 = smul.u32 16, %s20
          %p795 = scmp.lt.s32.totalorder %s794, 31
          %s796 = scalar_select %p795, %s794, 31
          %s797 = smul.addr %s796, 4
          %s798 = scalar_lea.vmem %s4, %s797
        $region56: #{sdcn_forward.9} parent=51 // pred_fallthru
          _
      $region52: #{sdcn_forward.9} parent=5 // pred_fallthru
        _
    $region6: #{sdcn_forward.9} parent=1 // loop_footer
      %s18 = sadd.s32 1, %s14
    $region7: #{sdcn_forward.9} parent=1 // loop_footer_branch
      %13 = sbr.rel target = $region3
    $region8: #{sdcn_forward.9} parent=1 // loop_exit
      _
    %799 = vsyncpa [#allocation3], 1
    %s800 = scalar_lea.sflag [#allocation3], 1
    %801 = vsyncpa %s800, 1
    %802 = vsyncpa [#allocation5], 1

// kernel: sdcn_forward.7
$region0: #{sdcn_forward.7}
  #allocation0 [shape = 'u32[]', space=smem, size = 0x4, offset = 0x4, fixed_abs, tag = 'smem constant byte address 0x4 - core index']
  #allocation1 [shape = 'u32[72,128]{1,0:T(1,128)}', space=vmem, size = 0x9000, scoped, tag = 'internal scratch']
  %s0 = inlined_call_operand.hbm [shape: f32[256,128], index: 0, kind: input, shape index: {}]
  %s1 = inlined_call_operand.hbm [shape: f32[128,128], index: 1, kind: input, shape index: {}]
  %s2 = inlined_call_operand.vmem [shape: f32[1,128], index: 2, kind: input, shape index: {}]
  %s3 = inlined_call_operand.hbm [shape: f32[128,128], index: 3, kind: input, shape index: {}]
  %s4 = inlined_call_operand.vmem [shape: f32[1,128], index: 4, kind: input, shape index: {}]
  %s5 = inlined_call_operand.hbm [shape: f32[128,128], index: 5, kind: input, shape index: {}]
  %s6 = inlined_call_operand.vmem [shape: f32[1,128], index: 6, kind: input, shape index: {}]
  %s7 = inlined_call_operand.hbm [shape: f32[128,128], index: 7, kind: input, shape index: {}]
  %s8 = inlined_call_operand.vmem [shape: f32[1,128], index: 8, kind: input, shape index: {}]
  %s9 = inlined_call_operand.hbm [shape: f32[128,128], index: 9, kind: input, shape index: {}]
  %s10 = inlined_call_operand.vmem [shape: bf16[256,128], index: 10, kind: output, shape index: {0}]
  %s11 = inlined_call_operand.vmem [shape: bf16[256,128], index: 11, kind: output, shape index: {1}]
  %s12 = inlined_call_operand.vmem [shape: bf16[256,128], index: 12, kind: output, shape index: {2}]
  %s13 = inlined_call_operand.vmem [shape: f32[256,128], index: 13, kind: output, shape index: {3}]
  %s14 = inlined_call_operand.vmem [shape: bf16[256,128], index: 14, kind: output, shape index: {4}]
  %15 = xla_tuple %s10, %s11, %s12, %s13, %s14
  %s16 = sld [smem:[#allocation0]]
  $region129: #{sdcn_forward.7} parent=0
    _
  %s18 = ssub.s32 1, %s16
  %s19 = scalar_select 0, %s18, %s16
  $region1: #{sdcn_forward.7} parent=0
    #allocation2 [shape = 'u8[131072]{0}', space=vmem, size = 0x20000, scoped, tag = 'input window, operand 0']
    #allocation3 [shape = 's32[2]{0}', space=sflag, size = 0x8, scoped, tag = 'scoped memory for sdcn_forward.7']
    #allocation4 [shape = 'u8[65536]{0}', space=vmem, size = 0x10000, scoped, tag = 'input window, operand 1, single buffered']
    #allocation5 [shape = 's32[1]{0}', space=sflag, size = 0x4, scoped, tag = 'scoped memory for sdcn_forward.7']
    #allocation6 [shape = 'u8[65536]{0}', space=vmem, size = 0x10000, scoped, tag = 'input window, operand 3, single buffered']
    #allocation7 [shape = 'u8[65536]{0}', space=vmem, size = 0x10000, scoped, tag = 'input window, operand 5, single buffered']
    #allocation8 [shape = 's32[1]{0}', space=sflag, size = 0x4, scoped, tag = 'scoped memory for sdcn_forward.7']
    #allocation9 [shape = 'u8[65536]{0}', space=vmem, size = 0x10000, scoped, tag = 'input window, operand 7, single buffered']
    #allocation10 [shape = 'u8[65536]{0}', space=vmem, size = 0x10000, scoped, tag = 'input window, operand 9, single buffered']
    #allocation11 [shape = 's32[1]{0}', space=sflag, size = 0x4, scoped, tag = 'scoped memory for sdcn_forward.7']
    %20 = vsyncpa [#allocation3], 0
    %s21 = scalar_lea.sflag [#allocation3], 1
    %22 = vsyncpa %s21, 0
    %23 = vsyncpa [#allocation5], 0
    %24 = vsyncpa [#allocation8], 0
    %25 = vsyncpa [#allocation11], 0
    loop: start=0, step=1, limit=4
    $region2: #{sdcn_forward.7} parent=1 // loop_pre_header
      _
    $region3: #{sdcn_forward.7} parent=1 // loop_header
      %s27 = sphi 0, %s31
      %p28 = scmp.ge.s32.totalorder %s27, 4
      %s37 = sphi 0, %s39
      %s40 = sphi 0, %s37
      %s41 = sphi 0, %s40
      %s57 = sphi 0, %s41
      %s61 = sphi 0, %s61
      %s63 = sphi 0, %s61
      %s64 = sphi 0, %s63
      %s78 = sphi 0, %s64
      %s82 = sphi 0, %s82
      %s84 = sphi 0, %s82
      %s85 = sphi 0, %s84
      %s99 = sphi 0, %s85
      %s103 = sphi 0, %s103
      %s105 = sphi 0, %s103
      %s106 = sphi 0, %s105
      %s120 = sphi 0, %s106
      %s124 = sphi 0, %s124
      %s126 = sphi 0, %s124
      %s127 = sphi 0, %s126
      %s141 = sphi 0, %s127
      %s145 = sphi 0, %s145
      %s147 = sphi 0, %s145
      %s148 = sphi 0, %s147
      %s162 = sphi 0, %s148
      %s166 = sphi 0, %s166
      %s168 = sphi 0, %s166
      %s169 = sphi 0, %s168
      %s183 = sphi 0, %s169
      %s187 = sphi 0, %s187
      %s189 = sphi 0, %s187
      %s190 = sphi 0, %s189
      %s204 = sphi 0, %s190
      %s208 = sphi 0, %s208
      %s210 = sphi 0, %s208
      %s211 = sphi 0, %s210
      %s225 = sphi 0, %s211
      %s229 = sphi 0, %s229
      %s231 = sphi 0, %s229
      %s232 = sphi 0, %s231
      %s246 = sphi 0, %s232
      %s252 = sphi 0, %s254
      %s255 = sphi 0, %s252
      %s256 = sphi 0, %s255
      %s272 = sphi 0, %s256
      %s278 = sphi 0, %s280
      %s281 = sphi 0, %s278
      %s282 = sphi 0, %s281
      %s298 = sphi 0, %s282
      %s304 = sphi 0, %s306
      %s307 = sphi 0, %s304
      %s308 = sphi 0, %s307
      %s324 = sphi 0, %s308
      %s330 = sphi 0, %s332
      %s333 = sphi 0, %s330
      %s334 = sphi 0, %s333
      %s350 = sphi 0, %s334
      %s356 = sphi 0, %s358
      %s359 = sphi 0, %s356
      %s360 = sphi 0, %s359
      %s376 = sphi 0, %s360
    $region4: #{sdcn_forward.7} parent=1 // loop_header_branch
      %30 = sbr.rel (%p28) target = $region8
    $region5: #{sdcn_forward.7} parent=1 // loop_body
      %s32 = ssub.s32 %s27, 1
      %s33 = ssub.s32 %s27, 2
      %s34 = sadd.s32 %s27, 1
      %s35 = ssub.s32 %s27, %s34
      %p36 = scmp.eq.s32.totalorder %s35, 0
      %s38 = sadd.s32 %s37, 1
      %s39 = scalar_select %p36, %s37, %s38
      %p42 = pneg %p36
      %p43 = scmp.eq.s32.totalorder %s27, 1
      %p44 = por %p42, %p43
      %p45 = scmp.ne.s32.totalorder %s37, %s40
      %p46 = scmp.eq.s32.totalorder %s27, 0
      %p47 = por %p45, %p46
      %p48 = scmp.ne.s32.totalorder %s37, %s40
      %p49 = scmp.eq.s32.totalorder %s32, 1
      %p50 = por %p48, %p49
      %p51 = scmp.ne.s32.totalorder %s40, %s41
      %p52 = scmp.eq.s32.totalorder %s32, 0
      %p53 = por %p51, %p52
      %p54 = scmp.ne.s32.totalorder %s40, %s41
      %p55 = scmp.eq.s32.totalorder %s33, 1
      %p56 = por %p54, %p55
      %p58 = scmp.ne.s32.totalorder %s41, %s57
      %p59 = scmp.eq.s32.totalorder %s33, 0
      %p60 = por %p58, %p59
      %s62 = sadd.s32 %s61, 1
      %p65 = scmp.eq.s32.totalorder %s27, 1
      %p66 = scmp.ne.s32.totalorder %s61, %s63
      %p67 = scmp.eq.s32.totalorder %s27, 0
      %p68 = por %p66, %p67
      %p69 = scmp.ne.s32.totalorder %s61, %s63
      %p70 = scmp.eq.s32.totalorder %s32, 1
      %p71 = por %p69, %p70
      %p72 = scmp.ne.s32.totalorder %s63, %s64
      %p73 = scmp.eq.s32.totalorder %s32, 0
      %p74 = por %p72, %p73
      %p75 = scmp.ne.s32.totalorder %s63, %s64
      %p76 = scmp.eq.s32.totalorder %s33, 1
      %p77 = por %p75, %p76
      %p79 = scmp.ne.s32.totalorder %s64, %s78
      %p80 = scmp.eq.s32.totalorder %s33, 0
      %p81 = por %p79, %p80
      %s83 = sadd.s32 %s82, 1
      %p86 = scmp.eq.s32.totalorder %s27, 1
      %p87 = scmp.ne.s32.totalorder %s82, %s84
      %p88 = scmp.eq.s32.totalorder %s27, 0
      %p89 = por %p87, %p88
      %p90 = scmp.ne.s32.totalorder %s82, %s84
      %p91 = scmp.eq.s32.totalorder %s32, 1
      %p92 = por %p90, %p91
      %p93 = scmp.ne.s32.totalorder %s84, %s85
      %p94 = scmp.eq.s32.totalorder %s32, 0
      %p95 = por %p93, %p94
      %p96 = scmp.ne.s32.totalorder %s84, %s85
      %p97 = scmp.eq.s32.totalorder %s33, 1
      %p98 = por %p96, %p97
      %p100 = scmp.ne.s32.totalorder %s85, %s99
      %p101 = scmp.eq.s32.totalorder %s33, 0
      %p102 = por %p100, %p101
      %s104 = sadd.s32 %s103, 1
      %p107 = scmp.eq.s32.totalorder %s27, 1
      %p108 = scmp.ne.s32.totalorder %s103, %s105
      %p109 = scmp.eq.s32.totalorder %s27, 0
      %p110 = por %p108, %p109
      %p111 = scmp.ne.s32.totalorder %s103, %s105
      %p112 = scmp.eq.s32.totalorder %s32, 1
      %p113 = por %p111, %p112
      %p114 = scmp.ne.s32.totalorder %s105, %s106
      %p115 = scmp.eq.s32.totalorder %s32, 0
      %p116 = por %p114, %p115
      %p117 = scmp.ne.s32.totalorder %s105, %s106
      %p118 = scmp.eq.s32.totalorder %s33, 1
      %p119 = por %p117, %p118
      %p121 = scmp.ne.s32.totalorder %s106, %s120
      %p122 = scmp.eq.s32.totalorder %s33, 0
      %p123 = por %p121, %p122
      %s125 = sadd.s32 %s124, 1
      %p128 = scmp.eq.s32.totalorder %s27, 1
      %p129 = scmp.ne.s32.totalorder %s124, %s126
      %p130 = scmp.eq.s32.totalorder %s27, 0
      %p131 = por %p129, %p130
      %p132 = scmp.ne.s32.totalorder %s124, %s126
      %p133 = scmp.eq.s32.totalorder %s32, 1
      %p134 = por %p132, %p133
      %p135 = scmp.ne.s32.totalorder %s126, %s127
      %p136 = scmp.eq.s32.totalorder %s32, 0
      %p137 = por %p135, %p136
      %p138 = scmp.ne.s32.totalorder %s126, %s127
      %p139 = scmp.eq.s32.totalorder %s33, 1
      %p140 = por %p138, %p139
      %p142 = scmp.ne.s32.totalorder %s127, %s141
      %p143 = scmp.eq.s32.totalorder %s33, 0
      %p144 = por %p142, %p143
      %s146 = sadd.s32 %s145, 1
      %p149 = scmp.eq.s32.totalorder %s27, 1
      %p150 = scmp.ne.s32.totalorder %s145, %s147
      %p151 = scmp.eq.s32.totalorder %s27, 0
      %p152 = por %p150, %p151
      %p153 = scmp.ne.s32.totalorder %s145, %s147
      %p154 = scmp.eq.s32.totalorder %s32, 1
      %p155 = por %p153, %p154
      %p156 = scmp.ne.s32.totalorder %s147, %s148
      %p157 = scmp.eq.s32.totalorder %s32, 0
      %p158 = por %p156, %p157
      %p159 = scmp.ne.s32.totalorder %s147, %s148
      %p160 = scmp.eq.s32.totalorder %s33, 1
      %p161 = por %p159, %p160
      %p163 = scmp.ne.s32.totalorder %s148, %s162
      %p164 = scmp.eq.s32.totalorder %s33, 0
      %p165 = por %p163, %p164
      %s167 = sadd.s32 %s166, 1
      %p170 = scmp.eq.s32.totalorder %s27, 1
      %p171 = scmp.ne.s32.totalorder %s166, %s168
      %p172 = scmp.eq.s32.totalorder %s27, 0
      %p173 = por %p171, %p172
      %p174 = scmp.ne.s32.totalorder %s166, %s168
      %p175 = scmp.eq.s32.totalorder %s32, 1
      %p176 = por %p174, %p175
      %p177 = scmp.ne.s32.totalorder %s168, %s169
      %p178 = scmp.eq.s32.totalorder %s32, 0
      %p179 = por %p177, %p178
      %p180 = scmp.ne.s32.totalorder %s168, %s169
      %p181 = scmp.eq.s32.totalorder %s33, 1
      %p182 = por %p180, %p181
      %p184 = scmp.ne.s32.totalorder %s169, %s183
      %p185 = scmp.eq.s32.totalorder %s33, 0
      %p186 = por %p184, %p185
      %s188 = sadd.s32 %s187, 1
      %p191 = scmp.eq.s32.totalorder %s27, 1
      %p192 = scmp.ne.s32.totalorder %s187, %s189
      %p193 = scmp.eq.s32.totalorder %s27, 0
      %p194 = por %p192, %p193
      %p195 = scmp.ne.s32.totalorder %s187, %s189
      %p196 = scmp.eq.s32.totalorder %s32, 1
      %p197 = por %p195, %p196
      %p198 = scmp.ne.s32.totalorder %s189, %s190
      %p199 = scmp.eq.s32.totalorder %s32, 0
      %p200 = por %p198, %p199
      %p201 = scmp.ne.s32.totalorder %s189, %s190
      %p202 = scmp.eq.s32.totalorder %s33, 1
      %p203 = por %p201, %p202
      %p205 = scmp.ne.s32.totalorder %s190, %s204
      %p206 = scmp.eq.s32.totalorder %s33, 0
      %p207 = por %p205, %p206
      %s209 = sadd.s32 %s208, 1
      %p212 = scmp.eq.s32.totalorder %s27, 1
      %p213 = scmp.ne.s32.totalorder %s208, %s210
      %p214 = scmp.eq.s32.totalorder %s27, 0
      %p215 = por %p213, %p214
      %p216 = scmp.ne.s32.totalorder %s208, %s210
      %p217 = scmp.eq.s32.totalorder %s32, 1
      %p218 = por %p216, %p217
      %p219 = scmp.ne.s32.totalorder %s210, %s211
      %p220 = scmp.eq.s32.totalorder %s32, 0
      %p221 = por %p219, %p220
      %p222 = scmp.ne.s32.totalorder %s210, %s211
      %p223 = scmp.eq.s32.totalorder %s33, 1
      %p224 = por %p222, %p223
      %p226 = scmp.ne.s32.totalorder %s211, %s225
      %p227 = scmp.eq.s32.totalorder %s33, 0
      %p228 = por %p226, %p227
      %s230 = sadd.s32 %s229, 1
      %p233 = scmp.eq.s32.totalorder %s27, 1
      %p234 = scmp.ne.s32.totalorder %s229, %s231
      %p235 = scmp.eq.s32.totalorder %s27, 0
      %p236 = por %p234, %p235
      %p237 = scmp.ne.s32.totalorder %s229, %s231
      %p238 = scmp.eq.s32.totalorder %s32, 1
      %p239 = por %p237, %p238
      %p240 = scmp.ne.s32.totalorder %s231, %s232
      %p241 = scmp.eq.s32.totalorder %s32, 0
      %p242 = por %p240, %p241
      %p243 = scmp.ne.s32.totalorder %s231, %s232
      %p244 = scmp.eq.s32.totalorder %s33, 1
      %p245 = por %p243, %p244
      %p247 = scmp.ne.s32.totalorder %s232, %s246
      %p248 = scmp.eq.s32.totalorder %s33, 0
      %p249 = por %p247, %p248
      %s250 = ssub.s32 %s27, %s34
      %p251 = scmp.eq.s32.totalorder %s250, 0
      %s253 = sadd.s32 %s252, 1
      %s254 = scalar_select %p251, %s252, %s253
      %p257 = pneg %p251
      %p258 = scmp.eq.s32.totalorder %s27, 1
      %p259 = por %p257, %p258
      %p260 = scmp.ne.s32.totalorder %s252, %s255
      %p261 = scmp.eq.s32.totalorder %s27, 0
      %p262 = por %p260, %p261
      %p263 = scmp.ne.s32.totalorder %s252, %s255
      %p264 = scmp.eq.s32.totalorder %s32, 1
      %p265 = por %p263, %p264
      %p266 = scmp.ne.s32.totalorder %s255, %s256
      %p267 = scmp.eq.s32.totalorder %s32, 0
      %p268 = por %p266, %p267
      %p269 = scmp.ne.s32.totalorder %s255, %s256
      %p270 = scmp.eq.s32.totalorder %s33, 1
      %p271 = por %p269, %p270
      %p273 = scmp.ne.s32.totalorder %s256, %s272
      %p274 = scmp.eq.s32.totalorder %s33, 0
      %p275 = por %p273, %p274
      %s276 = ssub.s32 %s27, %s34
      %p277 = scmp.eq.s32.totalorder %s276, 0
      %s279 = sadd.s32 %s278, 1
      %s280 = scalar_select %p277, %s278, %s279
      %p283 = pneg %p277
      %p284 = scmp.eq.s32.totalorder %s27, 1
      %p285 = por %p283, %p284
      %p286 = scmp.ne.s32.totalorder %s278, %s281
      %p287 = scmp.eq.s32.totalorder %s27, 0
      %p288 = por %p286, %p287
      %p289 = scmp.ne.s32.totalorder %s278, %s281
      %p290 = scmp.eq.s32.totalorder %s32, 1
      %p291 = por %p289, %p290
      %p292 = scmp.ne.s32.totalorder %s281, %s282
      %p293 = scmp.eq.s32.totalorder %s32, 0
      %p294 = por %p292, %p293
      %p295 = scmp.ne.s32.totalorder %s281, %s282
      %p296 = scmp.eq.s32.totalorder %s33, 1
      %p297 = por %p295, %p296
      %p299 = scmp.ne.s32.totalorder %s282, %s298
      %p300 = scmp.eq.s32.totalorder %s33, 0
      %p301 = por %p299, %p300
      %s302 = ssub.s32 %s27, %s34
      %p303 = scmp.eq.s32.totalorder %s302, 0
      %s305 = sadd.s32 %s304, 1
      %s306 = scalar_select %p303, %s304, %s305
      %p309 = pneg %p303
      %p310 = scmp.eq.s32.totalorder %s27, 1
      %p311 = por %p309, %p310
      %p312 = scmp.ne.s32.totalorder %s304, %s307
      %p313 = scmp.eq.s32.totalorder %s27, 0
      %p314 = por %p312, %p313
      %p315 = scmp.ne.s32.totalorder %s304, %s307
      %p316 = scmp.eq.s32.totalorder %s32, 1
      %p317 = por %p315, %p316
      %p318 = scmp.ne.s32.totalorder %s307, %s308
      %p319 = scmp.eq.s32.totalorder %s32, 0
      %p320 = por %p318, %p319
      %p321 = scmp.ne.s32.totalorder %s307, %s308
      %p322 = scmp.eq.s32.totalorder %s33, 1
      %p323 = por %p321, %p322
      %p325 = scmp.ne.s32.totalorder %s308, %s324
      %p326 = scmp.eq.s32.totalorder %s33, 0
      %p327 = por %p325, %p326
      %s328 = ssub.s32 %s27, %s34
      %p329 = scmp.eq.s32.totalorder %s328, 0
      %s331 = sadd.s32 %s330, 1
      %s332 = scalar_select %p329, %s330, %s331
      %p335 = pneg %p329
      %p336 = scmp.eq.s32.totalorder %s27, 1
      %p337 = por %p335, %p336
      %p338 = scmp.ne.s32.totalorder %s330, %s333
      %p339 = scmp.eq.s32.totalorder %s27, 0
      %p340 = por %p338, %p339
      %p341 = scmp.ne.s32.totalorder %s330, %s333
      %p342 = scmp.eq.s32.totalorder %s32, 1
      %p343 = por %p341, %p342
      %p344 = scmp.ne.s32.totalorder %s333, %s334
      %p345 = scmp.eq.s32.totalorder %s32, 0
      %p346 = por %p344, %p345
      %p347 = scmp.ne.s32.totalorder %s333, %s334
      %p348 = scmp.eq.s32.totalorder %s33, 1
      %p349 = por %p347, %p348
      %p351 = scmp.ne.s32.totalorder %s334, %s350
      %p352 = scmp.eq.s32.totalorder %s33, 0
      %p353 = por %p351, %p352
      %s354 = ssub.s32 %s27, %s34
      %p355 = scmp.eq.s32.totalorder %s354, 0
      %s357 = sadd.s32 %s356, 1
      %s358 = scalar_select %p355, %s356, %s357
      %p361 = pneg %p355
      %p362 = scmp.eq.s32.totalorder %s27, 1
      %p363 = por %p361, %p362
      %p364 = scmp.ne.s32.totalorder %s356, %s359
      %p365 = scmp.eq.s32.totalorder %s27, 0
      %p366 = por %p364, %p365
      %p367 = scmp.ne.s32.totalorder %s356, %s359
      %p368 = scmp.eq.s32.totalorder %s32, 1
      %p369 = por %p367, %p368
      %p370 = scmp.ne.s32.totalorder %s359, %s360
      %p371 = scmp.eq.s32.totalorder %s32, 0
      %p372 = por %p370, %p371
      %p373 = scmp.ne.s32.totalorder %s359, %s360
      %p374 = scmp.eq.s32.totalorder %s33, 1
      %p375 = por %p373, %p374
      %p377 = scmp.ne.s32.totalorder %s360, %s376
      %p378 = scmp.eq.s32.totalorder %s33, 0
      %p379 = por %p377, %p378
      %p380 = scmp.le.s32.totalorder 1, %s27
      %p381 = scmp.lt.s32.totalorder %s27, 3
      %p382 = pnand %p380, %p381
      %p383 = pneg %p382
      // Predicated region
      $region9: #{sdcn_forward.7} parent=5 // pred_check
        _
      $region10: #{sdcn_forward.7} parent=5 // pred_check_branch
        %385 = sbr.rel (%p382) target = $region12
      $region11: #{sdcn_forward.7} parent=5 // pred_region
        %s386 = ssub.s32 %s27, 1
        // Predicated region
        $region13: #{sdcn_forward.7} parent=11 // pred_check
          %p387 = pneg %p74
        $region14: #{sdcn_forward.7} parent=11 // pred_check_branch
          %389 = sbr.rel (%p387) target = $region16
        $region15: #{sdcn_forward.7} parent=11 // pred_region
          %391 = vsyncadd [#allocation5], 0
          %s392 = sshll.u32 %s1, 4
          %s393 = int_to_ptr.hbm [resolvable:$true] %s392
          %s394 = sshll.u32 [#allocation4], 4
          %s395 = int_to_ptr.vmem [resolvable:$true] %s394
          %400 = dma.hbm_to_vmem [thread:$0]  %s393, 2048, %s395, [#allocation5], 128, 128, 8
        $region16: #{sdcn_forward.7} parent=11 // pred_fallthru
          _
        // Predicated region
        $region17: #{sdcn_forward.7} parent=11 // pred_check
          %p401 = pneg %p95
        $region18: #{sdcn_forward.7} parent=11 // pred_check_branch
          %403 = sbr.rel (%p401) target = $region20
        $region19: #{sdcn_forward.7} parent=11 // pred_region
          _
        $region20: #{sdcn_forward.7} parent=11 // pred_fallthru
          _
        // Predicated region
        $region21: #{sdcn_forward.7} parent=11 // pred_check
          %p404 = pneg %p116
        $region22: #{sdcn_forward.7} parent=11 // pred_check_branch
          %406 = sbr.rel (%p404) target = $region24
        $region23: #{sdcn_forward.7} parent=11 // pred_region
          %408 = vsyncadd [#allocation5], 0
          %s409 = sshll.u32 %s3, 4
          %s410 = int_to_ptr.hbm [resolvable:$true] %s409
          %s411 = sshll.u32 [#allocation6], 4
          %s412 = int_to_ptr.vmem [resolvable:$true] %s411
          %417 = dma.hbm_to_vmem [thread:$0]  %s410, 2048, %s412, [#allocation5], 128, 128, 8
        $region24: #{sdcn_forward.7} parent=11 // pred_fallthru
          _
        // Predicated region
        $region25: #{sdcn_forward.7} parent=11 // pred_check
          %p418 = pneg %p137
        $region26: #{sdcn_forward.7} parent=11 // pred_check_branch
          %420 = sbr.rel (%p418) target = $region28
        $region27: #{sdcn_forward.7} parent=11 // pred_region
          _
        $region28: #{sdcn_forward.7} parent=11 // pred_fallthru
          _
        // Predicated region
        $region29: #{sdcn_forward.7} parent=11 // pred_check
          %p421 = pneg %p158
        $region30: #{sdcn_forward.7} parent=11 // pred_check_branch
          %423 = sbr.rel (%p421) target = $region32
        $region31: #{sdcn_forward.7} parent=11 // pred_region
          %425 = vsyncadd [#allocation8], 0
          %s426 = sshll.u32 %s5, 4
          %s427 = int_to_ptr.hbm [resolvable:$true] %s426
          %s428 = sshll.u32 [#allocation7], 4
          %s429 = int_to_ptr.vmem [resolvable:$true] %s428
          %434 = dma.hbm_to_vmem [thread:$0]  %s427, 2048, %s429, [#allocation8], 128, 128, 8
        $region32: #{sdcn_forward.7} parent=11 // pred_fallthru
          _
        // Predicated region
        $region33: #{sdcn_forward.7} parent=11 // pred_check
          %p435 = pneg %p179
        $region34: #{sdcn_forward.7} parent=11 // pred_check_branch
          %437 = sbr.rel (%p435) target = $region36
        $region35: #{sdcn_forward.7} parent=11 // pred_region
          _
        $region36: #{sdcn_forward.7} parent=11 // pred_fallthru
          _
        // Predicated region
        $region37: #{sdcn_forward.7} parent=11 // pred_check
          %p438 = pneg %p200
        $region38: #{sdcn_forward.7} parent=11 // pred_check_branch
          %440 = sbr.rel (%p438) target = $region40
        $region39: #{sdcn_forward.7} parent=11 // pred_region
          %442 = vsyncadd [#allocation8], 0
          %s443 = sshll.u32 %s7, 4
          %s444 = int_to_ptr.hbm [resolvable:$true] %s443
          %s445 = sshll.u32 [#allocation9], 4
          %s446 = int_to_ptr.vmem [resolvable:$true] %s445
          %451 = dma.hbm_to_vmem [thread:$0]  %s444, 2048, %s446, [#allocation8], 128, 128, 8
        $region40: #{sdcn_forward.7} parent=11 // pred_fallthru
          _
        // Predicated region
        $region41: #{sdcn_forward.7} parent=11 // pred_check
          %p452 = pneg %p221
        $region42: #{sdcn_forward.7} parent=11 // pred_check_branch
          %454 = sbr.rel (%p452) target = $region44
        $region43: #{sdcn_forward.7} parent=11 // pred_region
          _
        $region44: #{sdcn_forward.7} parent=11 // pred_fallthru
          _
        // Predicated region
        $region45: #{sdcn_forward.7} parent=11 // pred_check
          %p455 = pneg %p242
        $region46: #{sdcn_forward.7} parent=11 // pred_check_branch
          %457 = sbr.rel (%p455) target = $region48
        $region47: #{sdcn_forward.7} parent=11 // pred_region
          %459 = vsyncadd [#allocation11], 0
          %s460 = sshll.u32 %s9, 4
          %s461 = int_to_ptr.hbm [resolvable:$true] %s460
          %s462 = sshll.u32 [#allocation10], 4
          %s463 = int_to_ptr.vmem [resolvable:$true] %s462
          %468 = dma.hbm_to_vmem [thread:$0]  %s461, 2048, %s463, [#allocation11], 128, 128, 8
        $region48: #{sdcn_forward.7} parent=11 // pred_fallthru
          _
      $region12: #{sdcn_forward.7} parent=5 // pred_fallthru
        _
      %p469 = scmp.lt.s32.totalorder %s27, 2
      // Predicated region
      $region49: #{sdcn_forward.7} parent=5 // pred_check
        %p470 = pneg %p469
      $region50: #{sdcn_forward.7} parent=5 // pred_check_branch
        %472 = sbr.rel (%p470) target = $region52
      $region51: #{sdcn_forward.7} parent=5 // pred_region
        // Predicated region
        $region53: #{sdcn_forward.7} parent=51 // pred_check
          %p473 = pneg %p47
        $region54: #{sdcn_forward.7} parent=51 // pred_check_branch
          %475 = sbr.rel (%p473) target = $region56
        $region55: #{sdcn_forward.7} parent=51 // pred_region
          %s476 = sand.u32 %s37, 1
          %s477 = scalar_lea.sflag [#allocation3], %s476
          %s478 = sand.u32 %s37, 1
          %s479 = smul.addr %s478, 128
          %s480 = scalar_lea.vmem [#allocation2], %s479
          %s481 = smul.u32 16, %s27
          %483 = vsyncadd %s477, 0
          %s484 = smul.addr %s481, 8
          %s485 = scalar_lea.hbm %s0, %s484
          %s486 = sshll.u32 %s485, 4
          %s487 = int_to_ptr.hbm [resolvable:$true] %s486
          %s488 = sshll.u32 %s480, 4
          %s489 = int_to_ptr.vmem [resolvable:$true] %s488
          %494 = dma.hbm_to_vmem [thread:$0]  %s487, 2048, %s489, %s477, 128, 128, 8
        $region56: #{sdcn_forward.7} parent=51 // pred_fallthru
          _
      $region52: #{sdcn_forward.7} parent=5 // pred_fallthru
        _
      %p495 = scmp.le.s32.totalorder 1, %s27
      %p496 = scmp.lt.s32.totalorder %s27, 3
      %p497 = pnand %p495, %p496
      %p498 = pneg %p497
      // Predicated region
      $region57: #{sdcn_forward.7} parent=5 // pred_check
        _
      $region58: #{sdcn_forward.7} parent=5 // pred_check_branch
        %500 = sbr.rel (%p497) target = $region60
      $region59: #{sdcn_forward.7} parent=5 // pred_region
        %s501 = ssub.s32 %s27, 1
        %s502 = sand.u32 %s40, 1
        %s503 = scalar_lea.sflag [#allocation3], %s502
        %s504 = sand.u32 %s40, 1
        %s505 = smul.addr %s504, 128
        %s506 = scalar_lea.vmem [#allocation2], %s505
        // Predicated region
        $region61: #{sdcn_forward.7} parent=59 // pred_check
          %p507 = pneg %p53
        $region62: #{sdcn_forward.7} parent=59 // pred_check_branch
          %509 = sbr.rel (%p507) target = $region64
        $region63: #{sdcn_forward.7} parent=59 // pred_region
          %511 = dma.done %s503, 2048
        $region64: #{sdcn_forward.7} parent=59 // pred_fallthru
          _
        // Predicated region
        $region65: #{sdcn_forward.7} parent=59 // pred_check
          %p512 = pneg %p74
        $region66: #{sdcn_forward.7} parent=59 // pred_check_branch
          %514 = sbr.rel (%p512) target = $region68
        $region67: #{sdcn_forward.7} parent=59 // pred_region
          %516 = dma.done [#allocation5], 2048
        $region68: #{sdcn_forward.7} parent=59 // pred_fallthru
          _
        // Predicated region
        $region69: #{sdcn_forward.7} parent=59 // pred_check
          %p517 = pneg %p116
        $region70: #{sdcn_forward.7} parent=59 // pred_check_branch
          %519 = sbr.rel (%p517) target = $region72
        $region71: #{sdcn_forward.7} parent=59 // pred_region
          %521 = dma.done [#allocation5], 2048
        $region72: #{sdcn_forward.7} parent=59 // pred_fallthru
          _
        // Predicated region
        $region73: #{sdcn_forward.7} parent=59 // pred_check
          %p522 = pneg %p158
        $region74: #{sdcn_forward.7} parent=59 // pred_check_branch
          %524 = sbr.rel (%p522) target = $region76
        $region75: #{sdcn_forward.7} parent=59 // pred_region
          %526 = dma.done [#allocation8], 2048
        $region76: #{sdcn_forward.7} parent=59 // pred_fallthru
          _
        // Predicated region
        $region77: #{sdcn_forward.7} parent=59 // pred_check
          %p527 = pneg %p200
        $region78: #{sdcn_forward.7} parent=59 // pred_check_branch
          %529 = sbr.rel (%p527) target = $region80
        $region79: #{sdcn_forward.7} parent=59 // pred_region
          %531 = dma.done [#allocation8], 2048
        $region80: #{sdcn_forward.7} parent=59 // pred_fallthru
          _
        // Predicated region
        $region81: #{sdcn_forward.7} parent=59 // pred_check
          %p532 = pneg %p242
        $region82: #{sdcn_forward.7} parent=59 // pred_check_branch
          %534 = sbr.rel (%p532) target = $region84
        $region83: #{sdcn_forward.7} parent=59 // pred_region
          %536 = dma.done [#allocation11], 2048
        $region84: #{sdcn_forward.7} parent=59 // pred_fallthru
          _
        %s537 = sand.u32 %s40, 1
        %s538 = scalar_lea.sflag [#allocation3], %s537
        %s539 = sand.u32 %s40, 1
        %s540 = smul.addr %s539, 128
        %s541 = scalar_lea.vmem [#allocation2], %s540
        %p542 = pneg %p53
        %p543 = pneg %p50
        %p544 = pneg %p74
        %p545 = pneg %p71
        %p546 = pneg %p95
        %p547 = pneg %p92
        %p548 = pneg %p116
        %p549 = pneg %p113
        %p550 = pneg %p137
        %p551 = pneg %p134
        %p552 = pneg %p158
        %p553 = pneg %p155
        %p554 = pneg %p179
        %p555 = pneg %p176
        %p556 = pneg %p200
        %p557 = pneg %p197
        %p558 = pneg %p221
        %p559 = pneg %p218
        %p560 = pneg %p242
        %p561 = pneg %p239
        %p562 = pneg %p268
        %p563 = pneg %p265
        %s564 = smul.u32 16, %s32
        %p565 = scmp.lt.s32.totalorder %s564, 31
        %s566 = scalar_select %p565, %s564, 31
        %s567 = smul.addr %s566, 4
        %s568 = scalar_lea.vmem %s10, %s567
        %p569 = pneg %p294
        %p570 = pneg %p291
        %s571 = smul.u32 16, %s32
        %p572 = scmp.lt.s32.totalorder %s571, 31
        %s573 = scalar_select %p572, %s571, 31
        %s574 = smul.addr %s573, 4
        %s575 = scalar_lea.vmem %s11, %s574
        %p576 = pneg %p320
        %p577 = pneg %p317
        %s578 = smul.u32 16, %s32
        %p579 = scmp.lt.s32.totalorder %s578, 31
        %s580 = scalar_select %p579, %s578, 31
        %s581 = smul.addr %s580, 4
        %s582 = scalar_lea.vmem %s12, %s581
        %p583 = pneg %p346
        %p584 = pneg %p343
        %s585 = smul.u32 16, %s32
        %p586 = scmp.lt.s32.totalorder %s585, 31
        %s587 = scalar_select %p586, %s585, 31
        %s588 = smul.addr %s587, 8
        %s589 = scalar_lea.vmem %s13, %s588
        %p590 = pneg %p372
        %p591 = pneg %p369
        %s592 = smul.u32 16, %s32
        %p593 = scmp.lt.s32.totalorder %s592, 31
        %s594 = scalar_select %p593, %s592, 31
        %s595 = smul.addr %s594, 4
        %s596 = scalar_lea.vmem %s14, %s595
        %s597 = smul.u32 16, %s32
        %s598 = smul.u32 16, %s32
        %p599 = scmp.lt.s32.totalorder %s598, 31
        %s600 = scalar_select %p599, %s598, 31
        %s601 = smul.addr %s600, 4
        %s602 = scalar_lea.vmem %s10, %s601
        %s603 = smul.u32 16, %s32
        %s604 = smul.u32 16, %s32
        %p605 = scmp.lt.s32.totalorder %s604, 31
        %s606 = scalar_select %p605, %s604, 31
        %s607 = smul.addr %s606, 4
        %s608 = scalar_lea.vmem %s11, %s607
        %s609 = smul.u32 16, %s32
        %s610 = smul.u32 16, %s32
        %p611 = scmp.lt.s32.totalorder %s610, 31
        %s612 = scalar_select %p611, %s610, 31
        %s613 = smul.addr %s612, 4
        %s614 = scalar_lea.vmem %s12, %s613
        %s615 = smul.u32 16, %s32
        %s616 = smul.u32 16, %s32
        %p617 = scmp.lt.s32.totalorder %s616, 31
        %s618 = scalar_select %p617, %s616, 31
        %s619 = smul.addr %s618, 8
        %s620 = scalar_lea.vmem %s13, %s619
        %s621 = smul.u32 16, %s32
        %s622 = smul.u32 16, %s32
        %p623 = scmp.lt.s32.totalorder %s622, 31
        %s624 = scalar_select %p623, %s622, 31
        %s625 = smul.addr %s624, 4
        %s626 = scalar_lea.vmem %s14, %s625
        %s627 = smul.u32 16, %s32
        %v628 = vld [vmem:[%s506] sm:$0xff]
        %v629 = vld [vmem:[%s506 + $0x8] sm:$0xff]
        %v630 = vld [vmem:[%s506 + $0x10] sm:$0xff]
        %v631 = vld [vmem:[%s506 + $0x18] sm:$0xff]
        %v632 = vld [vmem:[%s506 + $0x20] sm:$0xff]
        %v633 = vld [vmem:[%s506 + $0x28] sm:$0xff]
        %v634 = vld [vmem:[%s506 + $0x30] sm:$0xff]
        %v635 = vld [vmem:[%s506 + $0x38] sm:$0xff]
        %v636 = vld [vmem:[%s506 + $0x40] sm:$0xff]
        %v637 = vld [vmem:[%s506 + $0x48] sm:$0xff]
        %v638 = vld [vmem:[%s506 + $0x50] sm:$0xff]
        %v639 = vld [vmem:[%s506 + $0x58] sm:$0xff]
        %v640 = vld [vmem:[%s506 + $0x60] sm:$0xff]
        %v641 = vld [vmem:[%s506 + $0x68] sm:$0xff]
        %v642 = vld [vmem:[%s506 + $0x70] sm:$0xff]
        %v643 = vld [vmem:[%s506 + $0x78] sm:$0xff]
        %v644 = vld [vmem:[#allocation4] sm:$0xff]
        %v645 = vld [vmem:[#allocation4 + $0x8] sm:$0xff]
        %v646 = vld [vmem:[#allocation4 + $0x10] sm:$0xff]
        %v647 = vld [vmem:[#allocation4 + $0x18] sm:$0xff]
        %v648 = vld [vmem:[#allocation4 + $0x20] sm:$0xff]
        %v649 = vld [vmem:[#allocation4 + $0x28] sm:$0xff]
        %v650 = vld [vmem:[#allocation4 + $0x30] sm:$0xff]
        %v651 = vld [vmem:[#allocation4 + $0x38] sm:$0xff]
        %v652 = vld [vmem:[#allocation4 + $0x40] sm:$0xff]
        %v653 = vld [vmem:[#allocation4 + $0x48] sm:$0xff]
        %v654 = vld [vmem:[#allocation4 + $0x50] sm:$0xff]
        %v655 = vld [vmem:[#allocation4 + $0x58] sm:$0xff]
        %v656 = vld [vmem:[#allocation4 + $0x60] sm:$0xff]
        %v657 = vld [vmem:[#allocation4 + $0x68] sm:$0xff]
        %v658 = vld [vmem:[#allocation4 + $0x70] sm:$0xff]
        %v659 = vld [vmem:[#allocation4 + $0x78] sm:$0xff]
        %v660 = vld [vmem:[%s2] sm:$0x1]
        %v662 = vperm.slane %v660, 0
        %664 = vmatpush.msra.mxu0 %v659
        %665 = vmatpush.msra.mxu0 %v658
        %666 = vmatpush.msra.mxu0 %v657
        %667 = vmatpush.msra.mxu0 %v656
        %668 = vmatpush.msra.mxu0 %v655
        %669 = vmatpush.msra.mxu0 %v654
        %670 = vmatpush.msra.mxu0 %v653
        %671 = vmatpush.msra.mxu0 %v652
        %672 = vmatpush.msra.mxu0 %v651
        %673 = vmatpush.msra.mxu0 %v650
        %674 = vmatpush.msra.mxu0 %v649
        %675 = vmatpush.msra.mxu0 %v648
        %676 = vmatpush.msra.mxu0 %v647
        %677 = vmatpush.msra.mxu0 %v646
        %678 = vmatpush.msra.mxu0 %v645
        %679 = vmatpush.msra.mxu0 %v644
        %680 = vmatmul.f32.gmra.mxu0 %v628
        %v681 = vpop.f32.mrf.mxu0
        %v682 = vadd.f32 %v662, %v681
        %683 = vmatmul.f32.gmra.mxu0 %v629
        %v684 = vpop.f32.mrf.mxu0
        %v685 = vadd.f32 %v662, %v684
        %686 = vmatmul.f32.gmra.mxu0 %v630
        %v687 = vpop.f32.mrf.mxu0
        %v688 = vadd.f32 %v662, %v687
        %689 = vmatmul.f32.gmra.mxu0 %v631
        %v690 = vpop.f32.mrf.mxu0
        %v691 = vadd.f32 %v662, %v690
        %692 = vmatmul.f32.gmra.mxu0 %v632
        %v693 = vpop.f32.mrf.mxu0
        %v694 = vadd.f32 %v662, %v693
        %695 = vmatmul.f32.gmra.mxu0 %v633
        %v696 = vpop.f32.mrf.mxu0
        %v697 = vadd.f32 %v662, %v696
        %698 = vmatmul.f32.gmra.mxu0 %v634
        %v699 = vpop.f32.mrf.mxu0
        %v700 = vadd.f32 %v662, %v699
        %701 = vmatmul.f32.gmra.mxu0 %v635
        %v702 = vpop.f32.mrf.mxu0
        %v703 = vadd.f32 %v662, %v702
        %704 = vmatmul.f32.gmra.mxu0 %v636
        %v705 = vpop.f32.mrf.mxu0
        %v706 = vadd.f32 %v662, %v705
        %707 = vmatmul.f32.gmra.mxu0 %v637
        %v708 = vpop.f32.mrf.mxu0
        %v709 = vadd.f32 %v662, %v708
        %710 = vmatmul.f32.gmra.mxu0 %v638
        %v711 = vpop.f32.mrf.mxu0
        %v712 = vadd.f32 %v662, %v711
        %713 = vmatmul.f32.gmra.mxu0 %v639
        %v714 = vpop.f32.mrf.mxu0
        %v715 = vadd.f32 %v662, %v714
        %716 = vmatmul.f32.gmra.mxu0 %v640
        %v717 = vpop.f32.mrf.mxu0
        %v718 = vadd.f32 %v662, %v717
        %719 = vmatmul.f32.gmra.mxu0 %v641
        %v720 = vpop.f32.mrf.mxu0
        %v721 = vadd.f32 %v662, %v720
        %722 = vmatmul.f32.gmra.mxu0 %v642
        %v723 = vpop.f32.mrf.mxu0
        %v724 = vadd.f32 %v662, %v723
        %725 = vmatmul.f32.gmra.mxu0 %v643
        %v726 = vpop.f32.mrf.mxu0
        %v727 = vadd.f32 %v662, %v726
        %728 = vdwg.mxu0
        %v729 = vmax.f32 %v682, 0.0
        %v730 = vmax.f32 %v685, 0.0
        %v731 = vmax.f32 %v688, 0.0
        %v732 = vmax.f32 %v691, 0.0
        %v733 = vmax.f32 %v694, 0.0
        %v734 = vmax.f32 %v697, 0.0
        %v735 = vmax.f32 %v700, 0.0
        %v736 = vmax.f32 %v703, 0.0
        %v737 = vmax.f32 %v706, 0.0
        %v738 = vmax.f32 %v709, 0.0
        %v739 = vmax.f32 %v712, 0.0
        %v740 = vmax.f32 %v715, 0.0
        %v741 = vmax.f32 %v718, 0.0
        %v742 = vmax.f32 %v721, 0.0
        %v743 = vmax.f32 %v724, 0.0
        %v744 = vmax.f32 %v727, 0.0
        %v745 = vld [vmem:[#allocation6] sm:$0xff]
        %v746 = vld [vmem:[#allocation6 + $0x8] sm:$0xff]
        %v747 = vld [vmem:[#allocation6 + $0x10] sm:$0xff]
        %v748 = vld [vmem:[#allocation6 + $0x18] sm:$0xff]
        %v749 = vld [vmem:[#allocation6 + $0x20] sm:$0xff]
        %v750 = vld [vmem:[#allocation6 + $0x28] sm:$0xff]
        %v751 = vld [vmem:[#allocation6 + $0x30] sm:$0xff]
        %v752 = vld [vmem:[#allocation6 + $0x38] sm:$0xff]
        %v753 = vld [vmem:[#allocation6 + $0x40] sm:$0xff]
        %v754 = vld [vmem:[#allocation6 + $0x48] sm:$0xff]
        %v755 = vld [vmem:[#allocation6 + $0x50] sm:$0xff]
        %v756 = vld [vmem:[#allocation6 + $0x58] sm:$0xff]
        %v757 = vld [vmem:[#allocation6 + $0x60] sm:$0xff]
        %v758 = vld [vmem:[#allocation6 + $0x68] sm:$0xff]
        %v759 = vld [vmem:[#allocation6 + $0x70] sm:$0xff]
        %v760 = vld [vmem:[#allocation6 + $0x78] sm:$0xff]
        %v761 = vld [vmem:[%s4] sm:$0x1]
        %v763 = vperm.slane %v761, 0
        %765 = vmatpush.msra.mxu0 %v760
        %766 = vmatpush.msra.mxu0 %v759
        %767 = vmatpush.msra.mxu0 %v758
        %768 = vmatpush.msra.mxu0 %v757
        %769 = vmatpush.msra.mxu0 %v756
        %770 = vmatpush.msra.mxu0 %v755
        %771 = vmatpush.msra.mxu0 %v754
        %772 = vmatpush.msra.mxu0 %v753
        %773 = vmatpush.msra.mxu0 %v752
        %774 = vmatpush.msra.mxu0 %v751
        %775 = vmatpush.msra.mxu0 %v750
        %776 = vmatpush.msra.mxu0 %v749
        %777 = vmatpush.msra.mxu0 %v748
        %778 = vmatpush.msra.mxu0 %v747
        %779 = vmatpush.msra.mxu0 %v746
        %780 = vmatpush.msra.mxu0 %v745
        %781 = vmatmul.f32.gmra.mxu0 %v729
        %v782 = vpop.f32.mrf.mxu0
        %v783 = vadd.f32 %v763, %v782
        %784 = vmatmul.f32.gmra.mxu0 %v730
        %v785 = vpop.f32.mrf.mxu0
        %v786 = vadd.f32 %v763, %v785
        %787 = vmatmul.f32.gmra.mxu0 %v731
        %v788 = vpop.f32.mrf.mxu0
        %v789 = vadd.f32 %v763, %v788
        %790 = vmatmul.f32.gmra.mxu0 %v732
        %v791 = vpop.f32.mrf.mxu0
        %v792 = vadd.f32 %v763, %v791
        %793 = vmatmul.f32.gmra.mxu0 %v733
        %v794 = vpop.f32.mrf.mxu0
        %v795 = vadd.f32 %v763, %v794
        %796 = vmatmul.f32.gmra.mxu0 %v734
        %v797 = vpop.f32.mrf.mxu0
        %v798 = vadd.f32 %v763, %v797
        %799 = vmatmul.f32.gmra.mxu0 %v735
        %v800 = vpop.f32.mrf.mxu0
        %v801 = vadd.f32 %v763, %v800
        %802 = vmatmul.f32.gmra.mxu0 %v736
        %v803 = vpop.f32.mrf.mxu0
        %v804 = vadd.f32 %v763, %v803
        %805 = vmatmul.f32.gmra.mxu0 %v737
        %v806 = vpop.f32.mrf.mxu0
        %v807 = vadd.f32 %v763, %v806
        %808 = vmatmul.f32.gmra.mxu0 %v738
        %v809 = vpop.f32.mrf.mxu0
        %v810 = vadd.f32 %v763, %v809
        %811 = vmatmul.f32.gmra.mxu0 %v739
        %v812 = vpop.f32.mrf.mxu0
        %v813 = vadd.f32 %v763, %v812
        %814 = vmatmul.f32.gmra.mxu0 %v740
        %v815 = vpop.f32.mrf.mxu0
        %v816 = vadd.f32 %v763, %v815
        %817 = vmatmul.f32.gmra.mxu0 %v741
        %v818 = vpop.f32.mrf.mxu0
        %v819 = vadd.f32 %v763, %v818
        %820 = vmatmul.f32.gmra.mxu0 %v742
        %v821 = vpop.f32.mrf.mxu0
        %v822 = vadd.f32 %v763, %v821
        %823 = vmatmul.f32.gmra.mxu0 %v743
        %v824 = vpop.f32.mrf.mxu0
        %v825 = vadd.f32 %v763, %v824
        %826 = vmatmul.f32.gmra.mxu0 %v744
        %v827 = vpop.f32.mrf.mxu0
        %v828 = vadd.f32 %v763, %v827
        %829 = vdwg.mxu0
        %v830 = vmax.f32 %v783, 0.0
        %v831 = vmax.f32 %v786, 0.0
        %v832 = vmax.f32 %v789, 0.0
        %v833 = vmax.f32 %v792, 0.0
        %v834 = vmax.f32 %v795, 0.0
        %v835 = vmax.f32 %v798, 0.0
        %v836 = vmax.f32 %v801, 0.0
        %v837 = vmax.f32 %v804, 0.0
        %v838 = vmax.f32 %v807, 0.0
        %v839 = vmax.f32 %v810, 0.0
        %v840 = vmax.f32 %v813, 0.0
        %v841 = vmax.f32 %v816, 0.0
        %v842 = vmax.f32 %v819, 0.0
        %v843 = vmax.f32 %v822, 0.0
        %v844 = vmax.f32 %v825, 0.0
        %v845 = vmax.f32 %v828, 0.0
        %v846 = vld [vmem:[#allocation7] sm:$0xff]
        %v847 = vld [vmem:[#allocation7 + $0x8] sm:$0xff]
        %v848 = vld [vmem:[#allocation7 + $0x10] sm:$0xff]
        %v849 = vld [vmem:[#allocation7 + $0x18] sm:$0xff]
        %v850 = vld [vmem:[#allocation7 + $0x20] sm:$0xff]
        %v851 = vld [vmem:[#allocation7 + $0x28] sm:$0xff]
        %v852 = vld [vmem:[#allocation7 + $0x30] sm:$0xff]
        %v853 = vld [vmem:[#allocation7 + $0x38] sm:$0xff]
        %v854 = vld [vmem:[#allocation7 + $0x40] sm:$0xff]
        %v855 = vld [vmem:[#allocation7 + $0x48] sm:$0xff]
        %v856 = vld [vmem:[#allocation7 + $0x50] sm:$0xff]
        %v857 = vld [vmem:[#allocation7 + $0x58] sm:$0xff]
        %v858 = vld [vmem:[#allocation7 + $0x60] sm:$0xff]
        %v859 = vld [vmem:[#allocation7 + $0x68] sm:$0xff]
        %v860 = vld [vmem:[#allocation7 + $0x70] sm:$0xff]
        %v861 = vld [vmem:[#allocation7 + $0x78] sm:$0xff]
        %v862 = vld [vmem:[%s6] sm:$0x1]
        %v864 = vperm.slane %v862, 0
        %866 = vmatpush.msra.mxu0 %v861
        %867 = vmatpush.msra.mxu0 %v860
        %868 = vmatpush.msra.mxu0 %v859
        %869 = vmatpush.msra.mxu0 %v858
        %870 = vmatpush.msra.mxu0 %v857
        %871 = vmatpush.msra.mxu0 %v856
        %872 = vmatpush.msra.mxu0 %v855
        %873 = vmatpush.msra.mxu0 %v854
        %874 = vmatpush.msra.mxu0 %v853
        %875 = vmatpush.msra.mxu0 %v852
        %876 = vmatpush.msra.mxu0 %v851
        %877 = vmatpush.msra.mxu0 %v850
        %878 = vmatpush.msra.mxu0 %v849
        %879 = vmatpush.msra.mxu0 %v848
        %880 = vmatpush.msra.mxu0 %v847
        %881 = vmatpush.msra.mxu0 %v846
        %882 = vmatmul.f32.gmra.mxu0 %v830
        %v883 = vpop.f32.mrf.mxu0
        %v884 = vadd.f32 %v864, %v883
        %885 = vmatmul.f32.gmra.mxu0 %v831
        %v886 = vpop.f32.mrf.mxu0
        %v887 = vadd.f32 %v864, %v886
        %888 = vmatmul.f32.gmra.mxu0 %v832
        %v889 = vpop.f32.mrf.mxu0
        %v890 = vadd.f32 %v864, %v889
        %891 = vmatmul.f32.gmra.mxu0 %v833
        %v892 = vpop.f32.mrf.mxu0
        %v893 = vadd.f32 %v864, %v892
        %894 = vmatmul.f32.gmra.mxu0 %v834
        %v895 = vpop.f32.mrf.mxu0
        %v896 = vadd.f32 %v864, %v895
        %897 = vmatmul.f32.gmra.mxu0 %v835
        %v898 = vpop.f32.mrf.mxu0
        %v899 = vadd.f32 %v864, %v898
        %900 = vmatmul.f32.gmra.mxu0 %v836
        %v901 = vpop.f32.mrf.mxu0
        %v902 = vadd.f32 %v864, %v901
        %903 = vmatmul.f32.gmra.mxu0 %v837
        %v904 = vpop.f32.mrf.mxu0
        %v905 = vadd.f32 %v864, %v904
        %906 = vmatmul.f32.gmra.mxu0 %v838
        %v907 = vpop.f32.mrf.mxu0
        %v908 = vadd.f32 %v864, %v907
        %909 = vmatmul.f32.gmra.mxu0 %v839
        %v910 = vpop.f32.mrf.mxu0
        %v911 = vadd.f32 %v864, %v910
        %912 = vmatmul.f32.gmra.mxu0 %v840
        %v913 = vpop.f32.mrf.mxu0
        %v914 = vadd.f32 %v864, %v913
        %915 = vmatmul.f32.gmra.mxu0 %v841
        %v916 = vpop.f32.mrf.mxu0
        %v917 = vadd.f32 %v864, %v916
        %918 = vmatmul.f32.gmra.mxu0 %v842
        %v919 = vpop.f32.mrf.mxu0
        %v920 = vadd.f32 %v864, %v919
        %921 = vmatmul.f32.gmra.mxu0 %v843
        %v922 = vpop.f32.mrf.mxu0
        %v923 = vadd.f32 %v864, %v922
        %924 = vmatmul.f32.gmra.mxu0 %v844
        %v925 = vpop.f32.mrf.mxu0
        %v926 = vadd.f32 %v864, %v925
        %927 = vmatmul.f32.gmra.mxu0 %v845
        %v928 = vpop.f32.mrf.mxu0
        %v929 = vadd.f32 %v864, %v928
        %930 = vdwg.mxu0
        %v931 = vmax.f32 %v884, 0.0
        %v932 = vmax.f32 %v887, 0.0
        %v933 = vmax.f32 %v890, 0.0
        %v934 = vmax.f32 %v893, 0.0
        %v935 = vmax.f32 %v896, 0.0
        %v936 = vmax.f32 %v899, 0.0
        %v937 = vmax.f32 %v902, 0.0
        %v938 = vmax.f32 %v905, 0.0
        %v939 = vmax.f32 %v908, 0.0
        %v940 = vmax.f32 %v911, 0.0
        %v941 = vmax.f32 %v914, 0.0
        %v942 = vmax.f32 %v917, 0.0
        %v943 = vmax.f32 %v920, 0.0
        %v944 = vmax.f32 %v923, 0.0
        %v945 = vmax.f32 %v926, 0.0
        %v946 = vmax.f32 %v929, 0.0
        %v947 = vld [vmem:[#allocation9] sm:$0xff]
        %v948 = vld [vmem:[#allocation9 + $0x8] sm:$0xff]
        %v949 = vld [vmem:[#allocation9 + $0x10] sm:$0xff]
        %v950 = vld [vmem:[#allocation9 + $0x18] sm:$0xff]
        %v951 = vld [vmem:[#allocation9 + $0x20] sm:$0xff]
        %v952 = vld [vmem:[#allocation9 + $0x28] sm:$0xff]
        %v953 = vld [vmem:[#allocation9 + $0x30] sm:$0xff]
        %v954 = vld [vmem:[#allocation9 + $0x38] sm:$0xff]
        %v955 = vld [vmem:[#allocation9 + $0x40] sm:$0xff]
        %v956 = vld [vmem:[#allocation9 + $0x48] sm:$0xff]
        %v957 = vld [vmem:[#allocation9 + $0x50] sm:$0xff]
        %v958 = vld [vmem:[#allocation9 + $0x58] sm:$0xff]
        %v959 = vld [vmem:[#allocation9 + $0x60] sm:$0xff]
        %v960 = vld [vmem:[#allocation9 + $0x68] sm:$0xff]
        %v961 = vld [vmem:[#allocation9 + $0x70] sm:$0xff]
        %v962 = vld [vmem:[#allocation9 + $0x78] sm:$0xff]
        %v963 = vld [vmem:[%s8] sm:$0x1]
        %v965 = vperm.slane %v963, 0
        %967 = vmatpush.msra.mxu0 %v962
        %968 = vmatpush.msra.mxu0 %v961
        %969 = vmatpush.msra.mxu0 %v960
        %970 = vmatpush.msra.mxu0 %v959
        %971 = vmatpush.msra.mxu0 %v958
        %972 = vmatpush.msra.mxu0 %v957
        %973 = vmatpush.msra.mxu0 %v956
        %974 = vmatpush.msra.mxu0 %v955
        %975 = vmatpush.msra.mxu0 %v954
        %976 = vmatpush.msra.mxu0 %v953
        %977 = vmatpush.msra.mxu0 %v952
        %978 = vmatpush.msra.mxu0 %v951
        %979 = vmatpush.msra.mxu0 %v950
        %980 = vmatpush.msra.mxu0 %v949
        %981 = vmatpush.msra.mxu0 %v948
        %982 = vmatpush.msra.mxu0 %v947
        %983 = vmatmul.f32.gmra.mxu0 %v931
        %v984 = vpop.f32.mrf.mxu0
        %v985 = vadd.f32 %v965, %v984
        %986 = vmatmul.f32.gmra.mxu0 %v932
        %v987 = vpop.f32.mrf.mxu0
        %v988 = vadd.f32 %v965, %v987
        %989 = vmatmul.f32.gmra.mxu0 %v933
        %v990 = vpop.f32.mrf.mxu0
        %v991 = vadd.f32 %v965, %v990
        %992 = vmatmul.f32.gmra.mxu0 %v934
        %v993 = vpop.f32.mrf.mxu0
        %v994 = vadd.f32 %v965, %v993
        %995 = vmatmul.f32.gmra.mxu0 %v935
        %v996 = vpop.f32.mrf.mxu0
        %v997 = vadd.f32 %v965, %v996
        %998 = vmatmul.f32.gmra.mxu0 %v936
        %v999 = vpop.f32.mrf.mxu0
        %v1000 = vadd.f32 %v965, %v999
        %1001 = vmatmul.f32.gmra.mxu0 %v937
        %v1002 = vpop.f32.mrf.mxu0
        %v1003 = vadd.f32 %v965, %v1002
        %1004 = vmatmul.f32.gmra.mxu0 %v938
        %v1005 = vpop.f32.mrf.mxu0
        %v1006 = vadd.f32 %v965, %v1005
        %1007 = vmatmul.f32.gmra.mxu0 %v939
        %v1008 = vpop.f32.mrf.mxu0
        %v1009 = vadd.f32 %v965, %v1008
        %1010 = vmatmul.f32.gmra.mxu0 %v940
        %v1011 = vpop.f32.mrf.mxu0
        %v1012 = vadd.f32 %v965, %v1011
        %1013 = vmatmul.f32.gmra.mxu0 %v941
        %v1014 = vpop.f32.mrf.mxu0
        %v1015 = vadd.f32 %v965, %v1014
        %1016 = vmatmul.f32.gmra.mxu0 %v942
        %v1017 = vpop.f32.mrf.mxu0
        %v1018 = vadd.f32 %v965, %v1017
        %1019 = vmatmul.f32.gmra.mxu0 %v943
        %v1020 = vpop.f32.mrf.mxu0
        %v1021 = vadd.f32 %v965, %v1020
        %1022 = vmatmul.f32.gmra.mxu0 %v944
        %v1023 = vpop.f32.mrf.mxu0
        %v1024 = vadd.f32 %v965, %v1023
        %1025 = vmatmul.f32.gmra.mxu0 %v945
        %v1026 = vpop.f32.mrf.mxu0
        %v1027 = vadd.f32 %v965, %v1026
        %1028 = vmatmul.f32.gmra.mxu0 %v946
        %v1029 = vpop.f32.mrf.mxu0
        %v1030 = vadd.f32 %v965, %v1029
        %1031 = vdwg.mxu0
        %v1032 = vpack.c.bf16 %v729, %v729
        %v1033 = vpack.c.bf16 %v730, %v730
        %v1034 = vpack.c.bf16 %v731, %v731
        %v1035 = vpack.c.bf16 %v732, %v732
        %v1036 = vpack.c.bf16 %v733, %v733
        %v1037 = vpack.c.bf16 %v734, %v734
        %v1038 = vpack.c.bf16 %v735, %v735
        %v1039 = vpack.c.bf16 %v736, %v736
        %v1040 = vpack.c.bf16 %v737, %v737
        %v1041 = vpack.c.bf16 %v738, %v738
        %v1042 = vpack.c.bf16 %v739, %v739
        %v1043 = vpack.c.bf16 %v740, %v740
        %v1044 = vpack.c.bf16 %v741, %v741
        %v1045 = vpack.c.bf16 %v742, %v742
        %v1046 = vpack.c.bf16 %v743, %v743
        %v1047 = vpack.c.bf16 %v744, %v744
        %1048 = vst [vmem:[%s602] sm:$0xf] %v1032
        %1049 = vst [vmem:[%s602 + $0x4] sm:$0xf] %v1033
        %1050 = vst [vmem:[%s602 + $0x8] sm:$0xf] %v1034
        %1051 = vst [vmem:[%s602 + $0xc] sm:$0xf] %v1035
        %1052 = vst [vmem:[%s602 + $0x10] sm:$0xf] %v1036
        %1053 = vst [vmem:[%s602 + $0x14] sm:$0xf] %v1037
        %1054 = vst [vmem:[%s602 + $0x18] sm:$0xf] %v1038
        %1055 = vst [vmem:[%s602 + $0x1c] sm:$0xf] %v1039
        %1056 = vst [vmem:[%s602 + $0x20] sm:$0xf] %v1040
        %1057 = vst [vmem:[%s602 + $0x24] sm:$0xf] %v1041
        %1058 = vst [vmem:[%s602 + $0x28] sm:$0xf] %v1042
        %1059 = vst [vmem:[%s602 + $0x2c] sm:$0xf] %v1043
        %1060 = vst [vmem:[%s602 + $0x30] sm:$0xf] %v1044
        %1061 = vst [vmem:[%s602 + $0x34] sm:$0xf] %v1045
        %1062 = vst [vmem:[%s602 + $0x38] sm:$0xf] %v1046
        %1063 = vst [vmem:[%s602 + $0x3c] sm:$0xf] %v1047
        %v1064 = vpack.c.bf16 %v830, %v830
        %v1065 = vpack.c.bf16 %v831, %v831
        %v1066 = vpack.c.bf16 %v832, %v832
        %v1067 = vpack.c.bf16 %v833, %v833
        %v1068 = vpack.c.bf16 %v834, %v834
        %v1069 = vpack.c.bf16 %v835, %v835
        %v1070 = vpack.c.bf16 %v836, %v836
        %v1071 = vpack.c.bf16 %v837, %v837
        %v1072 = vpack.c.bf16 %v838, %v838
        %v1073 = vpack.c.bf16 %v839, %v839
        %v1074 = vpack.c.bf16 %v840, %v840
        %v1075 = vpack.c.bf16 %v841, %v841
        %v1076 = vpack.c.bf16 %v842, %v842
        %v1077 = vpack.c.bf16 %v843, %v843
        %v1078 = vpack.c.bf16 %v844, %v844
        %v1079 = vpack.c.bf16 %v845, %v845
        %1080 = vst [vmem:[%s608] sm:$0xf] %v1064
        %1081 = vst [vmem:[%s608 + $0x4] sm:$0xf] %v1065
        %1082 = vst [vmem:[%s608 + $0x8] sm:$0xf] %v1066
        %1083 = vst [vmem:[%s608 + $0xc] sm:$0xf] %v1067
        %1084 = vst [vmem:[%s608 + $0x10] sm:$0xf] %v1068
        %1085 = vst [vmem:[%s608 + $0x14] sm:$0xf] %v1069
        %1086 = vst [vmem:[%s608 + $0x18] sm:$0xf] %v1070
        %1087 = vst [vmem:[%s608 + $0x1c] sm:$0xf] %v1071
        %1088 = vst [vmem:[%s608 + $0x20] sm:$0xf] %v1072
        %1089 = vst [vmem:[%s608 + $0x24] sm:$0xf] %v1073
        %1090 = vst [vmem:[%s608 + $0x28] sm:$0xf] %v1074
        %1091 = vst [vmem:[%s608 + $0x2c] sm:$0xf] %v1075
        %1092 = vst [vmem:[%s608 + $0x30] sm:$0xf] %v1076
        %1093 = vst [vmem:[%s608 + $0x34] sm:$0xf] %v1077
        %1094 = vst [vmem:[%s608 + $0x38] sm:$0xf] %v1078
        %1095 = vst [vmem:[%s608 + $0x3c] sm:$0xf] %v1079
        %v1096 = vpack.c.bf16 %v931, %v931
        %v1097 = vpack.c.bf16 %v932, %v932
        %v1098 = vpack.c.bf16 %v933, %v933
        %v1099 = vpack.c.bf16 %v934, %v934
        %v1100 = vpack.c.bf16 %v935, %v935
        %v1101 = vpack.c.bf16 %v936, %v936
        %v1102 = vpack.c.bf16 %v937, %v937
        %v1103 = vpack.c.bf16 %v938, %v938
        %v1104 = vpack.c.bf16 %v939, %v939
        %v1105 = vpack.c.bf16 %v940, %v940
        %v1106 = vpack.c.bf16 %v941, %v941
        %v1107 = vpack.c.bf16 %v942, %v942
        %v1108 = vpack.c.bf16 %v943, %v943
        %v1109 = vpack.c.bf16 %v944, %v944
        %v1110 = vpack.c.bf16 %v945, %v945
        %v1111 = vpack.c.bf16 %v946, %v946
        %1112 = vst [vmem:[%s614] sm:$0xf] %v1096
        %1113 = vst [vmem:[%s614 + $0x4] sm:$0xf] %v1097
        %1114 = vst [vmem:[%s614 + $0x8] sm:$0xf] %v1098
        %1115 = vst [vmem:[%s614 + $0xc] sm:$0xf] %v1099
        %1116 = vst [vmem:[%s614 + $0x10] sm:$0xf] %v1100
        %1117 = vst [vmem:[%s614 + $0x14] sm:$0xf] %v1101
        %1118 = vst [vmem:[%s614 + $0x18] sm:$0xf] %v1102
        %1119 = vst [vmem:[%s614 + $0x1c] sm:$0xf] %v1103
        %1120 = vst [vmem:[%s614 + $0x20] sm:$0xf] %v1104
        %1121 = vst [vmem:[%s614 + $0x24] sm:$0xf] %v1105
        %1122 = vst [vmem:[%s614 + $0x28] sm:$0xf] %v1106
        %1123 = vst [vmem:[%s614 + $0x2c] sm:$0xf] %v1107
        %1124 = vst [vmem:[%s614 + $0x30] sm:$0xf] %v1108
        %1125 = vst [vmem:[%s614 + $0x34] sm:$0xf] %v1109
        %1126 = vst [vmem:[%s614 + $0x38] sm:$0xf] %v1110
        %1127 = vst [vmem:[%s614 + $0x3c] sm:$0xf] %v1111
        %1128 = vst [vmem:[%s620] sm:$0xff] %v985
        %1129 = vst [vmem:[%s620 + $0x8] sm:$0xff] %v988
        %1130 = vst [vmem:[%s620 + $0x10] sm:$0xff] %v991
        %1131 = vst [vmem:[%s620 + $0x18] sm:$0xff] %v994
        %1132 = vst [vmem:[%s620 + $0x20] sm:$0xff] %v997
        %1133 = vst [vmem:[%s620 + $0x28] sm:$0xff] %v1000
        %1134 = vst [vmem:[%s620 + $0x30] sm:$0xff] %v1003
        %1135 = vst [vmem:[%s620 + $0x38] sm:$0xff] %v1006
        %1136 = vst [vmem:[%s620 + $0x40] sm:$0xff] %v1009
        %1137 = vst [vmem:[%s620 + $0x48] sm:$0xff] %v1012
        %1138 = vst [vmem:[%s620 + $0x50] sm:$0xff] %v1015
        %1139 = vst [vmem:[%s620 + $0x58] sm:$0xff] %v1018
        %1140 = vst [vmem:[%s620 + $0x60] sm:$0xff] %v1021
        %1141 = vst [vmem:[%s620 + $0x68] sm:$0xff] %v1024
        %1142 = vst [vmem:[%s620 + $0x70] sm:$0xff] %v1027
        %1143 = vst [vmem:[%s620 + $0x78] sm:$0xff] %v1030
        %v1144 = vld [vmem:[#allocation10] sm:$0xff]
        %v1145 = vld [vmem:[#allocation10 + $0x8] sm:$0xff]
        %v1146 = vld [vmem:[#allocation10 + $0x10] sm:$0xff]
        %v1147 = vld [vmem:[#allocation10 + $0x18] sm:$0xff]
        %v1148 = vld [vmem:[#allocation10 + $0x20] sm:$0xff]
        %v1149 = vld [vmem:[#allocation10 + $0x28] sm:$0xff]
        %v1150 = vld [vmem:[#allocation10 + $0x30] sm:$0xff]
        %v1151 = vld [vmem:[#allocation10 + $0x38] sm:$0xff]
        %v1152 = vld [vmem:[#allocation10 + $0x40] sm:$0xff]
        %v1153 = vld [vmem:[#allocation10 + $0x48] sm:$0xff]
        %v1154 = vld [vmem:[#allocation10 + $0x50] sm:$0xff]
        %v1155 = vld [vmem:[#allocation10 + $0x58] sm:$0xff]
        %v1156 = vld [vmem:[#allocation10 + $0x60] sm:$0xff]
        %v1157 = vld [vmem:[#allocation10 + $0x68] sm:$0xff]
        %v1158 = vld [vmem:[#allocation10 + $0x70] sm:$0xff]
        %v1159 = vld [vmem:[#allocation10 + $0x78] sm:$0xff]
        %1160 = vmatpush.msra.mxu0 %v1159
        %1161 = vmatpush.msra.mxu0 %v1158
        %1162 = vmatpush.msra.mxu0 %v1157
        %1163 = vmatpush.msra.mxu0 %v1156
        %1164 = vmatpush.msra.mxu0 %v1155
        %1165 = vmatpush.msra.mxu0 %v1154
        %1166 = vmatpush.msra.mxu0 %v1153
        %1167 = vmatpush.msra.mxu0 %v1152
        %1168 = vmatpush.msra.mxu0 %v1151
        %1169 = vmatpush.msra.mxu0 %v1150
        %1170 = vmatpush.msra.mxu0 %v1149
        %1171 = vmatpush.msra.mxu0 %v1148
        %1172 = vmatpush.msra.mxu0 %v1147
        %1173 = vmatpush.msra.mxu0 %v1146
        %1174 = vmatpush.msra.mxu0 %v1145
        %1175 = vmatpush.msra.mxu0 %v1144
        %1176 = vmatmul.f32.gmra.mxu0 %v628
        %v1177 = vpop.f32.mrf.mxu0
        %v1178 = vadd.f32 0.0, %v1177
        %1179 = vmatmul.f32.gmra.mxu0 %v629
        %v1180 = vpop.f32.mrf.mxu0
        %v1181 = vadd.f32 0.0, %v1180
        %1182 = vmatmul.f32.gmra.mxu0 %v630
        %v1183 = vpop.f32.mrf.mxu0
        %v1184 = vadd.f32 0.0, %v1183
        %1185 = vmatmul.f32.gmra.mxu0 %v631
        %v1186 = vpop.f32.mrf.mxu0
        %v1187 = vadd.f32 0.0, %v1186
        %1188 = vmatmul.f32.gmra.mxu0 %v632
        %v1189 = vpop.f32.mrf.mxu0
        %v1190 = vadd.f32 0.0, %v1189
        %1191 = vmatmul.f32.gmra.mxu0 %v633
        %v1192 = vpop.f32.mrf.mxu0
        %v1193 = vadd.f32 0.0, %v1192
        %1194 = vmatmul.f32.gmra.mxu0 %v634
        %v1195 = vpop.f32.mrf.mxu0
        %v1196 = vadd.f32 0.0, %v1195
        %1197 = vmatmul.f32.gmra.mxu0 %v635
        %v1198 = vpop.f32.mrf.mxu0
        %v1199 = vadd.f32 0.0, %v1198
        %1200 = vmatmul.f32.gmra.mxu0 %v636
        %v1201 = vpop.f32.mrf.mxu0
        %v1202 = vadd.f32 0.0, %v1201
        %1203 = vmatmul.f32.gmra.mxu0 %v637
        %v1204 = vpop.f32.mrf.mxu0
        %v1205 = vadd.f32 0.0, %v1204
        %1206 = vmatmul.f32.gmra.mxu0 %v638
        %v1207 = vpop.f32.mrf.mxu0
        %v1208 = vadd.f32 0.0, %v1207
        %1209 = vmatmul.f32.gmra.mxu0 %v639
        %v1210 = vpop.f32.mrf.mxu0
        %v1211 = vadd.f32 0.0, %v1210
        %1212 = vmatmul.f32.gmra.mxu0 %v640
        %v1213 = vpop.f32.mrf.mxu0
        %v1214 = vadd.f32 0.0, %v1213
        %1215 = vmatmul.f32.gmra.mxu0 %v641
        %v1216 = vpop.f32.mrf.mxu0
        %v1217 = vadd.f32 0.0, %v1216
        %1218 = vmatmul.f32.gmra.mxu0 %v642
        %v1219 = vpop.f32.mrf.mxu0
        %v1220 = vadd.f32 0.0, %v1219
        %1221 = vmatmul.f32.gmra.mxu0 %v643
        %v1222 = vpop.f32.mrf.mxu0
        %v1223 = vadd.f32 0.0, %v1222
        %1224 = vdwg.mxu0
        %v1225 = vpack.c.bf16 %v1178, %v1178
        %v1226 = vpack.c.bf16 %v1181, %v1181
        %v1227 = vpack.c.bf16 %v1184, %v1184
        %v1228 = vpack.c.bf16 %v1187, %v1187
        %v1229 = vpack.c.bf16 %v1190, %v1190
        %v1230 = vpack.c.bf16 %v1193, %v1193
        %v1231 = vpack.c.bf16 %v1196, %v1196
        %v1232 = vpack.c.bf16 %v1199, %v1199
        %v1233 = vpack.c.bf16 %v1202, %v1202
        %v1234 = vpack.c.bf16 %v1205, %v1205
        %v1235 = vpack.c.bf16 %v1208, %v1208
        %v1236 = vpack.c.bf16 %v1211, %v1211
        %v1237 = vpack.c.bf16 %v1214, %v1214
        %v1238 = vpack.c.bf16 %v1217, %v1217
        %v1239 = vpack.c.bf16 %v1220, %v1220
        %v1240 = vpack.c.bf16 %v1223, %v1223
        %1241 = vst [vmem:[%s626] sm:$0xf] %v1225
        %1242 = vst [vmem:[%s626 + $0x4] sm:$0xf] %v1226
        %1243 = vst [vmem:[%s626 + $0x8] sm:$0xf] %v1227
        %1244 = vst [vmem:[%s626 + $0xc] sm:$0xf] %v1228
        %1245 = vst [vmem:[%s626 + $0x10] sm:$0xf] %v1229
        %1246 = vst [vmem:[%s626 + $0x14] sm:$0xf] %v1230
        %1247 = vst [vmem:[%s626 + $0x18] sm:$0xf] %v1231
        %1248 = vst [vmem:[%s626 + $0x1c] sm:$0xf] %v1232
        %1249 = vst [vmem:[%s626 + $0x20] sm:$0xf] %v1233
        %1250 = vst [vmem:[%s626 + $0x24] sm:$0xf] %v1234
        %1251 = vst [vmem:[%s626 + $0x28] sm:$0xf] %v1235
        %1252 = vst [vmem:[%s626 + $0x2c] sm:$0xf] %v1236
        %1253 = vst [vmem:[%s626 + $0x30] sm:$0xf] %v1237
        %1254 = vst [vmem:[%s626 + $0x34] sm:$0xf] %v1238
        %1255 = vst [vmem:[%s626 + $0x38] sm:$0xf] %v1239
        %1256 = vst [vmem:[%s626 + $0x3c] sm:$0xf] %v1240
        %s1257 = smul.u32 16, %s32
        %p1258 = scmp.lt.s32.totalorder %s1257, 31
        %s1259 = scalar_select %p1258, %s1257, 31
        %s1260 = smul.addr %s1259, 4
        %s1261 = scalar_lea.vmem %s10, %s1260
        %s1262 = smul.u32 16, %s32
        %p1263 = scmp.lt.s32.totalorder %s1262, 31
        %s1264 = scalar_select %p1263, %s1262, 31
        %s1265 = smul.addr %s1264, 4
        %s1266 = scalar_lea.vmem %s11, %s1265
        %s1267 = smul.u32 16, %s32
        %p1268 = scmp.lt.s32.totalorder %s1267, 31
        %s1269 = scalar_select %p1268, %s1267, 31
        %s1270 = smul.addr %s1269, 4
        %s1271 = scalar_lea.vmem %s12, %s1270
        %s1272 = smul.u32 16, %s32
        %p1273 = scmp.lt.s32.totalorder %s1272, 31
        %s1274 = scalar_select %p1273, %s1272, 31
        %s1275 = smul.addr %s1274, 8
        %s1276 = scalar_lea.vmem %s13, %s1275
        %s1277 = smul.u32 16, %s32
        %p1278 = scmp.lt.s32.totalorder %s1277, 31
        %s1279 = scalar_select %p1278, %s1277, 31
        %s1280 = smul.addr %s1279, 4
        %s1281 = scalar_lea.vmem %s14, %s1280
        // Predicated region
        $region85: #{sdcn_forward.7} parent=59 // pred_check
          %p1282 = pneg %p265
        $region86: #{sdcn_forward.7} parent=59 // pred_check_branch
          %1284 = sbr.rel (%p1282) target = $region88
        $region87: #{sdcn_forward.7} parent=59 // pred_region
          %s1285 = smul.u32 16, %s32
        $region88: #{sdcn_forward.7} parent=59 // pred_fallthru
          _
        // Predicated region
        $region89: #{sdcn_forward.7} parent=59 // pred_check
          %p1286 = pneg %p291
        $region90: #{sdcn_forward.7} parent=59 // pred_check_branch
          %1288 = sbr.rel (%p1286) target = $region92
        $region91: #{sdcn_forward.7} parent=59 // pred_region
          %s1289 = smul.u32 16, %s32
        $region92: #{sdcn_forward.7} parent=59 // pred_fallthru
          _
        // Predicated region
        $region93: #{sdcn_forward.7} parent=59 // pred_check
          %p1290 = pneg %p317
        $region94: #{sdcn_forward.7} parent=59 // pred_check_branch
          %1292 = sbr.rel (%p1290) target = $region96
        $region95: #{sdcn_forward.7} parent=59 // pred_region
          %s1293 = smul.u32 16, %s32
        $region96: #{sdcn_forward.7} parent=59 // pred_fallthru
          _
        // Predicated region
        $region97: #{sdcn_forward.7} parent=59 // pred_check
          %p1294 = pneg %p343
        $region98: #{sdcn_forward.7} parent=59 // pred_check_branch
          %1296 = sbr.rel (%p1294) target = $region100
        $region99: #{sdcn_forward.7} parent=59 // pred_region
          %s1297 = smul.u32 16, %s32
        $region100: #{sdcn_forward.7} parent=59 // pred_fallthru
          _
        // Predicated region
        $region101: #{sdcn_forward.7} parent=59 // pred_check
          %p1298 = pneg %p369
        $region102: #{sdcn_forward.7} parent=59 // pred_check_branch
          %1300 = sbr.rel (%p1298) target = $region104
        $region103: #{sdcn_forward.7} parent=59 // pred_region
          %s1301 = smul.u32 16, %s32
        $region104: #{sdcn_forward.7} parent=59 // pred_fallthru
          _
      $region60: #{sdcn_forward.7} parent=5 // pred_fallthru
        _
      %p1302 = scmp.le.s32.totalorder 2, %s27
      // Predicated region
      $region105: #{sdcn_forward.7} parent=5 // pred_check
        %p1303 = pneg %p1302
      $region106: #{sdcn_forward.7} parent=5 // pred_check_branch
        %1305 = sbr.rel (%p1303) target = $region108
      $region107: #{sdcn_forward.7} parent=5 // pred_region
        %s1306 = ssub.s32 %s27, 2
        // Predicated region
        $region109: #{sdcn_forward.7} parent=107 // pred_check
          %p1307 = pneg %p271
        $region110: #{sdcn_forward.7} parent=107 // pred_check_branch
          %1309 = sbr.rel (%p1307) target = $region112
        $region111: #{sdcn_forward.7} parent=107 // pred_region
          %s1310 = smul.u32 16, %s33
          %p1311 = scmp.lt.s32.totalorder %s1310, 31
          %s1312 = scalar_select %p1311, %s1310, 31
          %s1313 = smul.addr %s1312, 4
          %s1314 = scalar_lea.vmem %s10, %s1313
        $region112: #{sdcn_forward.7} parent=107 // pred_fallthru
          _
        // Predicated region
        $region113: #{sdcn_forward.7} parent=107 // pred_check
          %p1315 = pneg %p297
        $region114: #{sdcn_forward.7} parent=107 // pred_check_branch
          %1317 = sbr.rel (%p1315) target = $region116
        $region115: #{sdcn_forward.7} parent=107 // pred_region
          %s1318 = smul.u32 16, %s33
          %p1319 = scmp.lt.s32.totalorder %s1318, 31
          %s1320 = scalar_select %p1319, %s1318, 31
          %s1321 = smul.addr %s1320, 4
          %s1322 = scalar_lea.vmem %s11, %s1321
        $region116: #{sdcn_forward.7} parent=107 // pred_fallthru
          _
        // Predicated region
        $region117: #{sdcn_forward.7} parent=107 // pred_check
          %p1323 = pneg %p323
        $region118: #{sdcn_forward.7} parent=107 // pred_check_branch
          %1325 = sbr.rel (%p1323) target = $region120
        $region119: #{sdcn_forward.7} parent=107 // pred_region
          %s1326 = smul.u32 16, %s33
          %p1327 = scmp.lt.s32.totalorder %s1326, 31
          %s1328 = scalar_select %p1327, %s1326, 31
          %s1329 = smul.addr %s1328, 4
          %s1330 = scalar_lea.vmem %s12, %s1329
        $region120: #{sdcn_forward.7} parent=107 // pred_fallthru
          _
        // Predicated region
        $region121: #{sdcn_forward.7} parent=107 // pred_check
          %p1331 = pneg %p349
        $region122: #{sdcn_forward.7} parent=107 // pred_check_branch
          %1333 = sbr.rel (%p1331) target = $region124
        $region123: #{sdcn_forward.7} parent=107 // pred_region
          %s1334 = smul.u32 16, %s33
          %p1335 = scmp.lt.s32.totalorder %s1334, 31
          %s1336 = scalar_select %p1335, %s1334, 31
          %s1337 = smul.addr %s1336, 8
          %s1338 = scalar_lea.vmem %s13, %s1337
        $region124: #{sdcn_forward.7} parent=107 // pred_fallthru
          _
        // Predicated region
        $region125: #{sdcn_forward.7} parent=107 // pred_check
          %p1339 = pneg %p375
        $region126: #{sdcn_forward.7} parent=107 // pred_check_branch
          %1341 = sbr.rel (%p1339) target = $region128
        $region127: #{sdcn_forward.7} parent=107 // pred_region
          %s1342 = smul.u32 16, %s33
          %p1343 = scmp.lt.s32.totalorder %s1342, 31
          %s1344 = scalar_select %p1343, %s1342, 31
          %s1345 = smul.addr %s1344, 4
          %s1346 = scalar_lea.vmem %s14, %s1345
        $region128: #{sdcn_forward.7} parent=107 // pred_fallthru
          _
      $region108: #{sdcn_forward.7} parent=5 // pred_fallthru
        _
    $region6: #{sdcn_forward.7} parent=1 // loop_footer
      %s31 = sadd.s32 1, %s27
    $region7: #{sdcn_forward.7} parent=1 // loop_footer_branch
      %26 = sbr.rel target = $region3
    $region8: #{sdcn_forward.7} parent=1 // loop_exit
      _
    %1347 = vsyncpa [#allocation3], 1
    %s1348 = scalar_lea.sflag [#allocation3], 1
    %1349 = vsyncpa %s1348, 1
    %1350 = vsyncpa [#allocation5], 1
    %1351 = vsyncpa [#allocation8], 1
    %1352 = vsyncpa [#allocation11], 1

// kernel: sdcn_forward.13
$region0: #{sdcn_forward.13}
  #allocation0 [shape = 'u32[]', space=smem, size = 0x4, offset = 0x4, fixed_abs, tag = 'smem constant byte address 0x4 - core index']
  #allocation1 [shape = 'u32[72,128]{1,0:T(1,128)}', space=vmem, size = 0x9000, scoped, tag = 'internal scratch']
  %s0 = inlined_call_operand.hbm [shape: bf16[256,256], index: 0, kind: input, shape index: {}]
  %s1 = inlined_call_operand.vmem [shape: bf16[256,128], index: 1, kind: input, shape index: {}]
  %s2 = inlined_call_operand.vmem [shape: f32[256,128], index: 2, kind: input, shape index: {}]
  %s3 = inlined_call_operand.hbm [shape: f32[128,128], index: 3, kind: input, shape index: {}]
  %s4 = inlined_call_operand.vmem [shape: f32[256,128], index: 4, kind: output, shape index: {0}]
  %s5 = inlined_call_operand.vmem [shape: f32[256,128], index: 5, kind: output, shape index: {1}]
  %6 = xla_tuple %s4, %s5
  %s7 = sld [smem:[#allocation0]]
  $region65: #{sdcn_forward.13} parent=0
    _
  %s9 = ssub.s32 1, %s7
  %s10 = scalar_select 0, %s9, %s7
  $region1: #{sdcn_forward.13} parent=0
    #allocation2 [shape = 'u8[131072]{0}', space=vmem, size = 0x20000, scoped, tag = 'input window, operand 0']
    #allocation3 [shape = 's32[2]{0}', space=sflag, size = 0x8, scoped, tag = 'scoped memory for sdcn_forward.13']
    #allocation4 [shape = 'u8[65536]{0}', space=vmem, size = 0x10000, scoped, tag = 'input window, operand 3, single buffered']
    #allocation5 [shape = 's32[1]{0}', space=sflag, size = 0x4, scoped, tag = 'scoped memory for sdcn_forward.13']
    %11 = vsyncpa [#allocation3], 0
    %s12 = scalar_lea.sflag [#allocation3], 1
    %13 = vsyncpa %s12, 0
    %14 = vsyncpa [#allocation5], 0
    loop: start=0, step=1, limit=4
    $region2: #{sdcn_forward.13} parent=1 // loop_pre_header
      _
    $region3: #{sdcn_forward.13} parent=1 // loop_header
      %s16 = sphi 0, %s20
      %p17 = scmp.ge.s32.totalorder %s16, 4
      %s26 = sphi 0, %s28
      %s29 = sphi 0, %s26
      %s30 = sphi 0, %s29
      %s46 = sphi 0, %s30
      %s50 = sphi 0, %s50
      %s52 = sphi 0, %s50
      %s53 = sphi 0, %s52
      %s67 = sphi 0, %s53
      %s73 = sphi 0, %s75
      %s76 = sphi 0, %s73
      %s77 = sphi 0, %s76
      %s93 = sphi 0, %s77
      %s97 = sphi 0, %s97
      %s99 = sphi 0, %s97
      %s100 = sphi 0, %s99
      %s114 = sphi 0, %s100
      %s120 = sphi 0, %s122
      %s123 = sphi 0, %s120
      %s124 = sphi 0, %s123
      %s140 = sphi 0, %s124
      %s146 = sphi 0, %s148
      %s149 = sphi 0, %s146
      %s150 = sphi 0, %s149
      %s166 = sphi 0, %s150
    $region4: #{sdcn_forward.13} parent=1 // loop_header_branch
      %19 = sbr.rel (%p17) target = $region8
    $region5: #{sdcn_forward.13} parent=1 // loop_body
      %s21 = ssub.s32 %s16, 1
      %s22 = ssub.s32 %s16, 2
      %s23 = sadd.s32 %s16, 1
      %s24 = ssub.s32 %s16, %s23
      %p25 = scmp.eq.s32.totalorder %s24, 0
      %s27 = sadd.s32 %s26, 1
      %s28 = scalar_select %p25, %s26, %s27
      %p31 = pneg %p25
      %p32 = scmp.eq.s32.totalorder %s16, 1
      %p33 = por %p31, %p32
      %p34 = scmp.ne.s32.totalorder %s26, %s29
      %p35 = scmp.eq.s32.totalorder %s16, 0
      %p36 = por %p34, %p35
      %p37 = scmp.ne.s32.totalorder %s26, %s29
      %p38 = scmp.eq.s32.totalorder %s21, 1
      %p39 = por %p37, %p38
      %p40 = scmp.ne.s32.totalorder %s29, %s30
      %p41 = scmp.eq.s32.totalorder %s21, 0
      %p42 = por %p40, %p41
      %p43 = scmp.ne.s32.totalorder %s29, %s30
      %p44 = scmp.eq.s32.totalorder %s22, 1
      %p45 = por %p43, %p44
      %p47 = scmp.ne.s32.totalorder %s30, %s46
      %p48 = scmp.eq.s32.totalorder %s22, 0
      %p49 = por %p47, %p48
      %s51 = sadd.s32 %s50, 1
      %p54 = scmp.eq.s32.totalorder %s16, 1
      %p55 = scmp.ne.s32.totalorder %s50, %s52
      %p56 = scmp.eq.s32.totalorder %s16, 0
      %p57 = por %p55, %p56
      %p58 = scmp.ne.s32.totalorder %s50, %s52
      %p59 = scmp.eq.s32.totalorder %s21, 1
      %p60 = por %p58, %p59
      %p61 = scmp.ne.s32.totalorder %s52, %s53
      %p62 = scmp.eq.s32.totalorder %s21, 0
      %p63 = por %p61, %p62
      %p64 = scmp.ne.s32.totalorder %s52, %s53
      %p65 = scmp.eq.s32.totalorder %s22, 1
      %p66 = por %p64, %p65
      %p68 = scmp.ne.s32.totalorder %s53, %s67
      %p69 = scmp.eq.s32.totalorder %s22, 0
      %p70 = por %p68, %p69
      %s71 = ssub.s32 %s16, %s23
      %p72 = scmp.eq.s32.totalorder %s71, 0
      %s74 = sadd.s32 %s73, 1
      %s75 = scalar_select %p72, %s73, %s74
      %p78 = pneg %p72
      %p79 = scmp.eq.s32.totalorder %s16, 1
      %p80 = por %p78, %p79
      %p81 = scmp.ne.s32.totalorder %s73, %s76
      %p82 = scmp.eq.s32.totalorder %s16, 0
      %p83 = por %p81, %p82
      %p84 = scmp.ne.s32.totalorder %s73, %s76
      %p85 = scmp.eq.s32.totalorder %s21, 1
      %p86 = por %p84, %p85
      %p87 = scmp.ne.s32.totalorder %s76, %s77
      %p88 = scmp.eq.s32.totalorder %s21, 0
      %p89 = por %p87, %p88
      %p90 = scmp.ne.s32.totalorder %s76, %s77
      %p91 = scmp.eq.s32.totalorder %s22, 1
      %p92 = por %p90, %p91
      %p94 = scmp.ne.s32.totalorder %s77, %s93
      %p95 = scmp.eq.s32.totalorder %s22, 0
      %p96 = por %p94, %p95
      %s98 = sadd.s32 %s97, 1
      %p101 = scmp.eq.s32.totalorder %s16, 1
      %p102 = scmp.ne.s32.totalorder %s97, %s99
      %p103 = scmp.eq.s32.totalorder %s16, 0
      %p104 = por %p102, %p103
      %p105 = scmp.ne.s32.totalorder %s97, %s99
      %p106 = scmp.eq.s32.totalorder %s21, 1
      %p107 = por %p105, %p106
      %p108 = scmp.ne.s32.totalorder %s99, %s100
      %p109 = scmp.eq.s32.totalorder %s21, 0
      %p110 = por %p108, %p109
      %p111 = scmp.ne.s32.totalorder %s99, %s100
      %p112 = scmp.eq.s32.totalorder %s22, 1
      %p113 = por %p111, %p112
      %p115 = scmp.ne.s32.totalorder %s100, %s114
      %p116 = scmp.eq.s32.totalorder %s22, 0
      %p117 = por %p115, %p116
      %s118 = ssub.s32 %s16, %s23
      %p119 = scmp.eq.s32.totalorder %s118, 0
      %s121 = sadd.s32 %s120, 1
      %s122 = scalar_select %p119, %s120, %s121
      %p125 = pneg %p119
      %p126 = scmp.eq.s32.totalorder %s16, 1
      %p127 = por %p125, %p126
      %p128 = scmp.ne.s32.totalorder %s120, %s123
      %p129 = scmp.eq.s32.totalorder %s16, 0
      %p130 = por %p128, %p129
      %p131 = scmp.ne.s32.totalorder %s120, %s123
      %p132 = scmp.eq.s32.totalorder %s21, 1
      %p133 = por %p131, %p132
      %p134 = scmp.ne.s32.totalorder %s123, %s124
      %p135 = scmp.eq.s32.totalorder %s21, 0
      %p136 = por %p134, %p135
      %p137 = scmp.ne.s32.totalorder %s123, %s124
      %p138 = scmp.eq.s32.totalorder %s22, 1
      %p139 = por %p137, %p138
      %p141 = scmp.ne.s32.totalorder %s124, %s140
      %p142 = scmp.eq.s32.totalorder %s22, 0
      %p143 = por %p141, %p142
      %s144 = ssub.s32 %s16, %s23
      %p145 = scmp.eq.s32.totalorder %s144, 0
      %s147 = sadd.s32 %s146, 1
      %s148 = scalar_select %p145, %s146, %s147
      %p151 = pneg %p145
      %p152 = scmp.eq.s32.totalorder %s16, 1
      %p153 = por %p151, %p152
      %p154 = scmp.ne.s32.totalorder %s146, %s149
      %p155 = scmp.eq.s32.totalorder %s16, 0
      %p156 = por %p154, %p155
      %p157 = scmp.ne.s32.totalorder %s146, %s149
      %p158 = scmp.eq.s32.totalorder %s21, 1
      %p159 = por %p157, %p158
      %p160 = scmp.ne.s32.totalorder %s149, %s150
      %p161 = scmp.eq.s32.totalorder %s21, 0
      %p162 = por %p160, %p161
      %p163 = scmp.ne.s32.totalorder %s149, %s150
      %p164 = scmp.eq.s32.totalorder %s22, 1
      %p165 = por %p163, %p164
      %p167 = scmp.ne.s32.totalorder %s150, %s166
      %p168 = scmp.eq.s32.totalorder %s22, 0
      %p169 = por %p167, %p168
      %p170 = scmp.le.s32.totalorder 1, %s16
      %p171 = scmp.lt.s32.totalorder %s16, 3
      %p172 = pnand %p170, %p171
      %p173 = pneg %p172
      // Predicated region
      $region9: #{sdcn_forward.13} parent=5 // pred_check
        _
      $region10: #{sdcn_forward.13} parent=5 // pred_check_branch
        %175 = sbr.rel (%p172) target = $region12
      $region11: #{sdcn_forward.13} parent=5 // pred_region
        %s176 = ssub.s32 %s16, 1
        // Predicated region
        $region13: #{sdcn_forward.13} parent=11 // pred_check
          %p177 = pneg %p63
        $region14: #{sdcn_forward.13} parent=11 // pred_check_branch
          %179 = sbr.rel (%p177) target = $region16
        $region15: #{sdcn_forward.13} parent=11 // pred_region
          _
        $region16: #{sdcn_forward.13} parent=11 // pred_fallthru
          _
        // Predicated region
        $region17: #{sdcn_forward.13} parent=11 // pred_check
          %p180 = pneg %p110
        $region18: #{sdcn_forward.13} parent=11 // pred_check_branch
          %182 = sbr.rel (%p180) target = $region20
        $region19: #{sdcn_forward.13} parent=11 // pred_region
          %184 = vsyncadd [#allocation5], 0
          %s185 = sshll.u32 %s3, 4
          %s186 = int_to_ptr.hbm [resolvable:$true] %s185
          %s187 = sshll.u32 [#allocation4], 4
          %s188 = int_to_ptr.vmem [resolvable:$true] %s187
          %193 = dma.hbm_to_vmem [thread:$0]  %s186, 2048, %s188, [#allocation5], 128, 128, 8
        $region20: #{sdcn_forward.13} parent=11 // pred_fallthru
          _
      $region12: #{sdcn_forward.13} parent=5 // pred_fallthru
        _
      %p194 = scmp.lt.s32.totalorder %s16, 2
      // Predicated region
      $region21: #{sdcn_forward.13} parent=5 // pred_check
        %p195 = pneg %p194
      $region22: #{sdcn_forward.13} parent=5 // pred_check_branch
        %197 = sbr.rel (%p195) target = $region24
      $region23: #{sdcn_forward.13} parent=5 // pred_region
        // Predicated region
        $region25: #{sdcn_forward.13} parent=23 // pred_check
          %p198 = pneg %p36
        $region26: #{sdcn_forward.13} parent=23 // pred_check_branch
          %200 = sbr.rel (%p198) target = $region28
        $region27: #{sdcn_forward.13} parent=23 // pred_region
          %s201 = sand.u32 %s26, 1
          %s202 = scalar_lea.sflag [#allocation3], %s201
          %s203 = sand.u32 %s26, 1
          %s204 = smul.addr %s203, 128
          %s205 = scalar_lea.vmem [#allocation2], %s204
          %s206 = smul.u32 16, %s16
          %208 = vsyncadd %s202, 0
          %s209 = smul.addr %s206, 2
          %s210 = smul.addr %s209, 4
          %s211 = scalar_lea.hbm %s0, %s210
          %s212 = sshll.u32 %s211, 4
          %s213 = int_to_ptr.hbm [resolvable:$true] %s212
          %s214 = sshll.u32 %s205, 4
          %s215 = int_to_ptr.vmem [resolvable:$true] %s214
          %220 = dma.hbm_to_vmem [thread:$0]  %s213, 2048, %s215, %s202, 128, 128, 8
        $region28: #{sdcn_forward.13} parent=23 // pred_fallthru
          _
        // Predicated region
        $region29: #{sdcn_forward.13} parent=23 // pred_check
          %p221 = pneg %p83
        $region30: #{sdcn_forward.13} parent=23 // pred_check_branch
          %223 = sbr.rel (%p221) target = $region32
        $region31: #{sdcn_forward.13} parent=23 // pred_region
          %s224 = smul.u32 16, %s16
          %p225 = scmp.lt.s32.totalorder %s224, 31
          %s226 = scalar_select %p225, %s224, 31
          %s227 = smul.addr %s226, 8
          %s228 = scalar_lea.vmem %s2, %s227
          %s229 = smul.u32 16, %s16
        $region32: #{sdcn_forward.13} parent=23 // pred_fallthru
          _
      $region24: #{sdcn_forward.13} parent=5 // pred_fallthru
        _
      %p230 = scmp.le.s32.totalorder 1, %s16
      %p231 = scmp.lt.s32.totalorder %s16, 3
      %p232 = pnand %p230, %p231
      %p233 = pneg %p232
      // Predicated region
      $region33: #{sdcn_forward.13} parent=5 // pred_check
        _
      $region34: #{sdcn_forward.13} parent=5 // pred_check_branch
        %235 = sbr.rel (%p232) target = $region36
      $region35: #{sdcn_forward.13} parent=5 // pred_region
        %s236 = ssub.s32 %s16, 1
        %s237 = sand.u32 %s29, 1
        %s238 = scalar_lea.sflag [#allocation3], %s237
        %s239 = sand.u32 %s29, 1
        %s240 = smul.addr %s239, 128
        %s241 = scalar_lea.vmem [#allocation2], %s240
        // Predicated region
        $region37: #{sdcn_forward.13} parent=35 // pred_check
          %p242 = pneg %p42
        $region38: #{sdcn_forward.13} parent=35 // pred_check_branch
          %244 = sbr.rel (%p242) target = $region40
        $region39: #{sdcn_forward.13} parent=35 // pred_region
          %246 = dma.done %s238, 2048
        $region40: #{sdcn_forward.13} parent=35 // pred_fallthru
          _
        // Predicated region
        $region41: #{sdcn_forward.13} parent=35 // pred_check
          %p247 = pneg %p110
        $region42: #{sdcn_forward.13} parent=35 // pred_check_branch
          %249 = sbr.rel (%p247) target = $region44
        $region43: #{sdcn_forward.13} parent=35 // pred_region
          %251 = dma.done [#allocation5], 2048
        $region44: #{sdcn_forward.13} parent=35 // pred_fallthru
          _
        %s252 = sand.u32 %s29, 1
        %s253 = scalar_lea.sflag [#allocation3], %s252
        %s254 = sand.u32 %s29, 1
        %s255 = smul.addr %s254, 128
        %s256 = scalar_lea.vmem [#allocation2], %s255
        %p257 = pneg %p42
        %p258 = pneg %p39
        %p259 = pneg %p63
        %p260 = pneg %p60
        %s261 = smul.u32 16, %s21
        %p262 = scmp.lt.s32.totalorder %s261, 31
        %s263 = scalar_select %p262, %s261, 31
        %s264 = smul.addr %s263, 8
        %s265 = scalar_lea.vmem %s2, %s264
        %p266 = pneg %p89
        %p267 = pneg %p86
        %p268 = pneg %p110
        %p269 = pneg %p107
        %p270 = pneg %p136
        %p271 = pneg %p133
        %s272 = smul.u32 16, %s21
        %p273 = scmp.lt.s32.totalorder %s272, 31
        %s274 = scalar_select %p273, %s272, 31
        %s275 = smul.addr %s274, 8
        %s276 = scalar_lea.vmem %s4, %s275
        %p277 = pneg %p162
        %p278 = pneg %p159
        %s279 = smul.u32 16, %s21
        %p280 = scmp.lt.s32.totalorder %s279, 31
        %s281 = scalar_select %p280, %s279, 31
        %s282 = smul.addr %s281, 8
        %s283 = scalar_lea.vmem %s5, %s282
        %s284 = smul.u32 16, %s21
        %s285 = smul.u32 16, %s21
        %p286 = scmp.lt.s32.totalorder %s285, 31
        %s287 = scalar_select %p286, %s285, 31
        %s288 = smul.addr %s287, 8
        %s289 = scalar_lea.vmem %s2, %s288
        %s290 = smul.u32 16, %s21
        %s291 = smul.u32 16, %s21
        %p292 = scmp.lt.s32.totalorder %s291, 31
        %s293 = scalar_select %p292, %s291, 31
        %s294 = smul.addr %s293, 8
        %s295 = scalar_lea.vmem %s4, %s294
        %s296 = smul.u32 16, %s21
        %s297 = smul.u32 16, %s21
        %p298 = scmp.lt.s32.totalorder %s297, 31
        %s299 = scalar_select %p298, %s297, 31
        %s300 = smul.addr %s299, 8
        %s301 = scalar_lea.vmem %s5, %s300
        %s302 = smul.u32 16, %s21
        %v303 = vld [vmem:[%s241] sm:$0xff]
        %v304 = vld [vmem:[%s241 + $0x8] sm:$0xff]
        %v305 = vld [vmem:[%s241 + $0x10] sm:$0xff]
        %v306 = vld [vmem:[%s241 + $0x18] sm:$0xff]
        %v307 = vld [vmem:[%s241 + $0x20] sm:$0xff]
        %v308 = vld [vmem:[%s241 + $0x28] sm:$0xff]
        %v309 = vld [vmem:[%s241 + $0x30] sm:$0xff]
        %v310 = vld [vmem:[%s241 + $0x38] sm:$0xff]
        %v311 = vld [vmem:[%s241 + $0x40] sm:$0xff]
        %v312 = vld [vmem:[%s241 + $0x48] sm:$0xff]
        %v313 = vld [vmem:[%s241 + $0x50] sm:$0xff]
        %v314 = vld [vmem:[%s241 + $0x58] sm:$0xff]
        %v315 = vld [vmem:[%s241 + $0x60] sm:$0xff]
        %v316 = vld [vmem:[%s241 + $0x68] sm:$0xff]
        %v317 = vld [vmem:[%s241 + $0x70] sm:$0xff]
        %v318 = vld [vmem:[%s241 + $0x78] sm:$0xff]
        %v319 = vld [vmem:[%s1] sm:$0xf]
        %v320 = vld [vmem:[%s1 + $0x4] sm:$0xf]
        %v321 = vld [vmem:[%s1 + $0x8] sm:$0xf]
        %v322 = vld [vmem:[%s1 + $0xc] sm:$0xf]
        %v323 = vld [vmem:[%s1 + $0x10] sm:$0xf]
        %v324 = vld [vmem:[%s1 + $0x14] sm:$0xf]
        %v325 = vld [vmem:[%s1 + $0x18] sm:$0xf]
        %v326 = vld [vmem:[%s1 + $0x1c] sm:$0xf]
        %v327 = vld [vmem:[%s1 + $0x20] sm:$0xf]
        %v328 = vld [vmem:[%s1 + $0x24] sm:$0xf]
        %v329 = vld [vmem:[%s1 + $0x28] sm:$0xf]
        %v330 = vld [vmem:[%s1 + $0x2c] sm:$0xf]
        %v331 = vld [vmem:[%s1 + $0x30] sm:$0xf]
        %v332 = vld [vmem:[%s1 + $0x34] sm:$0xf]
        %v333 = vld [vmem:[%s1 + $0x38] sm:$0xf]
        %v334 = vld [vmem:[%s1 + $0x3c] sm:$0xf]
        %v335 = vld [vmem:[%s1 + $0x40] sm:$0xf]
        %v336 = vld [vmem:[%s1 + $0x44] sm:$0xf]
        %v337 = vld [vmem:[%s1 + $0x48] sm:$0xf]
        %v338 = vld [vmem:[%s1 + $0x4c] sm:$0xf]
        %v339 = vld [vmem:[%s1 + $0x50] sm:$0xf]
        %v340 = vld [vmem:[%s1 + $0x54] sm:$0xf]
        %v341 = vld [vmem:[%s1 + $0x58] sm:$0xf]
        %v342 = vld [vmem:[%s1 + $0x5c] sm:$0xf]
        %v343 = vld [vmem:[%s1 + $0x60] sm:$0xf]
        %v344 = vld [vmem:[%s1 + $0x64] sm:$0xf]
        %v345 = vld [vmem:[%s1 + $0x68] sm:$0xf]
        %v346 = vld [vmem:[%s1 + $0x6c] sm:$0xf]
        %v347 = vld [vmem:[%s1 + $0x70] sm:$0xf]
        %v348 = vld [vmem:[%s1 + $0x74] sm:$0xf]
        %v349 = vld [vmem:[%s1 + $0x78] sm:$0xf]
        %v350 = vld [vmem:[%s1 + $0x7c] sm:$0xf]
        %v367 = vunpack.c.l.b16 %v303
        %v368 = vunpack.c.h.b16 %v303
        %v369 = vunpack.c.l.b16 %v304
        %v370 = vunpack.c.h.b16 %v304
        %v371 = vunpack.c.l.b16 %v305
        %v372 = vunpack.c.h.b16 %v305
        %v373 = vunpack.c.l.b16 %v306
        %v374 = vunpack.c.h.b16 %v306
        %v375 = vunpack.c.l.b16 %v307
        %v376 = vunpack.c.h.b16 %v307
        %v377 = vunpack.c.l.b16 %v308
        %v378 = vunpack.c.h.b16 %v308
        %v379 = vunpack.c.l.b16 %v309
        %v380 = vunpack.c.h.b16 %v309
        %v381 = vunpack.c.l.b16 %v310
        %v382 = vunpack.c.h.b16 %v310
        %v383 = vunpack.c.l.b16 %v311
        %v384 = vunpack.c.h.b16 %v311
        %v385 = vunpack.c.l.b16 %v312
        %v386 = vunpack.c.h.b16 %v312
        %v387 = vunpack.c.l.b16 %v313
        %v388 = vunpack.c.h.b16 %v313
        %v389 = vunpack.c.l.b16 %v314
        %v390 = vunpack.c.h.b16 %v314
        %v391 = vunpack.c.l.b16 %v315
        %v392 = vunpack.c.h.b16 %v315
        %v393 = vunpack.c.l.b16 %v316
        %v394 = vunpack.c.h.b16 %v316
        %v395 = vunpack.c.l.b16 %v317
        %v396 = vunpack.c.h.b16 %v317
        %v397 = vunpack.c.l.b16 %v318
        %v398 = vunpack.c.h.b16 %v318
        %v399 = vpack.c.b16 %v369, %v367
        %v400 = vpack.c.b16 %v370, %v368
        %v401 = vpack.c.b16 %v373, %v371
        %v402 = vpack.c.b16 %v374, %v372
        %v403 = vpack.c.b16 %v377, %v375
        %v404 = vpack.c.b16 %v378, %v376
        %v405 = vpack.c.b16 %v381, %v379
        %v406 = vpack.c.b16 %v382, %v380
        %v407 = vpack.c.b16 %v385, %v383
        %v408 = vpack.c.b16 %v386, %v384
        %v409 = vpack.c.b16 %v389, %v387
        %v410 = vpack.c.b16 %v390, %v388
        %v411 = vpack.c.b16 %v393, %v391
        %v412 = vpack.c.b16 %v394, %v392
        %v413 = vpack.c.b16 %v397, %v395
        %v414 = vpack.c.b16 %v398, %v396
        %v463 = vunpack.c.l.b16 %v319
        %v464 = vunpack.c.l.b16 %v320
        %v465 = vunpack.c.l.b16 %v321
        %v466 = vunpack.c.l.b16 %v322
        %v467 = vunpack.c.l.b16 %v323
        %v468 = vunpack.c.l.b16 %v324
        %v469 = vunpack.c.l.b16 %v325
        %v470 = vunpack.c.l.b16 %v326
        %v471 = vunpack.c.l.b16 %v327
        %v472 = vunpack.c.l.b16 %v328
        %v473 = vunpack.c.l.b16 %v329
        %v474 = vunpack.c.l.b16 %v330
        %v475 = vunpack.c.l.b16 %v331
        %v476 = vunpack.c.l.b16 %v332
        %v477 = vunpack.c.l.b16 %v333
        %v478 = vunpack.c.l.b16 %v334
        %v479 = vunpack.c.l.b16 %v335
        %v480 = vunpack.c.l.b16 %v336
        %v481 = vunpack.c.l.b16 %v337
        %v482 = vunpack.c.l.b16 %v338
        %v483 = vunpack.c.l.b16 %v339
        %v484 = vunpack.c.l.b16 %v340
        %v485 = vunpack.c.l.b16 %v341
        %v486 = vunpack.c.l.b16 %v342
        %v487 = vunpack.c.l.b16 %v343
        %v488 = vunpack.c.l.b16 %v344
        %v489 = vunpack.c.l.b16 %v345
        %v490 = vunpack.c.l.b16 %v346
        %v491 = vunpack.c.l.b16 %v347
        %v492 = vunpack.c.l.b16 %v348
        %v493 = vunpack.c.l.b16 %v349
        %v494 = vunpack.c.l.b16 %v350
        %v495 = vpack.c.b16 %v464, %v463
        %v496 = vpack.c.b16 %v466, %v465
        %v497 = vpack.c.b16 %v468, %v467
        %v498 = vpack.c.b16 %v470, %v469
        %v499 = vpack.c.b16 %v472, %v471
        %v500 = vpack.c.b16 %v474, %v473
        %v501 = vpack.c.b16 %v476, %v475
        %v502 = vpack.c.b16 %v478, %v477
        %v503 = vpack.c.b16 %v480, %v479
        %v504 = vpack.c.b16 %v482, %v481
        %v505 = vpack.c.b16 %v484, %v483
        %v506 = vpack.c.b16 %v486, %v485
        %v507 = vpack.c.b16 %v488, %v487
        %v508 = vpack.c.b16 %v490, %v489
        %v509 = vpack.c.b16 %v492, %v491
        %v510 = vpack.c.b16 %v494, %v493
        %527 = vmatpush.bf16.msra.mxu0 %v502
        %528 = vmatpush.bf16.msra.mxu0 %v501
        %529 = vmatpush.bf16.msra.mxu0 %v500
        %530 = vmatpush.bf16.msra.mxu0 %v499
        %531 = vmatpush.bf16.msra.mxu0 %v498
        %532 = vmatpush.bf16.msra.mxu0 %v497
        %533 = vmatpush.bf16.msra.mxu0 %v496
        %534 = vmatpush.bf16.msra.mxu0 %v495
        %535 = vmatmul.bf16.gmra.mxu0 %v399
        %v536 = vpop.f32.mrf.mxu0
        %v537 = vadd.f32 0.0, %v536
        %v538 = vpop.f32.mrf.mxu0
        %v539 = vadd.f32 0.0, %v538
        %540 = vmatmul.bf16.gmra.mxu0 %v401
        %v541 = vpop.f32.mrf.mxu0
        %v542 = vadd.f32 0.0, %v541
        %v543 = vpop.f32.mrf.mxu0
        %v544 = vadd.f32 0.0, %v543
        %545 = vmatmul.bf16.gmra.mxu0 %v403
        %v546 = vpop.f32.mrf.mxu0
        %v547 = vadd.f32 0.0, %v546
        %v548 = vpop.f32.mrf.mxu0
        %v549 = vadd.f32 0.0, %v548
        %550 = vmatmul.bf16.gmra.mxu0 %v405
        %v551 = vpop.f32.mrf.mxu0
        %v552 = vadd.f32 0.0, %v551
        %v553 = vpop.f32.mrf.mxu0
        %v554 = vadd.f32 0.0, %v553
        %555 = vmatmul.bf16.gmra.mxu0 %v407
        %v556 = vpop.f32.mrf.mxu0
        %v557 = vadd.f32 0.0, %v556
        %v558 = vpop.f32.mrf.mxu0
        %v559 = vadd.f32 0.0, %v558
        %560 = vmatmul.bf16.gmra.mxu0 %v409
        %v561 = vpop.f32.mrf.mxu0
        %v562 = vadd.f32 0.0, %v561
        %v563 = vpop.f32.mrf.mxu0
        %v564 = vadd.f32 0.0, %v563
        %565 = vmatmul.bf16.gmra.mxu0 %v411
        %v566 = vpop.f32.mrf.mxu0
        %v567 = vadd.f32 0.0, %v566
        %v568 = vpop.f32.mrf.mxu0
        %v569 = vadd.f32 0.0, %v568
        %570 = vmatmul.bf16.gmra.mxu0 %v413
        %v571 = vpop.f32.mrf.mxu0
        %v572 = vadd.f32 0.0, %v571
        %v573 = vpop.f32.mrf.mxu0
        %v574 = vadd.f32 0.0, %v573
        %575 = vdwg.mxu0
        %576 = vmatpush.bf16.msra.mxu0 %v510
        %577 = vmatpush.bf16.msra.mxu0 %v509
        %578 = vmatpush.bf16.msra.mxu0 %v508
        %579 = vmatpush.bf16.msra.mxu0 %v507
        %580 = vmatpush.bf16.msra.mxu0 %v506
        %581 = vmatpush.bf16.msra.mxu0 %v505
        %582 = vmatpush.bf16.msra.mxu0 %v504
        %583 = vmatpush.bf16.msra.mxu0 %v503
        %584 = vmatmul.bf16.gmra.mxu0 %v400
        %v585 = vpop.f32.mrf.mxu0
        %v586 = vadd.f32 %v537, %v585
        %v587 = vpop.f32.mrf.mxu0
        %v588 = vadd.f32 %v539, %v587
        %589 = vmatmul.bf16.gmra.mxu0 %v402
        %v590 = vpop.f32.mrf.mxu0
        %v591 = vadd.f32 %v542, %v590
        %v592 = vpop.f32.mrf.mxu0
        %v593 = vadd.f32 %v544, %v592
        %594 = vmatmul.bf16.gmra.mxu0 %v404
        %v595 = vpop.f32.mrf.mxu0
        %v596 = vadd.f32 %v547, %v595
        %v597 = vpop.f32.mrf.mxu0
        %v598 = vadd.f32 %v549, %v597
        %599 = vmatmul.bf16.gmra.mxu0 %v406
        %v600 = vpop.f32.mrf.mxu0
        %v601 = vadd.f32 %v552, %v600
        %v602 = vpop.f32.mrf.mxu0
        %v603 = vadd.f32 %v554, %v602
        %604 = vmatmul.bf16.gmra.mxu0 %v408
        %v605 = vpop.f32.mrf.mxu0
        %v606 = vadd.f32 %v557, %v605
        %v607 = vpop.f32.mrf.mxu0
        %v608 = vadd.f32 %v559, %v607
        %609 = vmatmul.bf16.gmra.mxu0 %v410
        %v610 = vpop.f32.mrf.mxu0
        %v611 = vadd.f32 %v562, %v610
        %v612 = vpop.f32.mrf.mxu0
        %v613 = vadd.f32 %v564, %v612
        %614 = vmatmul.bf16.gmra.mxu0 %v412
        %v615 = vpop.f32.mrf.mxu0
        %v616 = vadd.f32 %v567, %v615
        %v617 = vpop.f32.mrf.mxu0
        %v618 = vadd.f32 %v569, %v617
        %619 = vmatmul.bf16.gmra.mxu0 %v414
        %v620 = vpop.f32.mrf.mxu0
        %v621 = vadd.f32 %v572, %v620
        %v622 = vpop.f32.mrf.mxu0
        %v623 = vadd.f32 %v574, %v622
        %624 = vdwg.mxu0
        %v625 = vld [vmem:[%s289] sm:$0xff]
        %v626 = vld [vmem:[%s289 + $0x8] sm:$0xff]
        %v627 = vld [vmem:[%s289 + $0x10] sm:$0xff]
        %v628 = vld [vmem:[%s289 + $0x18] sm:$0xff]
        %v629 = vld [vmem:[%s289 + $0x20] sm:$0xff]
        %v630 = vld [vmem:[%s289 + $0x28] sm:$0xff]
        %v631 = vld [vmem:[%s289 + $0x30] sm:$0xff]
        %v632 = vld [vmem:[%s289 + $0x38] sm:$0xff]
        %v633 = vld [vmem:[%s289 + $0x40] sm:$0xff]
        %v634 = vld [vmem:[%s289 + $0x48] sm:$0xff]
        %v635 = vld [vmem:[%s289 + $0x50] sm:$0xff]
        %v636 = vld [vmem:[%s289 + $0x58] sm:$0xff]
        %v637 = vld [vmem:[%s289 + $0x60] sm:$0xff]
        %v638 = vld [vmem:[%s289 + $0x68] sm:$0xff]
        %v639 = vld [vmem:[%s289 + $0x70] sm:$0xff]
        %v640 = vld [vmem:[%s289 + $0x78] sm:$0xff]
        %v641 = vld [vmem:[#allocation4] sm:$0xff]
        %v642 = vld [vmem:[#allocation4 + $0x8] sm:$0xff]
        %v643 = vld [vmem:[#allocation4 + $0x10] sm:$0xff]
        %v644 = vld [vmem:[#allocation4 + $0x18] sm:$0xff]
        %v645 = vld [vmem:[#allocation4 + $0x20] sm:$0xff]
        %v646 = vld [vmem:[#allocation4 + $0x28] sm:$0xff]
        %v647 = vld [vmem:[#allocation4 + $0x30] sm:$0xff]
        %v648 = vld [vmem:[#allocation4 + $0x38] sm:$0xff]
        %v649 = vld [vmem:[#allocation4 + $0x40] sm:$0xff]
        %v650 = vld [vmem:[#allocation4 + $0x48] sm:$0xff]
        %v651 = vld [vmem:[#allocation4 + $0x50] sm:$0xff]
        %v652 = vld [vmem:[#allocation4 + $0x58] sm:$0xff]
        %v653 = vld [vmem:[#allocation4 + $0x60] sm:$0xff]
        %v654 = vld [vmem:[#allocation4 + $0x68] sm:$0xff]
        %v655 = vld [vmem:[#allocation4 + $0x70] sm:$0xff]
        %v656 = vld [vmem:[#allocation4 + $0x78] sm:$0xff]
        %v657 = vlaneseq
        %v658 = vand.u32 %v657, 127
        %vm659 = vcmp.lt.s32.totalorder %v658, 4
        %v660 = vsel %vm659, %v586, -1e+30
        %v661 = vsel %vm659, %v588, -1e+30
        %v662 = vsel %vm659, %v591, -1e+30
        %v663 = vsel %vm659, %v593, -1e+30
        %v664 = vsel %vm659, %v596, -1e+30
        %v665 = vsel %vm659, %v598, -1e+30
        %v666 = vsel %vm659, %v601, -1e+30
        %v667 = vsel %vm659, %v603, -1e+30
        %v668 = vsel %vm659, %v606, -1e+30
        %v669 = vsel %vm659, %v608, -1e+30
        %v670 = vsel %vm659, %v611, -1e+30
        %v671 = vsel %vm659, %v613, -1e+30
        %v672 = vsel %vm659, %v616, -1e+30
        %v673 = vsel %vm659, %v618, -1e+30
        %v674 = vsel %vm659, %v621, -1e+30
        %v675 = vsel %vm659, %v623, -1e+30
        %676 = vmax.xlane.f32.xlu0 %v660
        %v677 = vpop.xlane.xlu0 %676
        %678 = vmax.xlane.f32.xlu0 %v661
        %v679 = vpop.xlane.xlu0 %678
        %680 = vmax.xlane.f32.xlu0 %v662
        %v681 = vpop.xlane.xlu0 %680
        %682 = vmax.xlane.f32.xlu0 %v663
        %v683 = vpop.xlane.xlu0 %682
        %684 = vmax.xlane.f32.xlu0 %v664
        %v685 = vpop.xlane.xlu0 %684
        %686 = vmax.xlane.f32.xlu0 %v665
        %v687 = vpop.xlane.xlu0 %686
        %688 = vmax.xlane.f32.xlu0 %v666
        %v689 = vpop.xlane.xlu0 %688
        %690 = vmax.xlane.f32.xlu0 %v667
        %v691 = vpop.xlane.xlu0 %690
        %692 = vmax.xlane.f32.xlu0 %v668
        %v693 = vpop.xlane.xlu0 %692
        %694 = vmax.xlane.f32.xlu0 %v669
        %v695 = vpop.xlane.xlu0 %694
        %696 = vmax.xlane.f32.xlu0 %v670
        %v697 = vpop.xlane.xlu0 %696
        %698 = vmax.xlane.f32.xlu0 %v671
        %v699 = vpop.xlane.xlu0 %698
        %700 = vmax.xlane.f32.xlu0 %v672
        %v701 = vpop.xlane.xlu0 %700
        %702 = vmax.xlane.f32.xlu0 %v673
        %v703 = vpop.xlane.xlu0 %702
        %704 = vmax.xlane.f32.xlu0 %v674
        %v705 = vpop.xlane.xlu0 %704
        %706 = vmax.xlane.f32.xlu0 %v675
        %v707 = vpop.xlane.xlu0 %706
        %v708 = vsub.f32 %v660, %v677
        %v709 = vsub.f32 %v661, %v679
        %v710 = vsub.f32 %v662, %v681
        %v711 = vsub.f32 %v663, %v683
        %v712 = vsub.f32 %v664, %v685
        %v713 = vsub.f32 %v665, %v687
        %v714 = vsub.f32 %v666, %v689
        %v715 = vsub.f32 %v667, %v691
        %v716 = vsub.f32 %v668, %v693
        %v717 = vsub.f32 %v669, %v695
        %v718 = vsub.f32 %v670, %v697
        %v719 = vsub.f32 %v671, %v699
        %v720 = vsub.f32 %v672, %v701
        %v721 = vsub.f32 %v673, %v703
        %v722 = vsub.f32 %v674, %v705
        %v723 = vsub.f32 %v675, %v707
        %v724 = vmul.f32 %v708, 1.442695
        %v725 = vpow.pop %v724
        %v726 = vmul.f32 %v709, 1.442695
        %v727 = vpow.pop %v726
        %v728 = vmul.f32 %v710, 1.442695
        %v729 = vpow.pop %v728
        %v730 = vmul.f32 %v711, 1.442695
        %v731 = vpow.pop %v730
        %v732 = vmul.f32 %v712, 1.442695
        %v733 = vpow.pop %v732
        %v734 = vmul.f32 %v713, 1.442695
        %v735 = vpow.pop %v734
        %v736 = vmul.f32 %v714, 1.442695
        %v737 = vpow.pop %v736
        %v738 = vmul.f32 %v715, 1.442695
        %v739 = vpow.pop %v738
        %v740 = vmul.f32 %v716, 1.442695
        %v741 = vpow.pop %v740
        %v742 = vmul.f32 %v717, 1.442695
        %v743 = vpow.pop %v742
        %v744 = vmul.f32 %v718, 1.442695
        %v745 = vpow.pop %v744
        %v746 = vmul.f32 %v719, 1.442695
        %v747 = vpow.pop %v746
        %v748 = vmul.f32 %v720, 1.442695
        %v749 = vpow.pop %v748
        %v750 = vmul.f32 %v721, 1.442695
        %v751 = vpow.pop %v750
        %v752 = vmul.f32 %v722, 1.442695
        %v753 = vpow.pop %v752
        %v754 = vmul.f32 %v723, 1.442695
        %v755 = vpow.pop %v754
        %v756 = vsel %vm659, %v725, 0.0
        %v757 = vsel %vm659, %v727, 0.0
        %v758 = vsel %vm659, %v729, 0.0
        %v759 = vsel %vm659, %v731, 0.0
        %v760 = vsel %vm659, %v733, 0.0
        %v761 = vsel %vm659, %v735, 0.0
        %v762 = vsel %vm659, %v737, 0.0
        %v763 = vsel %vm659, %v739, 0.0
        %v764 = vsel %vm659, %v741, 0.0
        %v765 = vsel %vm659, %v743, 0.0
        %v766 = vsel %vm659, %v745, 0.0
        %v767 = vsel %vm659, %v747, 0.0
        %v768 = vsel %vm659, %v749, 0.0
        %v769 = vsel %vm659, %v751, 0.0
        %v770 = vsel %vm659, %v753, 0.0
        %v771 = vsel %vm659, %v755, 0.0
        %772 = vadd.xlane.f32.xlu0 %v756
        %v773 = vpop.xlane.xlu0 %772
        %774 = vadd.xlane.f32.xlu0 %v757
        %v775 = vpop.xlane.xlu0 %774
        %776 = vadd.xlane.f32.xlu0 %v758
        %v777 = vpop.xlane.xlu0 %776
        %778 = vadd.xlane.f32.xlu0 %v759
        %v779 = vpop.xlane.xlu0 %778
        %780 = vadd.xlane.f32.xlu0 %v760
        %v781 = vpop.xlane.xlu0 %780
        %782 = vadd.xlane.f32.xlu0 %v761
        %v783 = vpop.xlane.xlu0 %782
        %784 = vadd.xlane.f32.xlu0 %v762
        %v785 = vpop.xlane.xlu0 %784
        %786 = vadd.xlane.f32.xlu0 %v763
        %v787 = vpop.xlane.xlu0 %786
        %788 = vadd.xlane.f32.xlu0 %v764
        %v789 = vpop.xlane.xlu0 %788
        %790 = vadd.xlane.f32.xlu0 %v765
        %v791 = vpop.xlane.xlu0 %790
        %792 = vadd.xlane.f32.xlu0 %v766
        %v793 = vpop.xlane.xlu0 %792
        %794 = vadd.xlane.f32.xlu0 %v767
        %v795 = vpop.xlane.xlu0 %794
        %796 = vadd.xlane.f32.xlu0 %v768
        %v797 = vpop.xlane.xlu0 %796
        %798 = vadd.xlane.f32.xlu0 %v769
        %v799 = vpop.xlane.xlu0 %798
        %800 = vadd.xlane.f32.xlu0 %v770
        %v801 = vpop.xlane.xlu0 %800
        %802 = vadd.xlane.f32.xlu0 %v771
        %v803 = vpop.xlane.xlu0 %802
        %v804 = vrcp.pop %v773
        %v805 = vrcp.pop %v775
        %v806 = vrcp.pop %v777
        %v807 = vrcp.pop %v779
        %v808 = vrcp.pop %v781
        %v809 = vrcp.pop %v783
        %v810 = vrcp.pop %v785
        %v811 = vrcp.pop %v787
        %v812 = vrcp.pop %v789
        %v813 = vrcp.pop %v791
        %v814 = vrcp.pop %v793
        %v815 = vrcp.pop %v795
        %v816 = vrcp.pop %v797
        %v817 = vrcp.pop %v799
        %v818 = vrcp.pop %v801
        %v819 = vrcp.pop %v803
        %v820 = vmul.f32 %v756, %v804
        %v821 = vmul.f32 %v757, %v805
        %v822 = vmul.f32 %v758, %v806
        %v823 = vmul.f32 %v759, %v807
        %v824 = vmul.f32 %v760, %v808
        %v825 = vmul.f32 %v761, %v809
        %v826 = vmul.f32 %v762, %v810
        %v827 = vmul.f32 %v763, %v811
        %v828 = vmul.f32 %v764, %v812
        %v829 = vmul.f32 %v765, %v813
        %v830 = vmul.f32 %v766, %v814
        %v831 = vmul.f32 %v767, %v815
        %v832 = vmul.f32 %v768, %v816
        %v833 = vmul.f32 %v769, %v817
        %v834 = vmul.f32 %v770, %v818
        %v835 = vmul.f32 %v771, %v819
        %836 = vst [vmem:[%s295] sm:$0xff] %v820
        %837 = vst [vmem:[%s295 + $0x8] sm:$0xff] %v821
        %838 = vst [vmem:[%s295 + $0x10] sm:$0xff] %v822
        %839 = vst [vmem:[%s295 + $0x18] sm:$0xff] %v823
        %840 = vst [vmem:[%s295 + $0x20] sm:$0xff] %v824
        %841 = vst [vmem:[%s295 + $0x28] sm:$0xff] %v825
        %842 = vst [vmem:[%s295 + $0x30] sm:$0xff] %v826
        %843 = vst [vmem:[%s295 + $0x38] sm:$0xff] %v827
        %844 = vst [vmem:[%s295 + $0x40] sm:$0xff] %v828
        %845 = vst [vmem:[%s295 + $0x48] sm:$0xff] %v829
        %846 = vst [vmem:[%s295 + $0x50] sm:$0xff] %v830
        %847 = vst [vmem:[%s295 + $0x58] sm:$0xff] %v831
        %848 = vst [vmem:[%s295 + $0x60] sm:$0xff] %v832
        %849 = vst [vmem:[%s295 + $0x68] sm:$0xff] %v833
        %850 = vst [vmem:[%s295 + $0x70] sm:$0xff] %v834
        %851 = vst [vmem:[%s295 + $0x78] sm:$0xff] %v835
        %v852 = vmul.f32 %v625, %v625
        %v853 = vmul.f32 %v626, %v626
        %v854 = vmul.f32 %v627, %v627
        %v855 = vmul.f32 %v628, %v628
        %v856 = vmul.f32 %v629, %v629
        %v857 = vmul.f32 %v630, %v630
        %v858 = vmul.f32 %v631, %v631
        %v859 = vmul.f32 %v632, %v632
        %v860 = vmul.f32 %v633, %v633
        %v861 = vmul.f32 %v634, %v634
        %v862 = vmul.f32 %v635, %v635
        %v863 = vmul.f32 %v636, %v636
        %v864 = vmul.f32 %v637, %v637
        %v865 = vmul.f32 %v638, %v638
        %v866 = vmul.f32 %v639, %v639
        %v867 = vmul.f32 %v640, %v640
        %868 = vadd.xlane.f32.xlu0 %v852
        %v869 = vpop.xlane.xlu0 %868
        %870 = vadd.xlane.f32.xlu0 %v853
        %v871 = vpop.xlane.xlu0 %870
        %872 = vadd.xlane.f32.xlu0 %v854
        %v873 = vpop.xlane.xlu0 %872
        %874 = vadd.xlane.f32.xlu0 %v855
        %v875 = vpop.xlane.xlu0 %874
        %876 = vadd.xlane.f32.xlu0 %v856
        %v877 = vpop.xlane.xlu0 %876
        %878 = vadd.xlane.f32.xlu0 %v857
        %v879 = vpop.xlane.xlu0 %878
        %880 = vadd.xlane.f32.xlu0 %v858
        %v881 = vpop.xlane.xlu0 %880
        %882 = vadd.xlane.f32.xlu0 %v859
        %v883 = vpop.xlane.xlu0 %882
        %884 = vadd.xlane.f32.xlu0 %v860
        %v885 = vpop.xlane.xlu0 %884
        %886 = vadd.xlane.f32.xlu0 %v861
        %v887 = vpop.xlane.xlu0 %886
        %888 = vadd.xlane.f32.xlu0 %v862
        %v889 = vpop.xlane.xlu0 %888
        %890 = vadd.xlane.f32.xlu0 %v863
        %v891 = vpop.xlane.xlu0 %890
        %892 = vadd.xlane.f32.xlu0 %v864
        %v893 = vpop.xlane.xlu0 %892
        %894 = vadd.xlane.f32.xlu0 %v865
        %v895 = vpop.xlane.xlu0 %894
        %896 = vadd.xlane.f32.xlu0 %v866
        %v897 = vpop.xlane.xlu0 %896
        %898 = vadd.xlane.f32.xlu0 %v867
        %v899 = vpop.xlane.xlu0 %898
        %v900 = vmul.f32 %v641, %v641
        %v901 = vmul.f32 %v642, %v642
        %v902 = vmul.f32 %v643, %v643
        %v903 = vmul.f32 %v644, %v644
        %v904 = vmul.f32 %v645, %v645
        %v905 = vmul.f32 %v646, %v646
        %v906 = vmul.f32 %v647, %v647
        %v907 = vmul.f32 %v648, %v648
        %v908 = vmul.f32 %v649, %v649
        %v909 = vmul.f32 %v650, %v650
        %v910 = vmul.f32 %v651, %v651
        %v911 = vmul.f32 %v652, %v652
        %v912 = vmul.f32 %v653, %v653
        %v913 = vmul.f32 %v654, %v654
        %v914 = vmul.f32 %v655, %v655
        %v915 = vmul.f32 %v656, %v656
        %v916 = vadd.f32 %v900, %v901
        %v917 = vadd.f32 %v916, %v902
        %v918 = vadd.f32 %v917, %v903
        %v919 = vadd.f32 %v918, %v904
        %v920 = vadd.f32 %v919, %v905
        %v921 = vadd.f32 %v920, %v906
        %v922 = vadd.f32 %v921, %v907
        %v923 = vadd.f32 %v922, %v908
        %v924 = vadd.f32 %v923, %v909
        %v925 = vadd.f32 %v924, %v910
        %v926 = vadd.f32 %v925, %v911
        %v927 = vadd.f32 %v926, %v912
        %v928 = vadd.f32 %v927, %v913
        %v929 = vadd.f32 %v928, %v914
        %v930 = vadd.f32 %v929, %v915
        %v931 = vrot.slane %v930, 4
        %v932 = vadd.f32 %v930, %v931
        %v933 = vrot.slane %v932, 2
        %v934 = vadd.f32 %v932, %v933
        %v935 = vrot.slane %v934, 1
        %v936 = vadd.f32 %v934, %v935
        %937 = vmatpush.msra.mxu0 %v656
        %938 = vmatpush.msra.mxu0 %v655
        %939 = vmatpush.msra.mxu0 %v654
        %940 = vmatpush.msra.mxu0 %v653
        %941 = vmatpush.msra.mxu0 %v652
        %942 = vmatpush.msra.mxu0 %v651
        %943 = vmatpush.msra.mxu0 %v650
        %944 = vmatpush.msra.mxu0 %v649
        %945 = vmatpush.msra.mxu0 %v648
        %946 = vmatpush.msra.mxu0 %v647
        %947 = vmatpush.msra.mxu0 %v646
        %948 = vmatpush.msra.mxu0 %v645
        %949 = vmatpush.msra.mxu0 %v644
        %950 = vmatpush.msra.mxu0 %v643
        %951 = vmatpush.msra.mxu0 %v642
        %952 = vmatpush.msra.mxu0 %v641
        %953 = vmatmul.f32.gmra.mxu0 %v625
        %v954 = vpop.f32.mrf.mxu0
        %v955 = vadd.f32 0.0, %v954
        %956 = vmatmul.f32.gmra.mxu0 %v626
        %v957 = vpop.f32.mrf.mxu0
        %v958 = vadd.f32 0.0, %v957
        %959 = vmatmul.f32.gmra.mxu0 %v627
        %v960 = vpop.f32.mrf.mxu0
        %v961 = vadd.f32 0.0, %v960
        %962 = vmatmul.f32.gmra.mxu0 %v628
        %v963 = vpop.f32.mrf.mxu0
        %v964 = vadd.f32 0.0, %v963
        %965 = vmatmul.f32.gmra.mxu0 %v629
        %v966 = vpop.f32.mrf.mxu0
        %v967 = vadd.f32 0.0, %v966
        %968 = vmatmul.f32.gmra.mxu0 %v630
        %v969 = vpop.f32.mrf.mxu0
        %v970 = vadd.f32 0.0, %v969
        %971 = vmatmul.f32.gmra.mxu0 %v631
        %v972 = vpop.f32.mrf.mxu0
        %v973 = vadd.f32 0.0, %v972
        %974 = vmatmul.f32.gmra.mxu0 %v632
        %v975 = vpop.f32.mrf.mxu0
        %v976 = vadd.f32 0.0, %v975
        %977 = vmatmul.f32.gmra.mxu0 %v633
        %v978 = vpop.f32.mrf.mxu0
        %v979 = vadd.f32 0.0, %v978
        %980 = vmatmul.f32.gmra.mxu0 %v634
        %v981 = vpop.f32.mrf.mxu0
        %v982 = vadd.f32 0.0, %v981
        %983 = vmatmul.f32.gmra.mxu0 %v635
        %v984 = vpop.f32.mrf.mxu0
        %v985 = vadd.f32 0.0, %v984
        %986 = vmatmul.f32.gmra.mxu0 %v636
        %v987 = vpop.f32.mrf.mxu0
        %v988 = vadd.f32 0.0, %v987
        %989 = vmatmul.f32.gmra.mxu0 %v637
        %v990 = vpop.f32.mrf.mxu0
        %v991 = vadd.f32 0.0, %v990
        %992 = vmatmul.f32.gmra.mxu0 %v638
        %v993 = vpop.f32.mrf.mxu0
        %v994 = vadd.f32 0.0, %v993
        %995 = vmatmul.f32.gmra.mxu0 %v639
        %v996 = vpop.f32.mrf.mxu0
        %v997 = vadd.f32 0.0, %v996
        %998 = vmatmul.f32.gmra.mxu0 %v640
        %v999 = vpop.f32.mrf.mxu0
        %v1000 = vadd.f32 0.0, %v999
        %1001 = vdwg.mxu0
        %v1002 = vadd.f32 %v869, %v936
        %v1003 = vadd.f32 %v871, %v936
        %v1004 = vadd.f32 %v873, %v936
        %v1005 = vadd.f32 %v875, %v936
        %v1006 = vadd.f32 %v877, %v936
        %v1007 = vadd.f32 %v879, %v936
        %v1008 = vadd.f32 %v881, %v936
        %v1009 = vadd.f32 %v883, %v936
        %v1010 = vadd.f32 %v885, %v936
        %v1011 = vadd.f32 %v887, %v936
        %v1012 = vadd.f32 %v889, %v936
        %v1013 = vadd.f32 %v891, %v936
        %v1014 = vadd.f32 %v893, %v936
        %v1015 = vadd.f32 %v895, %v936
        %v1016 = vadd.f32 %v897, %v936
        %v1017 = vadd.f32 %v899, %v936
        %v1018 = vmul.f32 %v955, 2.0
        %v1019 = vmul.f32 %v958, 2.0
        %v1020 = vmul.f32 %v961, 2.0
        %v1021 = vmul.f32 %v964, 2.0
        %v1022 = vmul.f32 %v967, 2.0
        %v1023 = vmul.f32 %v970, 2.0
        %v1024 = vmul.f32 %v973, 2.0
        %v1025 = vmul.f32 %v976, 2.0
        %v1026 = vmul.f32 %v979, 2.0
        %v1027 = vmul.f32 %v982, 2.0
        %v1028 = vmul.f32 %v985, 2.0
        %v1029 = vmul.f32 %v988, 2.0
        %v1030 = vmul.f32 %v991, 2.0
        %v1031 = vmul.f32 %v994, 2.0
        %v1032 = vmul.f32 %v997, 2.0
        %v1033 = vmul.f32 %v1000, 2.0
        %v1034 = vsub.f32 %v1002, %v1018
        %v1035 = vsub.f32 %v1003, %v1019
        %v1036 = vsub.f32 %v1004, %v1020
        %v1037 = vsub.f32 %v1005, %v1021
        %v1038 = vsub.f32 %v1006, %v1022
        %v1039 = vsub.f32 %v1007, %v1023
        %v1040 = vsub.f32 %v1008, %v1024
        %v1041 = vsub.f32 %v1009, %v1025
        %v1042 = vsub.f32 %v1010, %v1026
        %v1043 = vsub.f32 %v1011, %v1027
        %v1044 = vsub.f32 %v1012, %v1028
        %v1045 = vsub.f32 %v1013, %v1029
        %v1046 = vsub.f32 %v1014, %v1030
        %v1047 = vsub.f32 %v1015, %v1031
        %v1048 = vsub.f32 %v1016, %v1032
        %v1049 = vsub.f32 %v1017, %v1033
        %v1050 = vadd.f32 %v1034, 1.0
        %v1051 = vadd.f32 %v1035, 1.0
        %v1052 = vadd.f32 %v1036, 1.0
        %v1053 = vadd.f32 %v1037, 1.0
        %v1054 = vadd.f32 %v1038, 1.0
        %v1055 = vadd.f32 %v1039, 1.0
        %v1056 = vadd.f32 %v1040, 1.0
        %v1057 = vadd.f32 %v1041, 1.0
        %v1058 = vadd.f32 %v1042, 1.0
        %v1059 = vadd.f32 %v1043, 1.0
        %v1060 = vadd.f32 %v1044, 1.0
        %v1061 = vadd.f32 %v1045, 1.0
        %v1062 = vadd.f32 %v1046, 1.0
        %v1063 = vadd.f32 %v1047, 1.0
        %v1064 = vadd.f32 %v1048, 1.0
        %v1065 = vadd.f32 %v1049, 1.0
        %v1066 = vrcp.pop %v1050
        %v1067 = vrcp.pop %v1051
        %v1068 = vrcp.pop %v1052
        %v1069 = vrcp.pop %v1053
        %v1070 = vrcp.pop %v1054
        %v1071 = vrcp.pop %v1055
        %v1072 = vrcp.pop %v1056
        %v1073 = vrcp.pop %v1057
        %v1074 = vrcp.pop %v1058
        %v1075 = vrcp.pop %v1059
        %v1076 = vrcp.pop %v1060
        %v1077 = vrcp.pop %v1061
        %v1078 = vrcp.pop %v1062
        %v1079 = vrcp.pop %v1063
        %v1080 = vrcp.pop %v1064
        %v1081 = vrcp.pop %v1065
        %v1082 = vsel %vm659, %v1066, 0.0
        %v1083 = vsel %vm659, %v1067, 0.0
        %v1084 = vsel %vm659, %v1068, 0.0
        %v1085 = vsel %vm659, %v1069, 0.0
        %v1086 = vsel %vm659, %v1070, 0.0
        %v1087 = vsel %vm659, %v1071, 0.0
        %v1088 = vsel %vm659, %v1072, 0.0
        %v1089 = vsel %vm659, %v1073, 0.0
        %v1090 = vsel %vm659, %v1074, 0.0
        %v1091 = vsel %vm659, %v1075, 0.0
        %v1092 = vsel %vm659, %v1076, 0.0
        %v1093 = vsel %vm659, %v1077, 0.0
        %v1094 = vsel %vm659, %v1078, 0.0
        %v1095 = vsel %vm659, %v1079, 0.0
        %v1096 = vsel %vm659, %v1080, 0.0
        %v1097 = vsel %vm659, %v1081, 0.0
        %1098 = vadd.xlane.f32.xlu0 %v1082
        %v1099 = vpop.xlane.xlu0 %1098
        %1100 = vadd.xlane.f32.xlu0 %v1083
        %v1101 = vpop.xlane.xlu0 %1100
        %1102 = vadd.xlane.f32.xlu0 %v1084
        %v1103 = vpop.xlane.xlu0 %1102
        %1104 = vadd.xlane.f32.xlu0 %v1085
        %v1105 = vpop.xlane.xlu0 %1104
        %1106 = vadd.xlane.f32.xlu0 %v1086
        %v1107 = vpop.xlane.xlu0 %1106
        %1108 = vadd.xlane.f32.xlu0 %v1087
        %v1109 = vpop.xlane.xlu0 %1108
        %1110 = vadd.xlane.f32.xlu0 %v1088
        %v1111 = vpop.xlane.xlu0 %1110
        %1112 = vadd.xlane.f32.xlu0 %v1089
        %v1113 = vpop.xlane.xlu0 %1112
        %1114 = vadd.xlane.f32.xlu0 %v1090
        %v1115 = vpop.xlane.xlu0 %1114
        %1116 = vadd.xlane.f32.xlu0 %v1091
        %v1117 = vpop.xlane.xlu0 %1116
        %1118 = vadd.xlane.f32.xlu0 %v1092
        %v1119 = vpop.xlane.xlu0 %1118
        %1120 = vadd.xlane.f32.xlu0 %v1093
        %v1121 = vpop.xlane.xlu0 %1120
        %1122 = vadd.xlane.f32.xlu0 %v1094
        %v1123 = vpop.xlane.xlu0 %1122
        %1124 = vadd.xlane.f32.xlu0 %v1095
        %v1125 = vpop.xlane.xlu0 %1124
        %1126 = vadd.xlane.f32.xlu0 %v1096
        %v1127 = vpop.xlane.xlu0 %1126
        %1128 = vadd.xlane.f32.xlu0 %v1097
        %v1129 = vpop.xlane.xlu0 %1128
        %v1130 = vrcp.pop %v1099
        %v1131 = vrcp.pop %v1101
        %v1132 = vrcp.pop %v1103
        %v1133 = vrcp.pop %v1105
        %v1134 = vrcp.pop %v1107
        %v1135 = vrcp.pop %v1109
        %v1136 = vrcp.pop %v1111
        %v1137 = vrcp.pop %v1113
        %v1138 = vrcp.pop %v1115
        %v1139 = vrcp.pop %v1117
        %v1140 = vrcp.pop %v1119
        %v1141 = vrcp.pop %v1121
        %v1142 = vrcp.pop %v1123
        %v1143 = vrcp.pop %v1125
        %v1144 = vrcp.pop %v1127
        %v1145 = vrcp.pop %v1129
        %v1146 = vmul.f32 %v1082, %v1130
        %v1147 = vmul.f32 %v1083, %v1131
        %v1148 = vmul.f32 %v1084, %v1132
        %v1149 = vmul.f32 %v1085, %v1133
        %v1150 = vmul.f32 %v1086, %v1134
        %v1151 = vmul.f32 %v1087, %v1135
        %v1152 = vmul.f32 %v1088, %v1136
        %v1153 = vmul.f32 %v1089, %v1137
        %v1154 = vmul.f32 %v1090, %v1138
        %v1155 = vmul.f32 %v1091, %v1139
        %v1156 = vmul.f32 %v1092, %v1140
        %v1157 = vmul.f32 %v1093, %v1141
        %v1158 = vmul.f32 %v1094, %v1142
        %v1159 = vmul.f32 %v1095, %v1143
        %v1160 = vmul.f32 %v1096, %v1144
        %v1161 = vmul.f32 %v1097, %v1145
        %1162 = vst [vmem:[%s301] sm:$0xff] %v1146
        %1163 = vst [vmem:[%s301 + $0x8] sm:$0xff] %v1147
        %1164 = vst [vmem:[%s301 + $0x10] sm:$0xff] %v1148
        %1165 = vst [vmem:[%s301 + $0x18] sm:$0xff] %v1149
        %1166 = vst [vmem:[%s301 + $0x20] sm:$0xff] %v1150
        %1167 = vst [vmem:[%s301 + $0x28] sm:$0xff] %v1151
        %1168 = vst [vmem:[%s301 + $0x30] sm:$0xff] %v1152
        %1169 = vst [vmem:[%s301 + $0x38] sm:$0xff] %v1153
        %1170 = vst [vmem:[%s301 + $0x40] sm:$0xff] %v1154
        %1171 = vst [vmem:[%s301 + $0x48] sm:$0xff] %v1155
        %1172 = vst [vmem:[%s301 + $0x50] sm:$0xff] %v1156
        %1173 = vst [vmem:[%s301 + $0x58] sm:$0xff] %v1157
        %1174 = vst [vmem:[%s301 + $0x60] sm:$0xff] %v1158
        %1175 = vst [vmem:[%s301 + $0x68] sm:$0xff] %v1159
        %1176 = vst [vmem:[%s301 + $0x70] sm:$0xff] %v1160
        %1177 = vst [vmem:[%s301 + $0x78] sm:$0xff] %v1161
        %s1178 = smul.u32 16, %s21
        %p1179 = scmp.lt.s32.totalorder %s1178, 31
        %s1180 = scalar_select %p1179, %s1178, 31
        %s1181 = smul.addr %s1180, 8
        %s1182 = scalar_lea.vmem %s4, %s1181
        %s1183 = smul.u32 16, %s21
        %p1184 = scmp.lt.s32.totalorder %s1183, 31
        %s1185 = scalar_select %p1184, %s1183, 31
        %s1186 = smul.addr %s1185, 8
        %s1187 = scalar_lea.vmem %s5, %s1186
        // Predicated region
        $region45: #{sdcn_forward.13} parent=35 // pred_check
          %p1188 = pneg %p133
        $region46: #{sdcn_forward.13} parent=35 // pred_check_branch
          %1190 = sbr.rel (%p1188) target = $region48
        $region47: #{sdcn_forward.13} parent=35 // pred_region
          %s1191 = smul.u32 16, %s21
        $region48: #{sdcn_forward.13} parent=35 // pred_fallthru
          _
        // Predicated region
        $region49: #{sdcn_forward.13} parent=35 // pred_check
          %p1192 = pneg %p159
        $region50: #{sdcn_forward.13} parent=35 // pred_check_branch
          %1194 = sbr.rel (%p1192) target = $region52
        $region51: #{sdcn_forward.13} parent=35 // pred_region
          %s1195 = smul.u32 16, %s21
        $region52: #{sdcn_forward.13} parent=35 // pred_fallthru
          _
      $region36: #{sdcn_forward.13} parent=5 // pred_fallthru
        _
      %p1196 = scmp.le.s32.totalorder 2, %s16
      // Predicated region
      $region53: #{sdcn_forward.13} parent=5 // pred_check
        %p1197 = pneg %p1196
      $region54: #{sdcn_forward.13} parent=5 // pred_check_branch
        %1199 = sbr.rel (%p1197) target = $region56
      $region55: #{sdcn_forward.13} parent=5 // pred_region
        %s1200 = ssub.s32 %s16, 2
        // Predicated region
        $region57: #{sdcn_forward.13} parent=55 // pred_check
          %p1201 = pneg %p139
        $region58: #{sdcn_forward.13} parent=55 // pred_check_branch
          %1203 = sbr.rel (%p1201) target = $region60
        $region59: #{sdcn_forward.13} parent=55 // pred_region
          %s1204 = smul.u32 16, %s22
          %p1205 = scmp.lt.s32.totalorder %s1204, 31
          %s1206 = scalar_select %p1205, %s1204, 31
          %s1207 = smul.addr %s1206, 8
          %s1208 = scalar_lea.vmem %s4, %s1207
        $region60: #{sdcn_forward.13} parent=55 // pred_fallthru
          _
        // Predicated region
        $region61: #{sdcn_forward.13} parent=55 // pred_check
          %p1209 = pneg %p165
        $region62: #{sdcn_forward.13} parent=55 // pred_check_branch
          %1211 = sbr.rel (%p1209) target = $region64
        $region63: #{sdcn_forward.13} parent=55 // pred_region
          %s1212 = smul.u32 16, %s22
          %p1213 = scmp.lt.s32.totalorder %s1212, 31
          %s1214 = scalar_select %p1213, %s1212, 31
          %s1215 = smul.addr %s1214, 8
          %s1216 = scalar_lea.vmem %s5, %s1215
        $region64: #{sdcn_forward.13} parent=55 // pred_fallthru
          _
      $region56: #{sdcn_forward.13} parent=5 // pred_fallthru
        _
    $region6: #{sdcn_forward.13} parent=1 // loop_footer
      %s20 = sadd.s32 1, %s16
    $region7: #{sdcn_forward.13} parent=1 // loop_footer_branch
      %15 = sbr.rel target = $region3
    $region8: #{sdcn_forward.13} parent=1 // loop_exit
      _
    %1217 = vsyncpa [#allocation3], 1
    %s1218 = scalar_lea.sflag [#allocation3], 1
    %1219 = vsyncpa %s1218, 1
    %1220 = vsyncpa [#allocation5], 1

// kernel: sdcn_forward.8
$region0: #{sdcn_forward.8}
  #allocation0 [shape = 'u32[]', space=smem, size = 0x4, offset = 0x4, fixed_abs, tag = 'smem constant byte address 0x4 - core index']
  #allocation1 [shape = 'u32[72,128]{1,0:T(1,128)}', space=vmem, size = 0x9000, scoped, tag = 'internal scratch']
  %s0 = inlined_call_operand.vmem [shape: f32[256,128], index: 0, kind: input, shape index: {}]
  %s1 = inlined_call_operand.vmem [shape: f32[128,128], index: 1, kind: input, shape index: {}]
  %s2 = inlined_call_operand.vmem [shape: f32[1,128], index: 2, kind: input, shape index: {}]
  %s3 = inlined_call_operand.vmem [shape: f32[128,128], index: 3, kind: input, shape index: {}]
  %s4 = inlined_call_operand.vmem [shape: f32[1,128], index: 4, kind: input, shape index: {}]
  %s5 = inlined_call_operand.vmem [shape: f32[128,128], index: 5, kind: input, shape index: {}]
  %s6 = inlined_call_operand.vmem [shape: f32[1,128], index: 6, kind: input, shape index: {}]
  %s7 = inlined_call_operand.vmem [shape: f32[128,128], index: 7, kind: input, shape index: {}]
  %s8 = inlined_call_operand.vmem [shape: f32[1,128], index: 8, kind: input, shape index: {}]
  %s9 = inlined_call_operand.vmem [shape: f32[256,128], index: 9, kind: output, shape index: {}]
  %s10 = sld [smem:[#allocation0]]
  $region69: #{sdcn_forward.8} parent=0
    _
  %s12 = ssub.s32 1, %s10
  %s13 = scalar_select 0, %s12, %s10
  loop: start=0, step=1, limit=4
  $region2: #{sdcn_forward.8} parent=0 // loop_pre_header
    _
  $region3: #{sdcn_forward.8} parent=0 // loop_header
    %s15 = sphi 0, %s19
    %p16 = scmp.ge.s32.totalorder %s15, 4
    %s25 = sphi 0, %s27
    %s28 = sphi 0, %s25
    %s29 = sphi 0, %s28
    %s45 = sphi 0, %s29
    %s49 = sphi 0, %s49
    %s51 = sphi 0, %s49
    %s52 = sphi 0, %s51
    %s66 = sphi 0, %s52
    %s70 = sphi 0, %s70
    %s72 = sphi 0, %s70
    %s73 = sphi 0, %s72
    %s87 = sphi 0, %s73
    %s91 = sphi 0, %s91
    %s93 = sphi 0, %s91
    %s94 = sphi 0, %s93
    %s108 = sphi 0, %s94
    %s112 = sphi 0, %s112
    %s114 = sphi 0, %s112
    %s115 = sphi 0, %s114
    %s129 = sphi 0, %s115
    %s133 = sphi 0, %s133
    %s135 = sphi 0, %s133
    %s136 = sphi 0, %s135
    %s150 = sphi 0, %s136
    %s154 = sphi 0, %s154
    %s156 = sphi 0, %s154
    %s157 = sphi 0, %s156
    %s171 = sphi 0, %s157
    %s175 = sphi 0, %s175
    %s177 = sphi 0, %s175
    %s178 = sphi 0, %s177
    %s192 = sphi 0, %s178
    %s196 = sphi 0, %s196
    %s198 = sphi 0, %s196
    %s199 = sphi 0, %s198
    %s213 = sphi 0, %s199
    %s219 = sphi 0, %s221
    %s222 = sphi 0, %s219
    %s223 = sphi 0, %s222
    %s239 = sphi 0, %s223
  $region4: #{sdcn_forward.8} parent=0 // loop_header_branch
    %18 = sbr.rel (%p16) target = $region8
  $region5: #{sdcn_forward.8} parent=0 // loop_body
    %s20 = ssub.s32 %s15, 1
    %s21 = ssub.s32 %s15, 2
    %s22 = sadd.s32 %s15, 1
    %s23 = ssub.s32 %s15, %s22
    %p24 = scmp.eq.s32.totalorder %s23, 0
    %s26 = sadd.s32 %s25, 1
    %s27 = scalar_select %p24, %s25, %s26
    %p30 = pneg %p24
    %p31 = scmp.eq.s32.totalorder %s15, 1
    %p32 = por %p30, %p31
    %p33 = scmp.ne.s32.totalorder %s25, %s28
    %p34 = scmp.eq.s32.totalorder %s15, 0
    %p35 = por %p33, %p34
    %p36 = scmp.ne.s32.totalorder %s25, %s28
    %p37 = scmp.eq.s32.totalorder %s20, 1
    %p38 = por %p36, %p37
    %p39 = scmp.ne.s32.totalorder %s28, %s29
    %p40 = scmp.eq.s32.totalorder %s20, 0
    %p41 = por %p39, %p40
    %p42 = scmp.ne.s32.totalorder %s28, %s29
    %p43 = scmp.eq.s32.totalorder %s21, 1
    %p44 = por %p42, %p43
    %p46 = scmp.ne.s32.totalorder %s29, %s45
    %p47 = scmp.eq.s32.totalorder %s21, 0
    %p48 = por %p46, %p47
    %s50 = sadd.s32 %s49, 1
    %p53 = scmp.eq.s32.totalorder %s15, 1
    %p54 = scmp.ne.s32.totalorder %s49, %s51
    %p55 = scmp.eq.s32.totalorder %s15, 0
    %p56 = por %p54, %p55
    %p57 = scmp.ne.s32.totalorder %s49, %s51
    %p58 = scmp.eq.s32.totalorder %s20, 1
    %p59 = por %p57, %p58
    %p60 = scmp.ne.s32.totalorder %s51, %s52
    %p61 = scmp.eq.s32.totalorder %s20, 0
    %p62 = por %p60, %p61
    %p63 = scmp.ne.s32.totalorder %s51, %s52
    %p64 = scmp.eq.s32.totalorder %s21, 1
    %p65 = por %p63, %p64
    %p67 = scmp.ne.s32.totalorder %s52, %s66
    %p68 = scmp.eq.s32.totalorder %s21, 0
    %p69 = por %p67, %p68
    %s71 = sadd.s32 %s70, 1
    %p74 = scmp.eq.s32.totalorder %s15, 1
    %p75 = scmp.ne.s32.totalorder %s70, %s72
    %p76 = scmp.eq.s32.totalorder %s15, 0
    %p77 = por %p75, %p76
    %p78 = scmp.ne.s32.totalorder %s70, %s72
    %p79 = scmp.eq.s32.totalorder %s20, 1
    %p80 = por %p78, %p79
    %p81 = scmp.ne.s32.totalorder %s72, %s73
    %p82 = scmp.eq.s32.totalorder %s20, 0
    %p83 = por %p81, %p82
    %p84 = scmp.ne.s32.totalorder %s72, %s73
    %p85 = scmp.eq.s32.totalorder %s21, 1
    %p86 = por %p84, %p85
    %p88 = scmp.ne.s32.totalorder %s73, %s87
    %p89 = scmp.eq.s32.totalorder %s21, 0
    %p90 = por %p88, %p89
    %s92 = sadd.s32 %s91, 1
    %p95 = scmp.eq.s32.totalorder %s15, 1
    %p96 = scmp.ne.s32.totalorder %s91, %s93
    %p97 = scmp.eq.s32.totalorder %s15, 0
    %p98 = por %p96, %p97
    %p99 = scmp.ne.s32.totalorder %s91, %s93
    %p100 = scmp.eq.s32.totalorder %s20, 1
    %p101 = por %p99, %p100
    %p102 = scmp.ne.s32.totalorder %s93, %s94
    %p103 = scmp.eq.s32.totalorder %s20, 0
    %p104 = por %p102, %p103
    %p105 = scmp.ne.s32.totalorder %s93, %s94
    %p106 = scmp.eq.s32.totalorder %s21, 1
    %p107 = por %p105, %p106
    %p109 = scmp.ne.s32.totalorder %s94, %s108
    %p110 = scmp.eq.s32.totalorder %s21, 0
    %p111 = por %p109, %p110
    %s113 = sadd.s32 %s112, 1
    %p116 = scmp.eq.s32.totalorder %s15, 1
    %p117 = scmp.ne.s32.totalorder %s112, %s114
    %p118 = scmp.eq.s32.totalorder %s15, 0
    %p119 = por %p117, %p118
    %p120 = scmp.ne.s32.totalorder %s112, %s114
    %p121 = scmp.eq.s32.totalorder %s20, 1
    %p122 = por %p120, %p121
    %p123 = scmp.ne.s32.totalorder %s114, %s115
    %p124 = scmp.eq.s32.totalorder %s20, 0
    %p125 = por %p123, %p124
    %p126 = scmp.ne.s32.totalorder %s114, %s115
    %p127 = scmp.eq.s32.totalorder %s21, 1
    %p128 = por %p126, %p127
    %p130 = scmp.ne.s32.totalorder %s115, %s129
    %p131 = scmp.eq.s32.totalorder %s21, 0
    %p132 = por %p130, %p131
    %s134 = sadd.s32 %s133, 1
    %p137 = scmp.eq.s32.totalorder %s15, 1
    %p138 = scmp.ne.s32.totalorder %s133, %s135
    %p139 = scmp.eq.s32.totalorder %s15, 0
    %p140 = por %p138, %p139
    %p141 = scmp.ne.s32.totalorder %s133, %s135
    %p142 = scmp.eq.s32.totalorder %s20, 1
    %p143 = por %p141, %p142
    %p144 = scmp.ne.s32.totalorder %s135, %s136
    %p145 = scmp.eq.s32.totalorder %s20, 0
    %p146 = por %p144, %p145
    %p147 = scmp.ne.s32.totalorder %s135, %s136
    %p148 = scmp.eq.s32.totalorder %s21, 1
    %p149 = por %p147, %p148
    %p151 = scmp.ne.s32.totalorder %s136, %s150
    %p152 = scmp.eq.s32.totalorder %s21, 0
    %p153 = por %p151, %p152
    %s155 = sadd.s32 %s154, 1
    %p158 = scmp.eq.s32.totalorder %s15, 1
    %p159 = scmp.ne.s32.totalorder %s154, %s156
    %p160 = scmp.eq.s32.totalorder %s15, 0
    %p161 = por %p159, %p160
    %p162 = scmp.ne.s32.totalorder %s154, %s156
    %p163 = scmp.eq.s32.totalorder %s20, 1
    %p164 = por %p162, %p163
    %p165 = scmp.ne.s32.totalorder %s156, %s157
    %p166 = scmp.eq.s32.totalorder %s20, 0
    %p167 = por %p165, %p166
    %p168 = scmp.ne.s32.totalorder %s156, %s157
    %p169 = scmp.eq.s32.totalorder %s21, 1
    %p170 = por %p168, %p169
    %p172 = scmp.ne.s32.totalorder %s157, %s171
    %p173 = scmp.eq.s32.totalorder %s21, 0
    %p174 = por %p172, %p173
    %s176 = sadd.s32 %s175, 1
    %p179 = scmp.eq.s32.totalorder %s15, 1
    %p180 = scmp.ne.s32.totalorder %s175, %s177
    %p181 = scmp.eq.s32.totalorder %s15, 0
    %p182 = por %p180, %p181
    %p183 = scmp.ne.s32.totalorder %s175, %s177
    %p184 = scmp.eq.s32.totalorder %s20, 1
    %p185 = por %p183, %p184
    %p186 = scmp.ne.s32.totalorder %s177, %s178
    %p187 = scmp.eq.s32.totalorder %s20, 0
    %p188 = por %p186, %p187
    %p189 = scmp.ne.s32.totalorder %s177, %s178
    %p190 = scmp.eq.s32.totalorder %s21, 1
    %p191 = por %p189, %p190
    %p193 = scmp.ne.s32.totalorder %s178, %s192
    %p194 = scmp.eq.s32.totalorder %s21, 0
    %p195 = por %p193, %p194
    %s197 = sadd.s32 %s196, 1
    %p200 = scmp.eq.s32.totalorder %s15, 1
    %p201 = scmp.ne.s32.totalorder %s196, %s198
    %p202 = scmp.eq.s32.totalorder %s15, 0
    %p203 = por %p201, %p202
    %p204 = scmp.ne.s32.totalorder %s196, %s198
    %p205 = scmp.eq.s32.totalorder %s20, 1
    %p206 = por %p204, %p205
    %p207 = scmp.ne.s32.totalorder %s198, %s199
    %p208 = scmp.eq.s32.totalorder %s20, 0
    %p209 = por %p207, %p208
    %p210 = scmp.ne.s32.totalorder %s198, %s199
    %p211 = scmp.eq.s32.totalorder %s21, 1
    %p212 = por %p210, %p211
    %p214 = scmp.ne.s32.totalorder %s199, %s213
    %p215 = scmp.eq.s32.totalorder %s21, 0
    %p216 = por %p214, %p215
    %s217 = ssub.s32 %s15, %s22
    %p218 = scmp.eq.s32.totalorder %s217, 0
    %s220 = sadd.s32 %s219, 1
    %s221 = scalar_select %p218, %s219, %s220
    %p224 = pneg %p218
    %p225 = scmp.eq.s32.totalorder %s15, 1
    %p226 = por %p224, %p225
    %p227 = scmp.ne.s32.totalorder %s219, %s222
    %p228 = scmp.eq.s32.totalorder %s15, 0
    %p229 = por %p227, %p228
    %p230 = scmp.ne.s32.totalorder %s219, %s222
    %p231 = scmp.eq.s32.totalorder %s20, 1
    %p232 = por %p230, %p231
    %p233 = scmp.ne.s32.totalorder %s222, %s223
    %p234 = scmp.eq.s32.totalorder %s20, 0
    %p235 = por %p233, %p234
    %p236 = scmp.ne.s32.totalorder %s222, %s223
    %p237 = scmp.eq.s32.totalorder %s21, 1
    %p238 = por %p236, %p237
    %p240 = scmp.ne.s32.totalorder %s223, %s239
    %p241 = scmp.eq.s32.totalorder %s21, 0
    %p242 = por %p240, %p241
    %p243 = scmp.le.s32.totalorder 1, %s15
    %p244 = scmp.lt.s32.totalorder %s15, 3
    %p245 = pnand %p243, %p244
    %p246 = pneg %p245
    // Predicated region
    $region9: #{sdcn_forward.8} parent=5 // pred_check
      _
    $region10: #{sdcn_forward.8} parent=5 // pred_check_branch
      %248 = sbr.rel (%p245) target = $region12
    $region11: #{sdcn_forward.8} parent=5 // pred_region
      %s249 = ssub.s32 %s15, 1
      // Predicated region
      $region13: #{sdcn_forward.8} parent=11 // pred_check
        %p250 = pneg %p62
      $region14: #{sdcn_forward.8} parent=11 // pred_check_branch
        %252 = sbr.rel (%p250) target = $region16
      $region15: #{sdcn_forward.8} parent=11 // pred_region
        _
      $region16: #{sdcn_forward.8} parent=11 // pred_fallthru
        _
      // Predicated region
      $region17: #{sdcn_forward.8} parent=11 // pred_check
        %p253 = pneg %p83
      $region18: #{sdcn_forward.8} parent=11 // pred_check_branch
        %255 = sbr.rel (%p253) target = $region20
      $region19: #{sdcn_forward.8} parent=11 // pred_region
        _
      $region20: #{sdcn_forward.8} parent=11 // pred_fallthru
        _
      // Predicated region
      $region21: #{sdcn_forward.8} parent=11 // pred_check
        %p256 = pneg %p104
      $region22: #{sdcn_forward.8} parent=11 // pred_check_branch
        %258 = sbr.rel (%p256) target = $region24
      $region23: #{sdcn_forward.8} parent=11 // pred_region
        _
      $region24: #{sdcn_forward.8} parent=11 // pred_fallthru
        _
      // Predicated region
      $region25: #{sdcn_forward.8} parent=11 // pred_check
        %p259 = pneg %p125
      $region26: #{sdcn_forward.8} parent=11 // pred_check_branch
        %261 = sbr.rel (%p259) target = $region28
      $region27: #{sdcn_forward.8} parent=11 // pred_region
        _
      $region28: #{sdcn_forward.8} parent=11 // pred_fallthru
        _
      // Predicated region
      $region29: #{sdcn_forward.8} parent=11 // pred_check
        %p262 = pneg %p146
      $region30: #{sdcn_forward.8} parent=11 // pred_check_branch
        %264 = sbr.rel (%p262) target = $region32
      $region31: #{sdcn_forward.8} parent=11 // pred_region
        _
      $region32: #{sdcn_forward.8} parent=11 // pred_fallthru
        _
      // Predicated region
      $region33: #{sdcn_forward.8} parent=11 // pred_check
        %p265 = pneg %p167
      $region34: #{sdcn_forward.8} parent=11 // pred_check_branch
        %267 = sbr.rel (%p265) target = $region36
      $region35: #{sdcn_forward.8} parent=11 // pred_region
        _
      $region36: #{sdcn_forward.8} parent=11 // pred_fallthru
        _
      // Predicated region
      $region37: #{sdcn_forward.8} parent=11 // pred_check
        %p268 = pneg %p188
      $region38: #{sdcn_forward.8} parent=11 // pred_check_branch
        %270 = sbr.rel (%p268) target = $region40
      $region39: #{sdcn_forward.8} parent=11 // pred_region
        _
      $region40: #{sdcn_forward.8} parent=11 // pred_fallthru
        _
      // Predicated region
      $region41: #{sdcn_forward.8} parent=11 // pred_check
        %p271 = pneg %p209
      $region42: #{sdcn_forward.8} parent=11 // pred_check_branch
        %273 = sbr.rel (%p271) target = $region44
      $region43: #{sdcn_forward.8} parent=11 // pred_region
        _
      $region44: #{sdcn_forward.8} parent=11 // pred_fallthru
        _
    $region12: #{sdcn_forward.8} parent=5 // pred_fallthru
      _
    %p274 = scmp.lt.s32.totalorder %s15, 2
    // Predicated region
    $region45: #{sdcn_forward.8} parent=5 // pred_check
      %p275 = pneg %p274
    $region46: #{sdcn_forward.8} parent=5 // pred_check_branch
      %277 = sbr.rel (%p275) target = $region48
    $region47: #{sdcn_forward.8} parent=5 // pred_region
      // Predicated region
      $region49: #{sdcn_forward.8} parent=47 // pred_check
        %p278 = pneg %p35
      $region50: #{sdcn_forward.8} parent=47 // pred_check_branch
        %280 = sbr.rel (%p278) target = $region52
      $region51: #{sdcn_forward.8} parent=47 // pred_region
        %s281 = smul.u32 16, %s15
        %p282 = scmp.lt.s32.totalorder %s281, 31
        %s283 = scalar_select %p282, %s281, 31
        %s284 = smul.addr %s283, 8
        %s285 = scalar_lea.vmem %s0, %s284
        %s286 = smul.u32 16, %s15
      $region52: #{sdcn_forward.8} parent=47 // pred_fallthru
        _
    $region48: #{sdcn_forward.8} parent=5 // pred_fallthru
      _
    %p287 = scmp.le.s32.totalorder 1, %s15
    %p288 = scmp.lt.s32.totalorder %s15, 3
    %p289 = pnand %p287, %p288
    %p290 = pneg %p289
    // Predicated region
    $region53: #{sdcn_forward.8} parent=5 // pred_check
      _
    $region54: #{sdcn_forward.8} parent=5 // pred_check_branch
      %292 = sbr.rel (%p289) target = $region56
    $region55: #{sdcn_forward.8} parent=5 // pred_region
      %s293 = ssub.s32 %s15, 1
      %s294 = smul.u32 16, %s20
      %p295 = scmp.lt.s32.totalorder %s294, 31
      %s296 = scalar_select %p295, %s294, 31
      %s297 = smul.addr %s296, 8
      %s298 = scalar_lea.vmem %s0, %s297
      %p299 = pneg %p41
      %p300 = pneg %p38
      %p301 = pneg %p62
      %p302 = pneg %p59
      %p303 = pneg %p83
      %p304 = pneg %p80
      %p305 = pneg %p104
      %p306 = pneg %p101
      %p307 = pneg %p125
      %p308 = pneg %p122
      %p309 = pneg %p146
      %p310 = pneg %p143
      %p311 = pneg %p167
      %p312 = pneg %p164
      %p313 = pneg %p188
      %p314 = pneg %p185
      %p315 = pneg %p209
      %p316 = pneg %p206
      %p317 = pneg %p235
      %p318 = pneg %p232
      %s319 = smul.u32 16, %s20
      %p320 = scmp.lt.s32.totalorder %s319, 31
      %s321 = scalar_select %p320, %s319, 31
      %s322 = smul.addr %s321, 8
      %s323 = scalar_lea.vmem %s9, %s322
      %s324 = smul.u32 16, %s20
      %p325 = scmp.lt.s32.totalorder %s324, 31
      %s326 = scalar_select %p325, %s324, 31
      %s327 = smul.addr %s326, 8
      %s328 = scalar_lea.vmem %s0, %s327
      %s329 = smul.u32 16, %s20
      %s330 = smul.u32 16, %s20
      %p331 = scmp.lt.s32.totalorder %s330, 31
      %s332 = scalar_select %p331, %s330, 31
      %s333 = smul.addr %s332, 8
      %s334 = scalar_lea.vmem %s9, %s333
      %s335 = smul.u32 16, %s20
      %v336 = vld [vmem:[%s328] sm:$0xff]
      %v337 = vld [vmem:[%s328 + $0x8] sm:$0xff]
      %v338 = vld [vmem:[%s328 + $0x10] sm:$0xff]
      %v339 = vld [vmem:[%s328 + $0x18] sm:$0xff]
      %v340 = vld [vmem:[%s328 + $0x20] sm:$0xff]
      %v341 = vld [vmem:[%s328 + $0x28] sm:$0xff]
      %v342 = vld [vmem:[%s328 + $0x30] sm:$0xff]
      %v343 = vld [vmem:[%s328 + $0x38] sm:$0xff]
      %v344 = vld [vmem:[%s328 + $0x40] sm:$0xff]
      %v345 = vld [vmem:[%s328 + $0x48] sm:$0xff]
      %v346 = vld [vmem:[%s328 + $0x50] sm:$0xff]
      %v347 = vld [vmem:[%s328 + $0x58] sm:$0xff]
      %v348 = vld [vmem:[%s328 + $0x60] sm:$0xff]
      %v349 = vld [vmem:[%s328 + $0x68] sm:$0xff]
      %v350 = vld [vmem:[%s328 + $0x70] sm:$0xff]
      %v351 = vld [vmem:[%s328 + $0x78] sm:$0xff]
      %v352 = vld [vmem:[%s1] sm:$0xff]
      %v353 = vld [vmem:[%s1 + $0x8] sm:$0xff]
      %v354 = vld [vmem:[%s1 + $0x10] sm:$0xff]
      %v355 = vld [vmem:[%s1 + $0x18] sm:$0xff]
      %v356 = vld [vmem:[%s1 + $0x20] sm:$0xff]
      %v357 = vld [vmem:[%s1 + $0x28] sm:$0xff]
      %v358 = vld [vmem:[%s1 + $0x30] sm:$0xff]
      %v359 = vld [vmem:[%s1 + $0x38] sm:$0xff]
      %v360 = vld [vmem:[%s1 + $0x40] sm:$0xff]
      %v361 = vld [vmem:[%s1 + $0x48] sm:$0xff]
      %v362 = vld [vmem:[%s1 + $0x50] sm:$0xff]
      %v363 = vld [vmem:[%s1 + $0x58] sm:$0xff]
      %v364 = vld [vmem:[%s1 + $0x60] sm:$0xff]
      %v365 = vld [vmem:[%s1 + $0x68] sm:$0xff]
      %v366 = vld [vmem:[%s1 + $0x70] sm:$0xff]
      %v367 = vld [vmem:[%s1 + $0x78] sm:$0xff]
      %v368 = vld [vmem:[%s2] sm:$0x1]
      %v370 = vperm.slane %v368, 0
      %372 = vmatpush.msra.mxu0 %v367
      %373 = vmatpush.msra.mxu0 %v366
      %374 = vmatpush.msra.mxu0 %v365
      %375 = vmatpush.msra.mxu0 %v364
      %376 = vmatpush.msra.mxu0 %v363
      %377 = vmatpush.msra.mxu0 %v362
      %378 = vmatpush.msra.mxu0 %v361
      %379 = vmatpush.msra.mxu0 %v360
      %380 = vmatpush.msra.mxu0 %v359
      %381 = vmatpush.msra.mxu0 %v358
      %382 = vmatpush.msra.mxu0 %v357
      %383 = vmatpush.msra.mxu0 %v356
      %384 = vmatpush.msra.mxu0 %v355
      %385 = vmatpush.msra.mxu0 %v354
      %386 = vmatpush.msra.mxu0 %v353
      %387 = vmatpush.msra.mxu0 %v352
      %388 = vmatmul.f32.gmra.mxu0 %v336
      %v389 = vpop.f32.mrf.mxu0
      %v390 = vadd.f32 %v370, %v389
      %391 = vmatmul.f32.gmra.mxu0 %v337
      %v392 = vpop.f32.mrf.mxu0
      %v393 = vadd.f32 %v370, %v392
      %394 = vmatmul.f32.gmra.mxu0 %v338
      %v395 = vpop.f32.mrf.mxu0
      %v396 = vadd.f32 %v370, %v395
      %397 = vmatmul.f32.gmra.mxu0 %v339
      %v398 = vpop.f32.mrf.mxu0
      %v399 = vadd.f32 %v370, %v398
      %400 = vmatmul.f32.gmra.mxu0 %v340
      %v401 = vpop.f32.mrf.mxu0
      %v402 = vadd.f32 %v370, %v401
      %403 = vmatmul.f32.gmra.mxu0 %v341
      %v404 = vpop.f32.mrf.mxu0
      %v405 = vadd.f32 %v370, %v404
      %406 = vmatmul.f32.gmra.mxu0 %v342
      %v407 = vpop.f32.mrf.mxu0
      %v408 = vadd.f32 %v370, %v407
      %409 = vmatmul.f32.gmra.mxu0 %v343
      %v410 = vpop.f32.mrf.mxu0
      %v411 = vadd.f32 %v370, %v410
      %412 = vmatmul.f32.gmra.mxu0 %v344
      %v413 = vpop.f32.mrf.mxu0
      %v414 = vadd.f32 %v370, %v413
      %415 = vmatmul.f32.gmra.mxu0 %v345
      %v416 = vpop.f32.mrf.mxu0
      %v417 = vadd.f32 %v370, %v416
      %418 = vmatmul.f32.gmra.mxu0 %v346
      %v419 = vpop.f32.mrf.mxu0
      %v420 = vadd.f32 %v370, %v419
      %421 = vmatmul.f32.gmra.mxu0 %v347
      %v422 = vpop.f32.mrf.mxu0
      %v423 = vadd.f32 %v370, %v422
      %424 = vmatmul.f32.gmra.mxu0 %v348
      %v425 = vpop.f32.mrf.mxu0
      %v426 = vadd.f32 %v370, %v425
      %427 = vmatmul.f32.gmra.mxu0 %v349
      %v428 = vpop.f32.mrf.mxu0
      %v429 = vadd.f32 %v370, %v428
      %430 = vmatmul.f32.gmra.mxu0 %v350
      %v431 = vpop.f32.mrf.mxu0
      %v432 = vadd.f32 %v370, %v431
      %433 = vmatmul.f32.gmra.mxu0 %v351
      %v434 = vpop.f32.mrf.mxu0
      %v435 = vadd.f32 %v370, %v434
      %436 = vdwg.mxu0
      %v437 = vmax.f32 %v390, 0.0
      %v438 = vmax.f32 %v393, 0.0
      %v439 = vmax.f32 %v396, 0.0
      %v440 = vmax.f32 %v399, 0.0
      %v441 = vmax.f32 %v402, 0.0
      %v442 = vmax.f32 %v405, 0.0
      %v443 = vmax.f32 %v408, 0.0
      %v444 = vmax.f32 %v411, 0.0
      %v445 = vmax.f32 %v414, 0.0
      %v446 = vmax.f32 %v417, 0.0
      %v447 = vmax.f32 %v420, 0.0
      %v448 = vmax.f32 %v423, 0.0
      %v449 = vmax.f32 %v426, 0.0
      %v450 = vmax.f32 %v429, 0.0
      %v451 = vmax.f32 %v432, 0.0
      %v452 = vmax.f32 %v435, 0.0
      %v453 = vld [vmem:[%s3] sm:$0xff]
      %v454 = vld [vmem:[%s3 + $0x8] sm:$0xff]
      %v455 = vld [vmem:[%s3 + $0x10] sm:$0xff]
      %v456 = vld [vmem:[%s3 + $0x18] sm:$0xff]
      %v457 = vld [vmem:[%s3 + $0x20] sm:$0xff]
      %v458 = vld [vmem:[%s3 + $0x28] sm:$0xff]
      %v459 = vld [vmem:[%s3 + $0x30] sm:$0xff]
      %v460 = vld [vmem:[%s3 + $0x38] sm:$0xff]
      %v461 = vld [vmem:[%s3 + $0x40] sm:$0xff]
      %v462 = vld [vmem:[%s3 + $0x48] sm:$0xff]
      %v463 = vld [vmem:[%s3 + $0x50] sm:$0xff]
      %v464 = vld [vmem:[%s3 + $0x58] sm:$0xff]
      %v465 = vld [vmem:[%s3 + $0x60] sm:$0xff]
      %v466 = vld [vmem:[%s3 + $0x68] sm:$0xff]
      %v467 = vld [vmem:[%s3 + $0x70] sm:$0xff]
      %v468 = vld [vmem:[%s3 + $0x78] sm:$0xff]
      %v469 = vld [vmem:[%s4] sm:$0x1]
      %v471 = vperm.slane %v469, 0
      %473 = vmatpush.msra.mxu0 %v468
      %474 = vmatpush.msra.mxu0 %v467
      %475 = vmatpush.msra.mxu0 %v466
      %476 = vmatpush.msra.mxu0 %v465
      %477 = vmatpush.msra.mxu0 %v464
      %478 = vmatpush.msra.mxu0 %v463
      %479 = vmatpush.msra.mxu0 %v462
      %480 = vmatpush.msra.mxu0 %v461
      %481 = vmatpush.msra.mxu0 %v460
      %482 = vmatpush.msra.mxu0 %v459
      %483 = vmatpush.msra.mxu0 %v458
      %484 = vmatpush.msra.mxu0 %v457
      %485 = vmatpush.msra.mxu0 %v456
      %486 = vmatpush.msra.mxu0 %v455
      %487 = vmatpush.msra.mxu0 %v454
      %488 = vmatpush.msra.mxu0 %v453
      %489 = vmatmul.f32.gmra.mxu0 %v437
      %v490 = vpop.f32.mrf.mxu0
      %v491 = vadd.f32 %v471, %v490
      %492 = vmatmul.f32.gmra.mxu0 %v438
      %v493 = vpop.f32.mrf.mxu0
      %v494 = vadd.f32 %v471, %v493
      %495 = vmatmul.f32.gmra.mxu0 %v439
      %v496 = vpop.f32.mrf.mxu0
      %v497 = vadd.f32 %v471, %v496
      %498 = vmatmul.f32.gmra.mxu0 %v440
      %v499 = vpop.f32.mrf.mxu0
      %v500 = vadd.f32 %v471, %v499
      %501 = vmatmul.f32.gmra.mxu0 %v441
      %v502 = vpop.f32.mrf.mxu0
      %v503 = vadd.f32 %v471, %v502
      %504 = vmatmul.f32.gmra.mxu0 %v442
      %v505 = vpop.f32.mrf.mxu0
      %v506 = vadd.f32 %v471, %v505
      %507 = vmatmul.f32.gmra.mxu0 %v443
      %v508 = vpop.f32.mrf.mxu0
      %v509 = vadd.f32 %v471, %v508
      %510 = vmatmul.f32.gmra.mxu0 %v444
      %v511 = vpop.f32.mrf.mxu0
      %v512 = vadd.f32 %v471, %v511
      %513 = vmatmul.f32.gmra.mxu0 %v445
      %v514 = vpop.f32.mrf.mxu0
      %v515 = vadd.f32 %v471, %v514
      %516 = vmatmul.f32.gmra.mxu0 %v446
      %v517 = vpop.f32.mrf.mxu0
      %v518 = vadd.f32 %v471, %v517
      %519 = vmatmul.f32.gmra.mxu0 %v447
      %v520 = vpop.f32.mrf.mxu0
      %v521 = vadd.f32 %v471, %v520
      %522 = vmatmul.f32.gmra.mxu0 %v448
      %v523 = vpop.f32.mrf.mxu0
      %v524 = vadd.f32 %v471, %v523
      %525 = vmatmul.f32.gmra.mxu0 %v449
      %v526 = vpop.f32.mrf.mxu0
      %v527 = vadd.f32 %v471, %v526
      %528 = vmatmul.f32.gmra.mxu0 %v450
      %v529 = vpop.f32.mrf.mxu0
      %v530 = vadd.f32 %v471, %v529
      %531 = vmatmul.f32.gmra.mxu0 %v451
      %v532 = vpop.f32.mrf.mxu0
      %v533 = vadd.f32 %v471, %v532
      %534 = vmatmul.f32.gmra.mxu0 %v452
      %v535 = vpop.f32.mrf.mxu0
      %v536 = vadd.f32 %v471, %v535
      %537 = vdwg.mxu0
      %v538 = vmax.f32 %v491, 0.0
      %v539 = vmax.f32 %v494, 0.0
      %v540 = vmax.f32 %v497, 0.0
      %v541 = vmax.f32 %v500, 0.0
      %v542 = vmax.f32 %v503, 0.0
      %v543 = vmax.f32 %v506, 0.0
      %v544 = vmax.f32 %v509, 0.0
      %v545 = vmax.f32 %v512, 0.0
      %v546 = vmax.f32 %v515, 0.0
      %v547 = vmax.f32 %v518, 0.0
      %v548 = vmax.f32 %v521, 0.0
      %v549 = vmax.f32 %v524, 0.0
      %v550 = vmax.f32 %v527, 0.0
      %v551 = vmax.f32 %v530, 0.0
      %v552 = vmax.f32 %v533, 0.0
      %v553 = vmax.f32 %v536, 0.0
      %v554 = vld [vmem:[%s5] sm:$0xff]
      %v555 = vld [vmem:[%s5 + $0x8] sm:$0xff]
      %v556 = vld [vmem:[%s5 + $0x10] sm:$0xff]
      %v557 = vld [vmem:[%s5 + $0x18] sm:$0xff]
      %v558 = vld [vmem:[%s5 + $0x20] sm:$0xff]
      %v559 = vld [vmem:[%s5 + $0x28] sm:$0xff]
      %v560 = vld [vmem:[%s5 + $0x30] sm:$0xff]
      %v561 = vld [vmem:[%s5 + $0x38] sm:$0xff]
      %v562 = vld [vmem:[%s5 + $0x40] sm:$0xff]
      %v563 = vld [vmem:[%s5 + $0x48] sm:$0xff]
      %v564 = vld [vmem:[%s5 + $0x50] sm:$0xff]
      %v565 = vld [vmem:[%s5 + $0x58] sm:$0xff]
      %v566 = vld [vmem:[%s5 + $0x60] sm:$0xff]
      %v567 = vld [vmem:[%s5 + $0x68] sm:$0xff]
      %v568 = vld [vmem:[%s5 + $0x70] sm:$0xff]
      %v569 = vld [vmem:[%s5 + $0x78] sm:$0xff]
      %v570 = vld [vmem:[%s6] sm:$0x1]
      %v572 = vperm.slane %v570, 0
      %574 = vmatpush.msra.mxu0 %v569
      %575 = vmatpush.msra.mxu0 %v568
      %576 = vmatpush.msra.mxu0 %v567
      %577 = vmatpush.msra.mxu0 %v566
      %578 = vmatpush.msra.mxu0 %v565
      %579 = vmatpush.msra.mxu0 %v564
      %580 = vmatpush.msra.mxu0 %v563
      %581 = vmatpush.msra.mxu0 %v562
      %582 = vmatpush.msra.mxu0 %v561
      %583 = vmatpush.msra.mxu0 %v560
      %584 = vmatpush.msra.mxu0 %v559
      %585 = vmatpush.msra.mxu0 %v558
      %586 = vmatpush.msra.mxu0 %v557
      %587 = vmatpush.msra.mxu0 %v556
      %588 = vmatpush.msra.mxu0 %v555
      %589 = vmatpush.msra.mxu0 %v554
      %590 = vmatmul.f32.gmra.mxu0 %v538
      %v591 = vpop.f32.mrf.mxu0
      %v592 = vadd.f32 %v572, %v591
      %593 = vmatmul.f32.gmra.mxu0 %v539
      %v594 = vpop.f32.mrf.mxu0
      %v595 = vadd.f32 %v572, %v594
      %596 = vmatmul.f32.gmra.mxu0 %v540
      %v597 = vpop.f32.mrf.mxu0
      %v598 = vadd.f32 %v572, %v597
      %599 = vmatmul.f32.gmra.mxu0 %v541
      %v600 = vpop.f32.mrf.mxu0
      %v601 = vadd.f32 %v572, %v600
      %602 = vmatmul.f32.gmra.mxu0 %v542
      %v603 = vpop.f32.mrf.mxu0
      %v604 = vadd.f32 %v572, %v603
      %605 = vmatmul.f32.gmra.mxu0 %v543
      %v606 = vpop.f32.mrf.mxu0
      %v607 = vadd.f32 %v572, %v606
      %608 = vmatmul.f32.gmra.mxu0 %v544
      %v609 = vpop.f32.mrf.mxu0
      %v610 = vadd.f32 %v572, %v609
      %611 = vmatmul.f32.gmra.mxu0 %v545
      %v612 = vpop.f32.mrf.mxu0
      %v613 = vadd.f32 %v572, %v612
      %614 = vmatmul.f32.gmra.mxu0 %v546
      %v615 = vpop.f32.mrf.mxu0
      %v616 = vadd.f32 %v572, %v615
      %617 = vmatmul.f32.gmra.mxu0 %v547
      %v618 = vpop.f32.mrf.mxu0
      %v619 = vadd.f32 %v572, %v618
      %620 = vmatmul.f32.gmra.mxu0 %v548
      %v621 = vpop.f32.mrf.mxu0
      %v622 = vadd.f32 %v572, %v621
      %623 = vmatmul.f32.gmra.mxu0 %v549
      %v624 = vpop.f32.mrf.mxu0
      %v625 = vadd.f32 %v572, %v624
      %626 = vmatmul.f32.gmra.mxu0 %v550
      %v627 = vpop.f32.mrf.mxu0
      %v628 = vadd.f32 %v572, %v627
      %629 = vmatmul.f32.gmra.mxu0 %v551
      %v630 = vpop.f32.mrf.mxu0
      %v631 = vadd.f32 %v572, %v630
      %632 = vmatmul.f32.gmra.mxu0 %v552
      %v633 = vpop.f32.mrf.mxu0
      %v634 = vadd.f32 %v572, %v633
      %635 = vmatmul.f32.gmra.mxu0 %v553
      %v636 = vpop.f32.mrf.mxu0
      %v637 = vadd.f32 %v572, %v636
      %638 = vdwg.mxu0
      %v639 = vmax.f32 %v592, 0.0
      %v640 = vmax.f32 %v595, 0.0
      %v641 = vmax.f32 %v598, 0.0
      %v642 = vmax.f32 %v601, 0.0
      %v643 = vmax.f32 %v604, 0.0
      %v644 = vmax.f32 %v607, 0.0
      %v645 = vmax.f32 %v610, 0.0
      %v646 = vmax.f32 %v613, 0.0
      %v647 = vmax.f32 %v616, 0.0
      %v648 = vmax.f32 %v619, 0.0
      %v649 = vmax.f32 %v622, 0.0
      %v650 = vmax.f32 %v625, 0.0
      %v651 = vmax.f32 %v628, 0.0
      %v652 = vmax.f32 %v631, 0.0
      %v653 = vmax.f32 %v634, 0.0
      %v654 = vmax.f32 %v637, 0.0
      %v655 = vld [vmem:[%s7] sm:$0xff]
      %v656 = vld [vmem:[%s7 + $0x8] sm:$0xff]
      %v657 = vld [vmem:[%s7 + $0x10] sm:$0xff]
      %v658 = vld [vmem:[%s7 + $0x18] sm:$0xff]
      %v659 = vld [vmem:[%s7 + $0x20] sm:$0xff]
      %v660 = vld [vmem:[%s7 + $0x28] sm:$0xff]
      %v661 = vld [vmem:[%s7 + $0x30] sm:$0xff]
      %v662 = vld [vmem:[%s7 + $0x38] sm:$0xff]
      %v663 = vld [vmem:[%s7 + $0x40] sm:$0xff]
      %v664 = vld [vmem:[%s7 + $0x48] sm:$0xff]
      %v665 = vld [vmem:[%s7 + $0x50] sm:$0xff]
      %v666 = vld [vmem:[%s7 + $0x58] sm:$0xff]
      %v667 = vld [vmem:[%s7 + $0x60] sm:$0xff]
      %v668 = vld [vmem:[%s7 + $0x68] sm:$0xff]
      %v669 = vld [vmem:[%s7 + $0x70] sm:$0xff]
      %v670 = vld [vmem:[%s7 + $0x78] sm:$0xff]
      %v671 = vld [vmem:[%s8] sm:$0x1]
      %v673 = vperm.slane %v671, 0
      %675 = vmatpush.msra.mxu0 %v670
      %676 = vmatpush.msra.mxu0 %v669
      %677 = vmatpush.msra.mxu0 %v668
      %678 = vmatpush.msra.mxu0 %v667
      %679 = vmatpush.msra.mxu0 %v666
      %680 = vmatpush.msra.mxu0 %v665
      %681 = vmatpush.msra.mxu0 %v664
      %682 = vmatpush.msra.mxu0 %v663
      %683 = vmatpush.msra.mxu0 %v662
      %684 = vmatpush.msra.mxu0 %v661
      %685 = vmatpush.msra.mxu0 %v660
      %686 = vmatpush.msra.mxu0 %v659
      %687 = vmatpush.msra.mxu0 %v658
      %688 = vmatpush.msra.mxu0 %v657
      %689 = vmatpush.msra.mxu0 %v656
      %690 = vmatpush.msra.mxu0 %v655
      %691 = vmatmul.f32.gmra.mxu0 %v639
      %v692 = vpop.f32.mrf.mxu0
      %v693 = vadd.f32 %v673, %v692
      %694 = vmatmul.f32.gmra.mxu0 %v640
      %v695 = vpop.f32.mrf.mxu0
      %v696 = vadd.f32 %v673, %v695
      %697 = vmatmul.f32.gmra.mxu0 %v641
      %v698 = vpop.f32.mrf.mxu0
      %v699 = vadd.f32 %v673, %v698
      %700 = vmatmul.f32.gmra.mxu0 %v642
      %v701 = vpop.f32.mrf.mxu0
      %v702 = vadd.f32 %v673, %v701
      %703 = vmatmul.f32.gmra.mxu0 %v643
      %v704 = vpop.f32.mrf.mxu0
      %v705 = vadd.f32 %v673, %v704
      %706 = vmatmul.f32.gmra.mxu0 %v644
      %v707 = vpop.f32.mrf.mxu0
      %v708 = vadd.f32 %v673, %v707
      %709 = vmatmul.f32.gmra.mxu0 %v645
      %v710 = vpop.f32.mrf.mxu0
      %v711 = vadd.f32 %v673, %v710
      %712 = vmatmul.f32.gmra.mxu0 %v646
      %v713 = vpop.f32.mrf.mxu0
      %v714 = vadd.f32 %v673, %v713
      %715 = vmatmul.f32.gmra.mxu0 %v647
      %v716 = vpop.f32.mrf.mxu0
      %v717 = vadd.f32 %v673, %v716
      %718 = vmatmul.f32.gmra.mxu0 %v648
      %v719 = vpop.f32.mrf.mxu0
      %v720 = vadd.f32 %v673, %v719
      %721 = vmatmul.f32.gmra.mxu0 %v649
      %v722 = vpop.f32.mrf.mxu0
      %v723 = vadd.f32 %v673, %v722
      %724 = vmatmul.f32.gmra.mxu0 %v650
      %v725 = vpop.f32.mrf.mxu0
      %v726 = vadd.f32 %v673, %v725
      %727 = vmatmul.f32.gmra.mxu0 %v651
      %v728 = vpop.f32.mrf.mxu0
      %v729 = vadd.f32 %v673, %v728
      %730 = vmatmul.f32.gmra.mxu0 %v652
      %v731 = vpop.f32.mrf.mxu0
      %v732 = vadd.f32 %v673, %v731
      %733 = vmatmul.f32.gmra.mxu0 %v653
      %v734 = vpop.f32.mrf.mxu0
      %v735 = vadd.f32 %v673, %v734
      %736 = vmatmul.f32.gmra.mxu0 %v654
      %v737 = vpop.f32.mrf.mxu0
      %v738 = vadd.f32 %v673, %v737
      %739 = vdwg.mxu0
      %740 = vst [vmem:[%s334] sm:$0xff] %v693
      %741 = vst [vmem:[%s334 + $0x8] sm:$0xff] %v696
      %742 = vst [vmem:[%s334 + $0x10] sm:$0xff] %v699
      %743 = vst [vmem:[%s334 + $0x18] sm:$0xff] %v702
      %744 = vst [vmem:[%s334 + $0x20] sm:$0xff] %v705
      %745 = vst [vmem:[%s334 + $0x28] sm:$0xff] %v708
      %746 = vst [vmem:[%s334 + $0x30] sm:$0xff] %v711
      %747 = vst [vmem:[%s334 + $0x38] sm:$0xff] %v714
      %748 = vst [vmem:[%s334 + $0x40] sm:$0xff] %v717
      %749 = vst [vmem:[%s334 + $0x48] sm:$0xff] %v720
      %750 = vst [vmem:[%s334 + $0x50] sm:$0xff] %v723
      %751 = vst [vmem:[%s334 + $0x58] sm:$0xff] %v726
      %752 = vst [vmem:[%s334 + $0x60] sm:$0xff] %v729
      %753 = vst [vmem:[%s334 + $0x68] sm:$0xff] %v732
      %754 = vst [vmem:[%s334 + $0x70] sm:$0xff] %v735
      %755 = vst [vmem:[%s334 + $0x78] sm:$0xff] %v738
      %s756 = smul.u32 16, %s20
      %p757 = scmp.lt.s32.totalorder %s756, 31
      %s758 = scalar_select %p757, %s756, 31
      %s759 = smul.addr %s758, 8
      %s760 = scalar_lea.vmem %s9, %s759
      // Predicated region
      $region57: #{sdcn_forward.8} parent=55 // pred_check
        %p761 = pneg %p232
      $region58: #{sdcn_forward.8} parent=55 // pred_check_branch
        %763 = sbr.rel (%p761) target = $region60
      $region59: #{sdcn_forward.8} parent=55 // pred_region
        %s764 = smul.u32 16, %s20
      $region60: #{sdcn_forward.8} parent=55 // pred_fallthru
        _
    $region56: #{sdcn_forward.8} parent=5 // pred_fallthru
      _
    %p765 = scmp.le.s32.totalorder 2, %s15
    // Predicated region
    $region61: #{sdcn_forward.8} parent=5 // pred_check
      %p766 = pneg %p765
    $region62: #{sdcn_forward.8} parent=5 // pred_check_branch
      %768 = sbr.rel (%p766) target = $region64
    $region63: #{sdcn_forward.8} parent=5 // pred_region
      %s769 = ssub.s32 %s15, 2
      // Predicated region
      $region65: #{sdcn_forward.8} parent=63 // pred_check
        %p770 = pneg %p238
      $region66: #{sdcn_forward.8} parent=63 // pred_check_branch
        %772 = sbr.rel (%p770) target = $region68
      $region67: #{sdcn_forward.8} parent=63 // pred_region
        %s773 = smul.u32 16, %s21
        %p774 = scmp.lt.s32.totalorder %s773, 31
        %s775 = scalar_select %p774, %s773, 31
        %s776 = smul.addr %s775, 8
        %s777 = scalar_lea.vmem %s9, %s776
      $region68: #{sdcn_forward.8} parent=63 // pred_fallthru
        _
    $region64: #{sdcn_forward.8} parent=5 // pred_fallthru
      _
  $region6: #{sdcn_forward.8} parent=0 // loop_footer
    %s19 = sadd.s32 1, %s15
  $region7: #{sdcn_forward.8} parent=0 // loop_footer_branch
    %14 = sbr.rel target = $region3
  $region8: #{sdcn_forward.8} parent=0 // loop_exit
    _

</llo_original>
